<compile_context>
chip_gen: v6e
topology: v6e:2x2x1
jax: 0.10.0
libtpu: 0.0.40
codegen_flags: <defaults>
</compile_context>

<pallas_src>
import functools

import jax
import jax.numpy as jnp
import numpy as np
from jax.experimental import pallas as pl
from jax.experimental.pallas import tpu as pltpu

EXPANSION = 4


# ----------------------------------------------------------------------------
# Fused bottleneck kernel (one grid step == one block of NB batch images)
# ----------------------------------------------------------------------------
def _bottleneck_kernel(*refs, stride, planes, nb, out_hw, sub_shapes, has_ds):
    s = stride
    nsub = s * s
    Ho, Wo = out_hw
    M = nb * Ho * Wo

    i = 0
    xsub = refs[i:i + nsub]; i += nsub                       # parity sub-images of x
    w1_ref, b1_ref, w2_ref, b2_ref, w3_ref, b3_ref = refs[i:i + 6]; i += 6
    if has_ds:
        wsc_ref, bsc_ref = refs[i:i + 2]; i += 2
    o_ref = refs[i]; i += 1
    t1_scr = refs[i:i + nsub]                                # padded conv1 outputs (VMEM, bf16)

    # Hoisted bias loads (JAX does not CSE per-iteration reloads/broadcasts).
    b1 = b1_ref[...]
    b2 = b2_ref[...]
    b3 = b3_ref[...]

    # --- conv1 (1x1) + bn1 + relu: one matmul per parity sub-image ----------
    # Result is written into a zero-padded bf16 scratch with a single
    # rectangular store; the 1-pixel zero border implements conv2's padding.
    for k in range(nsub):
        hs, wsub = sub_shapes[k]
        scr = t1_scr[k]

        # Zero only the border (interior is fully overwritten below).  Re-done
        # every step so it is correct even when the parallel grid axis is
        # split across TensorCores (each core has its own scratch).
        zrow = jnp.zeros((nb, 1, wsub + 2, planes), scr.dtype)
        zcol = jnp.zeros((nb, hs + 2, 1, planes), scr.dtype)
        scr[:, 0:1, :, :] = zrow
        scr[:, hs + 1:hs + 2, :, :] = zrow
        scr[:, :, 0:1, :] = zcol
        scr[:, :, wsub + 1:wsub + 2, :] = zcol

        t = jnp.dot(xsub[k][...].astype(jnp.bfloat16), w1_ref[...],
                    preferred_element_type=jnp.float32)      # (nb*hs*wsub, P) f32
        t = jnp.maximum(t + b1, 0.0)
        scr[:, 1:1 + hs, 1:1 + wsub, :] = (
            t.astype(scr.dtype).reshape(nb, hs, wsub, planes))

    # --- conv2 (3x3, stride) + bn2 + relu: one whole-image matmul per tap ---
    # Stride is folded into the parity decomposition, so each tap reads a
    # contiguous (nb, Ho, Wo, P) window of one parity scratch.
    acc = jnp.zeros((M, planes), jnp.float32)
    for kh in range(3):
        ph = (kh - 1) % s
        dh = (kh - 1 - ph) // s
        for kw in range(3):
            pw = (kw - 1) % s
            dw = (kw - 1 - pw) // s
            k = ph * s + pw
            win = t1_scr[k][:, 1 + dh:1 + dh + Ho, 1 + dw:1 + dw + Wo, :]
            acc += jnp.dot(win.reshape(M, planes), w2_ref[kh * 3 + kw],
                           preferred_element_type=jnp.float32)
    y2 = jnp.maximum(acc + b2, 0.0).astype(jnp.bfloat16)     # (M, P)

    # --- conv3 (1x1) + bn3 + shortcut + residual add + relu; single store ---
    out = jnp.dot(y2, w3_ref[...], preferred_element_type=jnp.float32) + b3
    if has_ds:
        sc = jnp.dot(xsub[0][...], wsc_ref[...],
                     preferred_element_type=jnp.float32) + bsc_ref[...]
    else:
        sc = xsub[0][...]                                    # f32 identity residual
    o_ref[...] = jnp.maximum(out + sc, 0.0).astype(o_ref.dtype)


# ----------------------------------------------------------------------------
# Wrapper: layout prep (parity split, BN-folded bf16 weights) + pallas_call
# ----------------------------------------------------------------------------
def bottleneck_forward(x_nchw, p, stride):
    x = jnp.transpose(x_nchw, (0, 2, 3, 1)).astype(jnp.float32)   # NCHW -> NHWC
    N, H, W, Cin = x.shape
    planes = p["w1"].shape[1]
    exp_c = EXPANSION * planes
    s = int(stride)
    Ho = (H - 1) // s + 1
    Wo = (W - 1) // s + 1
    has_ds = (s != 1) or (Cin != exp_c)

    # Batch blocking: keep 2 parallel grid steps when possible (v7x has 2 TCs)
    # and merge each step's NB images along the matmul M dimension.
    G = 2 if (N >= 2 and N % 2 == 0) else 1
    NB = N // G

    # Space-to-batch parity split of x (XLA-side strided slices).  Parity
    # (0,0) doubles as the shortcut input x[::s, ::s].
    xsubs, sub_shapes = [], []
    for ph in range(s):
        for pw in range(s):
            xs = x[:, ph::s, pw::s, :]
            hs, wsub = xs.shape[1], xs.shape[2]
            sub_shapes.append((hs, wsub))
            dt = jnp.bfloat16
            if not has_ds and (ph, pw) == (0, 0):
                dt = jnp.float32            # keep identity residual in f32
            xsubs.append(xs.reshape(G, NB * hs * wsub, Cin).astype(dt))

    # Fold BN scale into weight columns; bf16 MXU weights, f32 biases.
    w1f = (p["w1"] * p["s1"][None, :]).astype(jnp.bfloat16)            # (Cin, P)
    w2f = jnp.stack([p["w2_oihw"][:, :, kh, kw].T * p["s2"][None, :]
                     for kh in range(3) for kw in range(3)],
                    axis=0).astype(jnp.bfloat16)                       # (9, P, P)
    w3f = (p["w3"] * p["s3"][None, :]).astype(jnp.bfloat16)            # (P, 4P)
    b1f = p["b1"].reshape(1, planes).astype(jnp.float32)
    b2f = p["b2"].reshape(1, planes).astype(jnp.float32)
    b3f = p["b3"].reshape(1, exp_c).astype(jnp.float32)

    args = list(xsubs) + [w1f, b1f, w2f, b2f, w3f, b3f]
    in_specs = [pl.BlockSpec((None, NB * hs * wsub, Cin), lambda g: (g, 0, 0))
                for (hs, wsub) in sub_shapes]
    in_specs += [
        pl.BlockSpec((Cin, planes), lambda g: (0, 0)),
        pl.BlockSpec((1, planes), lambda g: (0, 0)),
        pl.BlockSpec((9, planes, planes), lambda g: (0, 0, 0)),
        pl.BlockSpec((1, planes), lambda g: (0, 0)),
        pl.BlockSpec((planes, exp_c), lambda g: (0, 0)),
        pl.BlockSpec((1, exp_c), lambda g: (0, 0)),
    ]
    if has_ds:
        wscf = (p["ws"] * p["ss"][None, :]).astype(jnp.bfloat16)       # (Cin, 4P)
        bscf = p["bs"].reshape(1, exp_c).astype(jnp.float32)
        args += [wscf, bscf]
        in_specs += [pl.BlockSpec((Cin, exp_c), lambda g: (0, 0)),
                     pl.BlockSpec((1, exp_c), lambda g: (0, 0))]

    # Padded per-parity conv1 scratch in bf16 (halves VMEM vs f32).
    scratch = [pltpu.VMEM((NB, hs + 2, wsub + 2, planes), jnp.bfloat16)
               for (hs, wsub) in sub_shapes]

    kernel = functools.partial(
        _bottleneck_kernel, stride=s, planes=planes, nb=NB, out_hw=(Ho, Wo),
        sub_shapes=tuple(sub_shapes), has_ds=has_ds)

    out = pl.pallas_call(
        kernel,
        out_shape=jax.ShapeDtypeStruct((G, NB * Ho * Wo, exp_c), jnp.float32),
        grid=(G,),
        in_specs=in_specs,
        out_specs=pl.BlockSpec((None, NB * Ho * Wo, exp_c), lambda g: (g, 0, 0)),
        scratch_shapes=scratch,
        compiler_params=pltpu.CompilerParams(
            dimension_semantics=("parallel",),
            vmem_limit_bytes=32 * 1024 * 1024),
    )(*args)

    out = out.reshape(N, Ho, Wo, exp_c)
    return jnp.transpose(out, (0, 3, 1, 2))                  # NHWC -> NCHW


# ----------------------------------------------------------------------------
# Deterministic parameter construction (folded BatchNorm, inference mode)
# ----------------------------------------------------------------------------
def fold_bn(gamma, beta, mean, var, eps=1e-5):
    scale = gamma / jnp.sqrt(var + eps)
    bias = beta - mean * scale
    return scale, bias


def make_params(key, in_planes, planes, stride):
    exp_c = EXPANSION * planes
    ks = jax.random.split(key, 8)

    def bn_params(k, c):
        k1, k2, k3, k4 = jax.random.split(k, 4)
        gamma = 1.0 + 0.1 * jax.random.normal(k1, (c,), jnp.float32)
        beta = 0.1 * jax.random.normal(k2, (c,), jnp.float32)
        mean = 0.1 * jax.random.normal(k3, (c,), jnp.float32)
        var = 1.0 + 0.1 * jax.random.uniform(k4, (c,), jnp.float32)
        return fold_bn(gamma, beta, mean, var)

    # PyTorch-layout (OIHW) weights for the reference, plus matmul layouts.
    w1_oihw = 0.1 * jax.random.normal(ks[0], (planes, in_planes, 1, 1), jnp.float32)
    w2_oihw = 0.1 * jax.random.normal(ks[1], (planes, planes, 3, 3), jnp.float32)
    w3_oihw = 0.1 * jax.random.normal(ks[2], (exp_c, planes, 1, 1), jnp.float32)
    ws_oihw = 0.1 * jax.random.normal(ks[3], (exp_c, in_planes, 1, 1), jnp.float32)

    s1, b1 = bn_params(ks[4], planes)
    s2, b2 = bn_params(ks[5], planes)
    s3, b3 = bn_params(ks[6], exp_c)
    ss, bs = bn_params(ks[7], exp_c)

    return dict(
        w1=w1_oihw[:, :, 0, 0].T,                            # (Cin, planes)
        w3=w3_oihw[:, :, 0, 0].T,                            # (planes, 4*planes)
        ws=ws_oihw[:, :, 0, 0].T,                            # (Cin, 4*planes)
        w2_oihw=w2_oihw,
        s1=s1, b1=b1, s2=s2, b2=b2, s3=s3, b3=b3, ss=ss, bs=bs,
        w1_oihw=w1_oihw, w3_oihw=w3_oihw, ws_oihw=ws_oihw,
    )


# ----------------------------------------------------------------------------
# Pure-JAX (XLA conv, f32) reference for correctness checking
# ----------------------------------------------------------------------------
def _conv_nchw(x, w_oihw, stride=1, pad=0):
    return jax.lax.conv_general_dilated(
        x, w_oihw, (stride, stride), [(pad, pad), (pad, pad)],
        dimension_numbers=("NCHW", "OIHW", "NCHW"))


def reference_forward(x, p, stride):
    exp_c = p["w3_oihw"].shape[0]
    has_ds = (stride != 1) or (x.shape[1] != exp_c)

    def bn(y, s, b):
        return y * s[None, :, None, None] + b[None, :, None, None]

    out = jax.nn.relu(bn(_conv_nchw(x, p["w1_oihw"]), p["s1"], p["b1"]))
    out = jax.nn.relu(bn(_conv_nchw(out, p["w2_oihw"], stride, 1), p["s2"], p["b2"]))
    out = bn(_conv_nchw(out, p["w3_oihw"]), p["s3"], p["b3"])
    if has_ds:
        sc = bn(_conv_nchw(x, p["ws_oihw"], stride), p["ss"], p["bs"])
    else:
        sc = x
    return jax.nn.relu(out + sc)


# ----------------------------------------------------------------------------
if __name__ == "__main__":
    key = jax.random.PRNGKey(0)
    kx1, kp1, kx2, kp2 = jax.random.split(key, 4)

    # Case 1: downsample shortcut (stride=2, in_planes != 4*planes).
    N, in_planes, planes, H, W, stride = 2, 16, 8, 16, 16, 2
    x1 = jax.random.normal(kx1, (N, in_planes, H, W), jnp.float32)   # NCHW
    p1 = make_params(kp1, in_planes, planes, stride)
    out1 = jax.block_until_ready(
        jax.jit(lambda a: bottleneck_forward(a, p1, stride))(x1))
    ref1 = jax.block_until_ready(reference_forward(x1, p1, stride))
    # bf16 MXU inputs -> loosened tolerance vs. the f32 XLA reference.
    np.testing.assert_allclose(np.asarray(out1), np.asarray(ref1),
                               rtol=2e-2, atol=2e-2)
    assert out1.shape == (N, EXPANSION * planes, H // stride, W // stride)

    # Case 2: identity shortcut (stride=1, in_planes == 4*planes).
    N2, in2, planes2, H2, W2 = 2, 32, 8, 8, 8
    x2 = jax.random.normal(kx2, (N2, in2, H2, W2), jnp.float32)
    p2 = make_params(kp2, in2, planes2, 1)
    out2 = jax.block_until_ready(
        jax.jit(lambda a: bottleneck_forward(a, p2, 1))(x2))
    ref2 = jax.block_until_ready(reference_forward(x2, p2, 1))
    np.testing.assert_allclose(np.asarray(out2), np.asarray(ref2),
                               rtol=2e-2, atol=2e-2)
    assert out2.shape == (N2, EXPANSION * planes2, H2, W2)

    print("KERNEL_OK")
</pallas_src>

<mosaic_0001>
module attributes {stable_mosaic.version = 11 : i64} {
  func.func @_bottleneck_kernel(%arg0: i32, %arg1: memref<1x64x16xbf16, #tpu.memory_space<vmem>>, %arg2: memref<1x64x16xbf16, #tpu.memory_space<vmem>>, %arg3: memref<1x64x16xbf16, #tpu.memory_space<vmem>>, %arg4: memref<1x64x16xbf16, #tpu.memory_space<vmem>>, %arg5: memref<16x8xbf16, #tpu.memory_space<vmem>>, %arg6: memref<1x8xf32, #tpu.memory_space<vmem>>, %arg7: memref<9x8x8xbf16, #tpu.memory_space<vmem>>, %arg8: memref<1x8xf32, #tpu.memory_space<vmem>>, %arg9: memref<8x32xbf16, #tpu.memory_space<vmem>>, %arg10: memref<1x32xf32, #tpu.memory_space<vmem>>, %arg11: memref<16x32xbf16, #tpu.memory_space<vmem>>, %arg12: memref<1x32xf32, #tpu.memory_space<vmem>>, %arg13: memref<1x64x32xf32, #tpu.memory_space<vmem>>, %arg14: memref<1x10x10x8xbf16, #tpu.memory_space<vmem>>, %arg15: memref<1x10x10x8xbf16, #tpu.memory_space<vmem>>, %arg16: memref<1x10x10x8xbf16, #tpu.memory_space<vmem>>, %arg17: memref<1x10x10x8xbf16, #tpu.memory_space<vmem>>) attributes {dimension_semantics = [#tpu.dimension_semantics<parallel>], iteration_bounds = array<i64: 2>, scalar_prefetch = 0 : i64, scratch_operands = 4 : i64, tpu.core_type = #tpu.core_type<tc>, window_params = [{transform_indices = @transform_0, window_bounds = array<i64: 1, 64, 16>}, {transform_indices = @transform_1, window_bounds = array<i64: 1, 64, 16>}, {transform_indices = @transform_2, window_bounds = array<i64: 1, 64, 16>}, {transform_indices = @transform_3, window_bounds = array<i64: 1, 64, 16>}, {pipeline_mode = #tpu.pipeline_mode<synchronous>, transform_indices = @transform_4, window_bounds = array<i64: 16, 8>}, {pipeline_mode = #tpu.pipeline_mode<synchronous>, transform_indices = @transform_5, window_bounds = array<i64: 1, 8>}, {pipeline_mode = #tpu.pipeline_mode<synchronous>, transform_indices = @transform_6, window_bounds = array<i64: 9, 8, 8>}, {pipeline_mode = #tpu.pipeline_mode<synchronous>, transform_indices = @transform_7, window_bounds = array<i64: 1, 8>}, {pipeline_mode = #tpu.pipeline_mode<synchronous>, transform_indices = @transform_8, window_bounds = array<i64: 8, 32>}, {pipeline_mode = #tpu.pipeline_mode<synchronous>, transform_indices = @transform_9, window_bounds = array<i64: 1, 32>}, {pipeline_mode = #tpu.pipeline_mode<synchronous>, transform_indices = @transform_10, window_bounds = array<i64: 16, 32>}, {pipeline_mode = #tpu.pipeline_mode<synchronous>, transform_indices = @transform_11, window_bounds = array<i64: 1, 32>}, {transform_indices = @transform_12, window_bounds = array<i64: 1, 64, 32>}]} {
    %c0 = arith.constant 0 : index
    %c0_0 = arith.constant 0 : index
    %0 = vector.load %arg6[%c0, %c0_0] : memref<1x8xf32, #tpu.memory_space<vmem>>, vector<1x8xf32>
    %c0_1 = arith.constant 0 : index
    %c0_2 = arith.constant 0 : index
    %1 = vector.load %arg8[%c0_1, %c0_2] : memref<1x8xf32, #tpu.memory_space<vmem>>, vector<1x8xf32>
    %c0_3 = arith.constant 0 : index
    %c0_4 = arith.constant 0 : index
    %2 = vector.load %arg10[%c0_3, %c0_4] : memref<1x32xf32, #tpu.memory_space<vmem>>, vector<1x32xf32>
    %cst = arith.constant 0.000000e+00 : bf16
    %3 = vector.broadcast %cst : bf16 to vector<1x1x10x8xbf16>
    %cst_5 = arith.constant 0.000000e+00 : bf16
    %4 = vector.broadcast %cst_5 : bf16 to vector<1x10x1x8xbf16>
    %c0_6 = arith.constant 0 : index
    %c0_7 = arith.constant 0 : index
    %c0_8 = arith.constant 0 : index
    %c0_9 = arith.constant 0 : index
    %5 = vector.load %arg14[%c0_6, %c0_7, %c0_8, %c0_9] : memref<1x10x10x8xbf16, #tpu.memory_space<vmem>>, vector<1x1x10x8xbf16>
    tpu.vector_store %arg14[%c0_6, %c0_7, %c0_8, %c0_9], %3 {strides = array<i32>} : memref<1x10x10x8xbf16, #tpu.memory_space<vmem>>, vector<1x1x10x8xbf16>,
    %c0_10 = arith.constant 0 : index
    %c9 = arith.constant 9 : index
    %c0_11 = arith.constant 0 : index
    %c0_12 = arith.constant 0 : index
    %6 = vector.load %arg14[%c0_10, %c9, %c0_11, %c0_12] : memref<1x10x10x8xbf16, #tpu.memory_space<vmem>>, vector<1x1x10x8xbf16>
    tpu.vector_store %arg14[%c0_10, %c9, %c0_11, %c0_12], %3 {strides = array<i32>} : memref<1x10x10x8xbf16, #tpu.memory_space<vmem>>, vector<1x1x10x8xbf16>,
    %c0_13 = arith.constant 0 : index
    %c0_14 = arith.constant 0 : index
    %c0_15 = arith.constant 0 : index
    %c0_16 = arith.constant 0 : index
    %7 = vector.load %arg14[%c0_13, %c0_14, %c0_15, %c0_16] : memref<1x10x10x8xbf16, #tpu.memory_space<vmem>>, vector<1x10x1x8xbf16>
    tpu.vector_store %arg14[%c0_13, %c0_14, %c0_15, %c0_16], %4 {strides = array<i32>} : memref<1x10x10x8xbf16, #tpu.memory_space<vmem>>, vector<1x10x1x8xbf16>,
    %c0_17 = arith.constant 0 : index
    %c0_18 = arith.constant 0 : index
    %c9_19 = arith.constant 9 : index
    %c0_20 = arith.constant 0 : index
    %8 = vector.load %arg14[%c0_17, %c0_18, %c9_19, %c0_20] : memref<1x10x10x8xbf16, #tpu.memory_space<vmem>>, vector<1x10x1x8xbf16>
    tpu.vector_store %arg14[%c0_17, %c0_18, %c9_19, %c0_20], %4 {strides = array<i32>} : memref<1x10x10x8xbf16, #tpu.memory_space<vmem>>, vector<1x10x1x8xbf16>,
    %c0_21 = arith.constant 0 : index
    %c0_22 = arith.constant 0 : index
    %c0_23 = arith.constant 0 : index
    %9 = vector.load %arg1[%c0_21, %c0_22, %c0_23] : memref<1x64x16xbf16, #tpu.memory_space<vmem>>, vector<1x64x16xbf16>
    %10 = vector.shape_cast %9 : vector<1x64x16xbf16> to vector<64x16xbf16>
    %c0_24 = arith.constant 0 : index
    %c0_25 = arith.constant 0 : index
    %11 = vector.load %arg5[%c0_24, %c0_25] : memref<16x8xbf16, #tpu.memory_space<vmem>>, vector<16x8xbf16>
    %cst_26 = arith.constant dense<0.000000e+00> : vector<64x8xf32>
    %12 = tpu.matmul %10, %11, %cst_26 {dimension_numbers = #tpu.dot_dimension_numbers<[1], [0], [0], [1], [0, 0, 1, 1], [], []>} : vector<64x16xbf16>, vector<16x8xbf16>, vector<64x8xf32> -> vector<64x8xf32>
    %13 = vector.broadcast %0 : vector<1x8xf32> to vector<64x8xf32>
    %14 = arith.addf %12, %13 : vector<64x8xf32>
    %cst_27 = arith.constant 0.000000e+00 : f32
    %15 = vector.broadcast %cst_27 : f32 to vector<64x8xf32>
    %16 = arith.maximumf %14, %15 : vector<64x8xf32>
    %17 = arith.truncf %16 : vector<64x8xf32> to vector<64x8xbf16>
    %18 = vector.shape_cast %17 : vector<64x8xbf16> to vector<1x8x8x8xbf16>
    %c0_28 = arith.constant 0 : index
    %c1 = arith.constant 1 : index
    %c1_29 = arith.constant 1 : index
    %c0_30 = arith.constant 0 : index
    %19 = vector.load %arg14[%c0_28, %c1, %c1_29, %c0_30] : memref<1x10x10x8xbf16, #tpu.memory_space<vmem>>, vector<1x8x8x8xbf16>
    tpu.vector_store %arg14[%c0_28, %c1, %c1_29, %c0_30], %18 {strides = array<i32>} : memref<1x10x10x8xbf16, #tpu.memory_space<vmem>>, vector<1x8x8x8xbf16>,
    %cst_31 = arith.constant 0.000000e+00 : bf16
    %20 = vector.broadcast %cst_31 : bf16 to vector<1x1x10x8xbf16>
    %cst_32 = arith.constant 0.000000e+00 : bf16
    %21 = vector.broadcast %cst_32 : bf16 to vector<1x10x1x8xbf16>
    %c0_33 = arith.constant 0 : index
    %c0_34 = arith.constant 0 : index
    %c0_35 = arith.constant 0 : index
    %c0_36 = arith.constant 0 : index
    %22 = vector.load %arg15[%c0_33, %c0_34, %c0_35, %c0_36] : memref<1x10x10x8xbf16, #tpu.memory_space<vmem>>, vector<1x1x10x8xbf16>
    tpu.vector_store %arg15[%c0_33, %c0_34, %c0_35, %c0_36], %20 {strides = array<i32>} : memref<1x10x10x8xbf16, #tpu.memory_space<vmem>>, vector<1x1x10x8xbf16>,
    %c0_37 = arith.constant 0 : index
    %c9_38 = arith.constant 9 : index
    %c0_39 = arith.constant 0 : index
    %c0_40 = arith.constant 0 : index
    %23 = vector.load %arg15[%c0_37, %c9_38, %c0_39, %c0_40] : memref<1x10x10x8xbf16, #tpu.memory_space<vmem>>, vector<1x1x10x8xbf16>
    tpu.vector_store %arg15[%c0_37, %c9_38, %c0_39, %c0_40], %20 {strides = array<i32>} : memref<1x10x10x8xbf16, #tpu.memory_space<vmem>>, vector<1x1x10x8xbf16>,
    %c0_41 = arith.constant 0 : index
    %c0_42 = arith.constant 0 : index
    %c0_43 = arith.constant 0 : index
    %c0_44 = arith.constant 0 : index
    %24 = vector.load %arg15[%c0_41, %c0_42, %c0_43, %c0_44] : memref<1x10x10x8xbf16, #tpu.memory_space<vmem>>, vector<1x10x1x8xbf16>
    tpu.vector_store %arg15[%c0_41, %c0_42, %c0_43, %c0_44], %21 {strides = array<i32>} : memref<1x10x10x8xbf16, #tpu.memory_space<vmem>>, vector<1x10x1x8xbf16>,
    %c0_45 = arith.constant 0 : index
    %c0_46 = arith.constant 0 : index
    %c9_47 = arith.constant 9 : index
    %c0_48 = arith.constant 0 : index
    %25 = vector.load %arg15[%c0_45, %c0_46, %c9_47, %c0_48] : memref<1x10x10x8xbf16, #tpu.memory_space<vmem>>, vector<1x10x1x8xbf16>
    tpu.vector_store %arg15[%c0_45, %c0_46, %c9_47, %c0_48], %21 {strides = array<i32>} : memref<1x10x10x8xbf16, #tpu.memory_space<vmem>>, vector<1x10x1x8xbf16>,
    %c0_49 = arith.constant 0 : index
    %c0_50 = arith.constant 0 : index
    %c0_51 = arith.constant 0 : index
    %26 = vector.load %arg2[%c0_49, %c0_50, %c0_51] : memref<1x64x16xbf16, #tpu.memory_space<vmem>>, vector<1x64x16xbf16>
    %27 = vector.shape_cast %26 : vector<1x64x16xbf16> to vector<64x16xbf16>
    %c0_52 = arith.constant 0 : index
    %c0_53 = arith.constant 0 : index
    %28 = vector.load %arg5[%c0_52, %c0_53] : memref<16x8xbf16, #tpu.memory_space<vmem>>, vector<16x8xbf16>
    %cst_54 = arith.constant dense<0.000000e+00> : vector<64x8xf32>
    %29 = tpu.matmul %27, %28, %cst_54 {dimension_numbers = #tpu.dot_dimension_numbers<[1], [0], [0], [1], [0, 0, 1, 1], [], []>} : vector<64x16xbf16>, vector<16x8xbf16>, vector<64x8xf32> -> vector<64x8xf32>
    %30 = vector.broadcast %0 : vector<1x8xf32> to vector<64x8xf32>
    %31 = arith.addf %29, %30 : vector<64x8xf32>
    %cst_55 = arith.constant 0.000000e+00 : f32
    %32 = vector.broadcast %cst_55 : f32 to vector<64x8xf32>
    %33 = arith.maximumf %31, %32 : vector<64x8xf32>
    %34 = arith.truncf %33 : vector<64x8xf32> to vector<64x8xbf16>
    %35 = vector.shape_cast %34 : vector<64x8xbf16> to vector<1x8x8x8xbf16>
    %c0_56 = arith.constant 0 : index
    %c1_57 = arith.constant 1 : index
    %c1_58 = arith.constant 1 : index
    %c0_59 = arith.constant 0 : index
    %36 = vector.load %arg15[%c0_56, %c1_57, %c1_58, %c0_59] : memref<1x10x10x8xbf16, #tpu.memory_space<vmem>>, vector<1x8x8x8xbf16>
    tpu.vector_store %arg15[%c0_56, %c1_57, %c1_58, %c0_59], %35 {strides = array<i32>} : memref<1x10x10x8xbf16, #tpu.memory_space<vmem>>, vector<1x8x8x8xbf16>,
    %cst_60 = arith.constant 0.000000e+00 : bf16
    %37 = vector.broadcast %cst_60 : bf16 to vector<1x1x10x8xbf16>
    %cst_61 = arith.constant 0.000000e+00 : bf16
    %38 = vector.broadcast %cst_61 : bf16 to vector<1x10x1x8xbf16>
    %c0_62 = arith.constant 0 : index
    %c0_63 = arith.constant 0 : index
    %c0_64 = arith.constant 0 : index
    %c0_65 = arith.constant 0 : index
    %39 = vector.load %arg16[%c0_62, %c0_63, %c0_64, %c0_65] : memref<1x10x10x8xbf16, #tpu.memory_space<vmem>>, vector<1x1x10x8xbf16>
    tpu.vector_store %arg16[%c0_62, %c0_63, %c0_64, %c0_65], %37 {strides = array<i32>} : memref<1x10x10x8xbf16, #tpu.memory_space<vmem>>, vector<1x1x10x8xbf16>,
    %c0_66 = arith.constant 0 : index
    %c9_67 = arith.constant 9 : index
    %c0_68 = arith.constant 0 : index
    %c0_69 = arith.constant 0 : index
    %40 = vector.load %arg16[%c0_66, %c9_67, %c0_68, %c0_69] : memref<1x10x10x8xbf16, #tpu.memory_space<vmem>>, vector<1x1x10x8xbf16>
    tpu.vector_store %arg16[%c0_66, %c9_67, %c0_68, %c0_69], %37 {strides = array<i32>} : memref<1x10x10x8xbf16, #tpu.memory_space<vmem>>, vector<1x1x10x8xbf16>,
    %c0_70 = arith.constant 0 : index
    %c0_71 = arith.constant 0 : index
    %c0_72 = arith.constant 0 : index
    %c0_73 = arith.constant 0 : index
    %41 = vector.load %arg16[%c0_70, %c0_71, %c0_72, %c0_73] : memref<1x10x10x8xbf16, #tpu.memory_space<vmem>>, vector<1x10x1x8xbf16>
    tpu.vector_store %arg16[%c0_70, %c0_71, %c0_72, %c0_73], %38 {strides = array<i32>} : memref<1x10x10x8xbf16, #tpu.memory_space<vmem>>, vector<1x10x1x8xbf16>,
    %c0_74 = arith.constant 0 : index
    %c0_75 = arith.constant 0 : index
    %c9_76 = arith.constant 9 : index
    %c0_77 = arith.constant 0 : index
    %42 = vector.load %arg16[%c0_74, %c0_75, %c9_76, %c0_77] : memref<1x10x10x8xbf16, #tpu.memory_space<vmem>>, vector<1x10x1x8xbf16>
    tpu.vector_store %arg16[%c0_74, %c0_75, %c9_76, %c0_77], %38 {strides = array<i32>} : memref<1x10x10x8xbf16, #tpu.memory_space<vmem>>, vector<1x10x1x8xbf16>,
    %c0_78 = arith.constant 0 : index
    %c0_79 = arith.constant 0 : index
    %c0_80 = arith.constant 0 : index
    %43 = vector.load %arg3[%c0_78, %c0_79, %c0_80] : memref<1x64x16xbf16, #tpu.memory_space<vmem>>, vector<1x64x16xbf16>
    %44 = vector.shape_cast %43 : vector<1x64x16xbf16> to vector<64x16xbf16>
    %c0_81 = arith.constant 0 : index
    %c0_82 = arith.constant 0 : index
    %45 = vector.load %arg5[%c0_81, %c0_82] : memref<16x8xbf16, #tpu.memory_space<vmem>>, vector<16x8xbf16>
    %cst_83 = arith.constant dense<0.000000e+00> : vector<64x8xf32>
    %46 = tpu.matmul %44, %45, %cst_83 {dimension_numbers = #tpu.dot_dimension_numbers<[1], [0], [0], [1], [0, 0, 1, 1], [], []>} : vector<64x16xbf16>, vector<16x8xbf16>, vector<64x8xf32> -> vector<64x8xf32>
    %47 = vector.broadcast %0 : vector<1x8xf32> to vector<64x8xf32>
    %48 = arith.addf %46, %47 : vector<64x8xf32>
    %cst_84 = arith.constant 0.000000e+00 : f32
    %49 = vector.broadcast %cst_84 : f32 to vector<64x8xf32>
    %50 = arith.maximumf %48, %49 : vector<64x8xf32>
    %51 = arith.truncf %50 : vector<64x8xf32> to vector<64x8xbf16>
    %52 = vector.shape_cast %51 : vector<64x8xbf16> to vector<1x8x8x8xbf16>
    %c0_85 = arith.constant 0 : index
    %c1_86 = arith.constant 1 : index
    %c1_87 = arith.constant 1 : index
    %c0_88 = arith.constant 0 : index
    %53 = vector.load %arg16[%c0_85, %c1_86, %c1_87, %c0_88] : memref<1x10x10x8xbf16, #tpu.memory_space<vmem>>, vector<1x8x8x8xbf16>
    tpu.vector_store %arg16[%c0_85, %c1_86, %c1_87, %c0_88], %52 {strides = array<i32>} : memref<1x10x10x8xbf16, #tpu.memory_space<vmem>>, vector<1x8x8x8xbf16>,
    %cst_89 = arith.constant 0.000000e+00 : bf16
    %54 = vector.broadcast %cst_89 : bf16 to vector<1x1x10x8xbf16>
    %cst_90 = arith.constant 0.000000e+00 : bf16
    %55 = vector.broadcast %cst_90 : bf16 to vector<1x10x1x8xbf16>
    %c0_91 = arith.constant 0 : index
    %c0_92 = arith.constant 0 : index
    %c0_93 = arith.constant 0 : index
    %c0_94 = arith.constant 0 : index
    %56 = vector.load %arg17[%c0_91, %c0_92, %c0_93, %c0_94] : memref<1x10x10x8xbf16, #tpu.memory_space<vmem>>, vector<1x1x10x8xbf16>
    tpu.vector_store %arg17[%c0_91, %c0_92, %c0_93, %c0_94], %54 {strides = array<i32>} : memref<1x10x10x8xbf16, #tpu.memory_space<vmem>>, vector<1x1x10x8xbf16>,
    %c0_95 = arith.constant 0 : index
    %c9_96 = arith.constant 9 : index
    %c0_97 = arith.constant 0 : index
    %c0_98 = arith.constant 0 : index
    %57 = vector.load %arg17[%c0_95, %c9_96, %c0_97, %c0_98] : memref<1x10x10x8xbf16, #tpu.memory_space<vmem>>, vector<1x1x10x8xbf16>
    tpu.vector_store %arg17[%c0_95, %c9_96, %c0_97, %c0_98], %54 {strides = array<i32>} : memref<1x10x10x8xbf16, #tpu.memory_space<vmem>>, vector<1x1x10x8xbf16>,
    %c0_99 = arith.constant 0 : index
    %c0_100 = arith.constant 0 : index
    %c0_101 = arith.constant 0 : index
    %c0_102 = arith.constant 0 : index
    %58 = vector.load %arg17[%c0_99, %c0_100, %c0_101, %c0_102] : memref<1x10x10x8xbf16, #tpu.memory_space<vmem>>, vector<1x10x1x8xbf16>
    tpu.vector_store %arg17[%c0_99, %c0_100, %c0_101, %c0_102], %55 {strides = array<i32>} : memref<1x10x10x8xbf16, #tpu.memory_space<vmem>>, vector<1x10x1x8xbf16>,
    %c0_103 = arith.constant 0 : index
    %c0_104 = arith.constant 0 : index
    %c9_105 = arith.constant 9 : index
    %c0_106 = arith.constant 0 : index
    %59 = vector.load %arg17[%c0_103, %c0_104, %c9_105, %c0_106] : memref<1x10x10x8xbf16, #tpu.memory_space<vmem>>, vector<1x10x1x8xbf16>
    tpu.vector_store %arg17[%c0_103, %c0_104, %c9_105, %c0_106], %55 {strides = array<i32>} : memref<1x10x10x8xbf16, #tpu.memory_space<vmem>>, vector<1x10x1x8xbf16>,
    %c0_107 = arith.constant 0 : index
    %c0_108 = arith.constant 0 : index
    %c0_109 = arith.constant 0 : index
    %60 = vector.load %arg4[%c0_107, %c0_108, %c0_109] : memref<1x64x16xbf16, #tpu.memory_space<vmem>>, vector<1x64x16xbf16>
    %61 = vector.shape_cast %60 : vector<1x64x16xbf16> to vector<64x16xbf16>
    %c0_110 = arith.constant 0 : index
    %c0_111 = arith.constant 0 : index
    %62 = vector.load %arg5[%c0_110, %c0_111] : memref<16x8xbf16, #tpu.memory_space<vmem>>, vector<16x8xbf16>
    %cst_112 = arith.constant dense<0.000000e+00> : vector<64x8xf32>
    %63 = tpu.matmul %61, %62, %cst_112 {dimension_numbers = #tpu.dot_dimension_numbers<[1], [0], [0], [1], [0, 0, 1, 1], [], []>} : vector<64x16xbf16>, vector<16x8xbf16>, vector<64x8xf32> -> vector<64x8xf32>
    %64 = vector.broadcast %0 : vector<1x8xf32> to vector<64x8xf32>
    %65 = arith.addf %63, %64 : vector<64x8xf32>
    %cst_113 = arith.constant 0.000000e+00 : f32
    %66 = vector.broadcast %cst_113 : f32 to vector<64x8xf32>
    %67 = arith.maximumf %65, %66 : vector<64x8xf32>
    %68 = arith.truncf %67 : vector<64x8xf32> to vector<64x8xbf16>
    %69 = vector.shape_cast %68 : vector<64x8xbf16> to vector<1x8x8x8xbf16>
    %c0_114 = arith.constant 0 : index
    %c1_115 = arith.constant 1 : index
    %c1_116 = arith.constant 1 : index
    %c0_117 = arith.constant 0 : index
    %70 = vector.load %arg17[%c0_114, %c1_115, %c1_116, %c0_117] : memref<1x10x10x8xbf16, #tpu.memory_space<vmem>>, vector<1x8x8x8xbf16>
    tpu.vector_store %arg17[%c0_114, %c1_115, %c1_116, %c0_117], %69 {strides = array<i32>} : memref<1x10x10x8xbf16, #tpu.memory_space<vmem>>, vector<1x8x8x8xbf16>,
    %cst_118 = arith.constant 0.000000e+00 : f32
    %71 = vector.broadcast %cst_118 : f32 to vector<64x8xf32>
    %c0_119 = arith.constant 0 : index
    %c0_120 = arith.constant 0 : index
    %c0_121 = arith.constant 0 : index
    %c0_122 = arith.constant 0 : index
    %72 = vector.load %arg17[%c0_119, %c0_120, %c0_121, %c0_122] : memref<1x10x10x8xbf16, #tpu.memory_space<vmem>>, vector<1x8x8x8xbf16>
    %73 = vector.shape_cast %72 : vector<1x8x8x8xbf16> to vector<64x8xbf16>
    %c0_123 = arith.constant 0 : index
    %c0_124 = arith.constant 0 : index
    %c0_125 = arith.constant 0 : index
    %74 = vector.load %arg7[%c0_123, %c0_124, %c0_125] : memref<9x8x8xbf16, #tpu.memory_space<vmem>>, vector<1x8x8xbf16>
    %75 = vector.shape_cast %74 : vector<1x8x8xbf16> to vector<8x8xbf16>
    %cst_126 = arith.constant dense<0.000000e+00> : vector<64x8xf32>
    %76 = tpu.matmul %73, %75, %cst_126 {dimension_numbers = #tpu.dot_dimension_numbers<[1], [0], [0], [1], [0, 0, 1, 1], [], []>} : vector<64x8xbf16>, vector<8x8xbf16>, vector<64x8xf32> -> vector<64x8xf32>
    %77 = arith.addf %71, %76 : vector<64x8xf32>
    %c0_127 = arith.constant 0 : index
    %c0_128 = arith.constant 0 : index
    %c1_129 = arith.constant 1 : index
    %c0_130 = arith.constant 0 : index
    %78 = vector.load %arg16[%c0_127, %c0_128, %c1_129, %c0_130] : memref<1x10x10x8xbf16, #tpu.memory_space<vmem>>, vector<1x8x8x8xbf16>
    %79 = vector.shape_cast %78 : vector<1x8x8x8xbf16> to vector<64x8xbf16>
    %c1_131 = arith.constant 1 : index
    %c0_132 = arith.constant 0 : index
    %c0_133 = arith.constant 0 : index
    %80 = vector.load %arg7[%c1_131, %c0_132, %c0_133] : memref<9x8x8xbf16, #tpu.memory_space<vmem>>, vector<1x8x8xbf16>
    %81 = vector.shape_cast %80 : vector<1x8x8xbf16> to vector<8x8xbf16>
    %cst_134 = arith.constant dense<0.000000e+00> : vector<64x8xf32>
    %82 = tpu.matmul %79, %81, %cst_134 {dimension_numbers = #tpu.dot_dimension_numbers<[1], [0], [0], [1], [0, 0, 1, 1], [], []>} : vector<64x8xbf16>, vector<8x8xbf16>, vector<64x8xf32> -> vector<64x8xf32>
    %83 = arith.addf %77, %82 : vector<64x8xf32>
    %c0_135 = arith.constant 0 : index
    %c0_136 = arith.constant 0 : index
    %c1_137 = arith.constant 1 : index
    %c0_138 = arith.constant 0 : index
    %84 = vector.load %arg17[%c0_135, %c0_136, %c1_137, %c0_138] : memref<1x10x10x8xbf16, #tpu.memory_space<vmem>>, vector<1x8x8x8xbf16>
    %85 = vector.shape_cast %84 : vector<1x8x8x8xbf16> to vector<64x8xbf16>
    %c2 = arith.constant 2 : index
    %c0_139 = arith.constant 0 : index
    %c0_140 = arith.constant 0 : index
    %86 = vector.load %arg7[%c2, %c0_139, %c0_140] : memref<9x8x8xbf16, #tpu.memory_space<vmem>>, vector<1x8x8xbf16>
    %87 = vector.shape_cast %86 : vector<1x8x8xbf16> to vector<8x8xbf16>
    %cst_141 = arith.constant dense<0.000000e+00> : vector<64x8xf32>
    %88 = tpu.matmul %85, %87, %cst_141 {dimension_numbers = #tpu.dot_dimension_numbers<[1], [0], [0], [1], [0, 0, 1, 1], [], []>} : vector<64x8xbf16>, vector<8x8xbf16>, vector<64x8xf32> -> vector<64x8xf32>
    %89 = arith.addf %83, %88 : vector<64x8xf32>
    %c0_142 = arith.constant 0 : index
    %c1_143 = arith.constant 1 : index
    %c0_144 = arith.constant 0 : index
    %c0_145 = arith.constant 0 : index
    %90 = vector.load %arg15[%c0_142, %c1_143, %c0_144, %c0_145] : memref<1x10x10x8xbf16, #tpu.memory_space<vmem>>, vector<1x8x8x8xbf16>
    %91 = vector.shape_cast %90 : vector<1x8x8x8xbf16> to vector<64x8xbf16>
    %c3 = arith.constant 3 : index
    %c0_146 = arith.constant 0 : index
    %c0_147 = arith.constant 0 : index
    %92 = vector.load %arg7[%c3, %c0_146, %c0_147] : memref<9x8x8xbf16, #tpu.memory_space<vmem>>, vector<1x8x8xbf16>
    %93 = vector.shape_cast %92 : vector<1x8x8xbf16> to vector<8x8xbf16>
    %cst_148 = arith.constant dense<0.000000e+00> : vector<64x8xf32>
    %94 = tpu.matmul %91, %93, %cst_148 {dimension_numbers = #tpu.dot_dimension_numbers<[1], [0], [0], [1], [0, 0, 1, 1], [], []>} : vector<64x8xbf16>, vector<8x8xbf16>, vector<64x8xf32> -> vector<64x8xf32>
    %95 = arith.addf %89, %94 : vector<64x8xf32>
    %c0_149 = arith.constant 0 : index
    %c1_150 = arith.constant 1 : index
    %c1_151 = arith.constant 1 : index
    %c0_152 = arith.constant 0 : index
    %96 = vector.load %arg14[%c0_149, %c1_150, %c1_151, %c0_152] : memref<1x10x10x8xbf16, #tpu.memory_space<vmem>>, vector<1x8x8x8xbf16>
    %97 = vector.shape_cast %96 : vector<1x8x8x8xbf16> to vector<64x8xbf16>
    %c4 = arith.constant 4 : index
    %c0_153 = arith.constant 0 : index
    %c0_154 = arith.constant 0 : index
    %98 = vector.load %arg7[%c4, %c0_153, %c0_154] : memref<9x8x8xbf16, #tpu.memory_space<vmem>>, vector<1x8x8xbf16>
    %99 = vector.shape_cast %98 : vector<1x8x8xbf16> to vector<8x8xbf16>
    %cst_155 = arith.constant dense<0.000000e+00> : vector<64x8xf32>
    %100 = tpu.matmul %97, %99, %cst_155 {dimension_numbers = #tpu.dot_dimension_numbers<[1], [0], [0], [1], [0, 0, 1, 1], [], []>} : vector<64x8xbf16>, vector<8x8xbf16>, vector<64x8xf32> -> vector<64x8xf32>
    %101 = arith.addf %95, %100 : vector<64x8xf32>
    %c0_156 = arith.constant 0 : index
    %c1_157 = arith.constant 1 : index
    %c1_158 = arith.constant 1 : index
    %c0_159 = arith.constant 0 : index
    %102 = vector.load %arg15[%c0_156, %c1_157, %c1_158, %c0_159] : memref<1x10x10x8xbf16, #tpu.memory_space<vmem>>, vector<1x8x8x8xbf16>
    %103 = vector.shape_cast %102 : vector<1x8x8x8xbf16> to vector<64x8xbf16>
    %c5 = arith.constant 5 : index
    %c0_160 = arith.constant 0 : index
    %c0_161 = arith.constant 0 : index
    %104 = vector.load %arg7[%c5, %c0_160, %c0_161] : memref<9x8x8xbf16, #tpu.memory_space<vmem>>, vector<1x8x8xbf16>
    %105 = vector.shape_cast %104 : vector<1x8x8xbf16> to vector<8x8xbf16>
    %cst_162 = arith.constant dense<0.000000e+00> : vector<64x8xf32>
    %106 = tpu.matmul %103, %105, %cst_162 {dimension_numbers = #tpu.dot_dimension_numbers<[1], [0], [0], [1], [0, 0, 1, 1], [], []>} : vector<64x8xbf16>, vector<8x8xbf16>, vector<64x8xf32> -> vector<64x8xf32>
    %107 = arith.addf %101, %106 : vector<64x8xf32>
    %c0_163 = arith.constant 0 : index
    %c1_164 = arith.constant 1 : index
    %c0_165 = arith.constant 0 : index
    %c0_166 = arith.constant 0 : index
    %108 = vector.load %arg17[%c0_163, %c1_164, %c0_165, %c0_166] : memref<1x10x10x8xbf16, #tpu.memory_space<vmem>>, vector<1x8x8x8xbf16>
    %109 = vector.shape_cast %108 : vector<1x8x8x8xbf16> to vector<64x8xbf16>
    %c6 = arith.constant 6 : index
    %c0_167 = arith.constant 0 : index
    %c0_168 = arith.constant 0 : index
    %110 = vector.load %arg7[%c6, %c0_167, %c0_168] : memref<9x8x8xbf16, #tpu.memory_space<vmem>>, vector<1x8x8xbf16>
    %111 = vector.shape_cast %110 : vector<1x8x8xbf16> to vector<8x8xbf16>
    %cst_169 = arith.constant dense<0.000000e+00> : vector<64x8xf32>
    %112 = tpu.matmul %109, %111, %cst_169 {dimension_numbers = #tpu.dot_dimension_numbers<[1], [0], [0], [1], [0, 0, 1, 1], [], []>} : vector<64x8xbf16>, vector<8x8xbf16>, vector<64x8xf32> -> vector<64x8xf32>
    %113 = arith.addf %107, %112 : vector<64x8xf32>
    %c0_170 = arith.constant 0 : index
    %c1_171 = arith.constant 1 : index
    %c1_172 = arith.constant 1 : index
    %c0_173 = arith.constant 0 : index
    %114 = vector.load %arg16[%c0_170, %c1_171, %c1_172, %c0_173] : memref<1x10x10x8xbf16, #tpu.memory_space<vmem>>, vector<1x8x8x8xbf16>
    %115 = vector.shape_cast %114 : vector<1x8x8x8xbf16> to vector<64x8xbf16>
    %c7 = arith.constant 7 : index
    %c0_174 = arith.constant 0 : index
    %c0_175 = arith.constant 0 : index
    %116 = vector.load %arg7[%c7, %c0_174, %c0_175] : memref<9x8x8xbf16, #tpu.memory_space<vmem>>, vector<1x8x8xbf16>
    %117 = vector.shape_cast %116 : vector<1x8x8xbf16> to vector<8x8xbf16>
    %cst_176 = arith.constant dense<0.000000e+00> : vector<64x8xf32>
    %118 = tpu.matmul %115, %117, %cst_176 {dimension_numbers = #tpu.dot_dimension_numbers<[1], [0], [0], [1], [0, 0, 1, 1], [], []>} : vector<64x8xbf16>, vector<8x8xbf16>, vector<64x8xf32> -> vector<64x8xf32>
    %119 = arith.addf %113, %118 : vector<64x8xf32>
    %c0_177 = arith.constant 0 : index
    %c1_178 = arith.constant 1 : index
    %c1_179 = arith.constant 1 : index
    %c0_180 = arith.constant 0 : index
    %120 = vector.load %arg17[%c0_177, %c1_178, %c1_179, %c0_180] : memref<1x10x10x8xbf16, #tpu.memory_space<vmem>>, vector<1x8x8x8xbf16>
    %121 = vector.shape_cast %120 : vector<1x8x8x8xbf16> to vector<64x8xbf16>
    %c8 = arith.constant 8 : index
    %c0_181 = arith.constant 0 : index
    %c0_182 = arith.constant 0 : index
    %122 = vector.load %arg7[%c8, %c0_181, %c0_182] : memref<9x8x8xbf16, #tpu.memory_space<vmem>>, vector<1x8x8xbf16>
    %123 = vector.shape_cast %122 : vector<1x8x8xbf16> to vector<8x8xbf16>
    %cst_183 = arith.constant dense<0.000000e+00> : vector<64x8xf32>
    %124 = tpu.matmul %121, %123, %cst_183 {dimension_numbers = #tpu.dot_dimension_numbers<[1], [0], [0], [1], [0, 0, 1, 1], [], []>} : vector<64x8xbf16>, vector<8x8xbf16>, vector<64x8xf32> -> vector<64x8xf32>
    %125 = arith.addf %119, %124 : vector<64x8xf32>
    %126 = vector.broadcast %1 : vector<1x8xf32> to vector<64x8xf32>
    %127 = arith.addf %125, %126 : vector<64x8xf32>
    %cst_184 = arith.constant 0.000000e+00 : f32
    %128 = vector.broadcast %cst_184 : f32 to vector<64x8xf32>
    %129 = arith.maximumf %127, %128 : vector<64x8xf32>
    %130 = arith.truncf %129 : vector<64x8xf32> to vector<64x8xbf16>
    %c0_185 = arith.constant 0 : index
    %c0_186 = arith.constant 0 : index
    %131 = vector.load %arg9[%c0_185, %c0_186] : memref<8x32xbf16, #tpu.memory_space<vmem>>, vector<8x32xbf16>
    %cst_187 = arith.constant dense<0.000000e+00> : vector<64x32xf32>
    %132 = tpu.matmul %130, %131, %cst_187 {dimension_numbers = #tpu.dot_dimension_numbers<[1], [0], [0], [1], [0, 0, 1, 1], [], []>} : vector<64x8xbf16>, vector<8x32xbf16>, vector<64x32xf32> -> vector<64x32xf32>
    %133 = vector.broadcast %2 : vector<1x32xf32> to vector<64x32xf32>
    %134 = arith.addf %132, %133 : vector<64x32xf32>
    %c0_188 = arith.constant 0 : index
    %c0_189 = arith.constant 0 : index
    %c0_190 = arith.constant 0 : index
    %135 = vector.load %arg1[%c0_188, %c0_189, %c0_190] : memref<1x64x16xbf16, #tpu.memory_space<vmem>>, vector<1x64x16xbf16>
    %136 = vector.shape_cast %135 : vector<1x64x16xbf16> to vector<64x16xbf16>
    %c0_191 = arith.constant 0 : index
    %c0_192 = arith.constant 0 : index
    %137 = vector.load %arg11[%c0_191, %c0_192] : memref<16x32xbf16, #tpu.memory_space<vmem>>, vector<16x32xbf16>
    %cst_193 = arith.constant dense<0.000000e+00> : vector<64x32xf32>
    %138 = tpu.matmul %136, %137, %cst_193 {dimension_numbers = #tpu.dot_dimension_numbers<[1], [0], [0], [1], [0, 0, 1, 1], [], []>} : vector<64x16xbf16>, vector<16x32xbf16>, vector<64x32xf32> -> vector<64x32xf32>
    %c0_194 = arith.constant 0 : index
    %c0_195 = arith.constant 0 : index
    %139 = vector.load %arg12[%c0_194, %c0_195] : memref<1x32xf32, #tpu.memory_space<vmem>>, vector<1x32xf32>
    %140 = vector.broadcast %139 : vector<1x32xf32> to vector<64x32xf32>
    %141 = arith.addf %138, %140 : vector<64x32xf32>
    %142 = arith.addf %134, %141 : vector<64x32xf32>
    %cst_196 = arith.constant 0.000000e+00 : f32
    %143 = vector.broadcast %cst_196 : f32 to vector<64x32xf32>
    %144 = arith.maximumf %142, %143 : vector<64x32xf32>
    %c0_197 = arith.constant 0 : index
    %c0_198 = arith.constant 0 : index
    %c0_199 = arith.constant 0 : index
    %145 = vector.load %arg13[%c0_197, %c0_198, %c0_199] : memref<1x64x32xf32, #tpu.memory_space<vmem>>, vector<1x64x32xf32>
    %146 = vector.shape_cast %145 : vector<1x64x32xf32> to vector<64x32xf32>
    %147 = vector.shape_cast %144 : vector<64x32xf32> to vector<1x64x32xf32>
    tpu.vector_store %arg13[%c0_197, %c0_198, %c0_199], %147 {strides = array<i32>} : memref<1x64x32xf32, #tpu.memory_space<vmem>>, vector<1x64x32xf32>,
    return
  }
  func.func @transform_0(%arg0: i32) -> (i32, i32, i32) {
    %c0_i32 = arith.constant 0 : i32
    %c0_i32_0 = arith.constant 0 : i32
    %c0_i32_1 = arith.constant 0 : i32
    return %arg0, %c0_i32, %c0_i32_0 : i32, i32, i32
  }
  func.func @transform_1(%arg0: i32) -> (i32, i32, i32) {
    %c0_i32 = arith.constant 0 : i32
    %c0_i32_0 = arith.constant 0 : i32
    %c0_i32_1 = arith.constant 0 : i32
    return %arg0, %c0_i32, %c0_i32_0 : i32, i32, i32
  }
  func.func @transform_2(%arg0: i32) -> (i32, i32, i32) {
    %c0_i32 = arith.constant 0 : i32
    %c0_i32_0 = arith.constant 0 : i32
    %c0_i32_1 = arith.constant 0 : i32
    return %arg0, %c0_i32, %c0_i32_0 : i32, i32, i32
  }
  func.func @transform_3(%arg0: i32) -> (i32, i32, i32) {
    %c0_i32 = arith.constant 0 : i32
    %c0_i32_0 = arith.constant 0 : i32
    %c0_i32_1 = arith.constant 0 : i32
    return %arg0, %c0_i32, %c0_i32_0 : i32, i32, i32
  }
  func.func @transform_4(%arg0: i32) -> (i32, i32) {
    %c0_i32 = arith.constant 0 : i32
    %c0_i32_0 = arith.constant 0 : i32
    %c0_i32_1 = arith.constant 0 : i32
    return %c0_i32, %c0_i32_0 : i32, i32
  }
  func.func @transform_5(%arg0: i32) -> (i32, i32) {
    %c0_i32 = arith.constant 0 : i32
    %c0_i32_0 = arith.constant 0 : i32
    %c0_i32_1 = arith.constant 0 : i32
    return %c0_i32, %c0_i32_0 : i32, i32
  }
  func.func @transform_6(%arg0: i32) -> (i32, i32, i32) {
    %c0_i32 = arith.constant 0 : i32
    %c0_i32_0 = arith.constant 0 : i32
    %c0_i32_1 = arith.constant 0 : i32
    %c0_i32_2 = arith.constant 0 : i32
    return %c0_i32, %c0_i32_0, %c0_i32_1 : i32, i32, i32
  }
  func.func @transform_7(%arg0: i32) -> (i32, i32) {
    %c0_i32 = arith.constant 0 : i32
    %c0_i32_0 = arith.constant 0 : i32
    %c0_i32_1 = arith.constant 0 : i32
    return %c0_i32, %c0_i32_0 : i32, i32
  }
  func.func @transform_8(%arg0: i32) -> (i32, i32) {
    %c0_i32 = arith.constant 0 : i32
    %c0_i32_0 = arith.constant 0 : i32
    %c0_i32_1 = arith.constant 0 : i32
    return %c0_i32, %c0_i32_0 : i32, i32
  }
  func.func @transform_9(%arg0: i32) -> (i32, i32) {
    %c0_i32 = arith.constant 0 : i32
    %c0_i32_0 = arith.constant 0 : i32
    %c0_i32_1 = arith.constant 0 : i32
    return %c0_i32, %c0_i32_0 : i32, i32
  }
  func.func @transform_10(%arg0: i32) -> (i32, i32) {
    %c0_i32 = arith.constant 0 : i32
    %c0_i32_0 = arith.constant 0 : i32
    %c0_i32_1 = arith.constant 0 : i32
    return %c0_i32, %c0_i32_0 : i32, i32
  }
  func.func @transform_11(%arg0: i32) -> (i32, i32) {
    %c0_i32 = arith.constant 0 : i32
    %c0_i32_0 = arith.constant 0 : i32
    %c0_i32_1 = arith.constant 0 : i32
    return %c0_i32, %c0_i32_0 : i32, i32
  }
  func.func @transform_12(%arg0: i32) -> (i32, i32, i32) {
    %c0_i32 = arith.constant 0 : i32
    %c0_i32_0 = arith.constant 0 : i32
    %c0_i32_1 = arith.constant 0 : i32
    return %arg0, %c0_i32, %c0_i32_0 : i32, i32, i32
  }
}

</mosaic_0001>

<llo_original>
// kernel: _lambda_.1
$region0: #{_lambda_.1}
  #allocation0 [shape = 'u32[]', space=smem, size = 0x4, offset = 0x4, fixed_abs, tag = 'smem constant byte address 0x4 - core index']
  #allocation1 [shape = 'u32[144,128]{1,0:T(1,128)}', space=vmem, size = 0x12000, scoped, tag = 'internal scratch']
  #allocation2 [shape = 'bf16[1,10,10,8]{3,2,1,0:T(8,128)(2,1)}', space=vmem, size = 0xa000, scoped, tag = 'scratch operand']
  #allocation3 [shape = 'bf16[1,10,10,8]{3,2,1,0:T(8,128)(2,1)}', space=vmem, size = 0xa000, scoped, tag = 'scratch operand']
  #allocation4 [shape = 'bf16[1,10,10,8]{3,2,1,0:T(8,128)(2,1)}', space=vmem, size = 0xa000, scoped, tag = 'scratch operand']
  #allocation5 [shape = 'bf16[1,10,10,8]{3,2,1,0:T(8,128)(2,1)}', space=vmem, size = 0xa000, scoped, tag = 'scratch operand']
  %s0 = inlined_call_operand.vmem [shape: bf16[2,64,16], index: 0, kind: input, shape index: {}]
  %s1 = inlined_call_operand.vmem [shape: bf16[2,64,16], index: 1, kind: input, shape index: {}]
  %s2 = inlined_call_operand.vmem [shape: bf16[2,64,16], index: 2, kind: input, shape index: {}]
  %s3 = inlined_call_operand.vmem [shape: bf16[2,64,16], index: 3, kind: input, shape index: {}]
  %s4 = inlined_call_operand.vmem [shape: bf16[16,8], index: 4, kind: input, shape index: {}]
  %s5 = inlined_call_operand.vmem [shape: f32[1,8], index: 5, kind: input, shape index: {}]
  %s6 = inlined_call_operand.vmem [shape: bf16[9,8,8], index: 6, kind: input, shape index: {}]
  %s7 = inlined_call_operand.vmem [shape: f32[1,8], index: 7, kind: input, shape index: {}]
  %s8 = inlined_call_operand.vmem [shape: bf16[8,32], index: 8, kind: input, shape index: {}]
  %s9 = inlined_call_operand.vmem [shape: f32[1,32], index: 9, kind: input, shape index: {}]
  %s10 = inlined_call_operand.vmem [shape: bf16[16,32], index: 10, kind: input, shape index: {}]
  %s11 = inlined_call_operand.vmem [shape: f32[1,32], index: 11, kind: input, shape index: {}]
  %s12 = inlined_call_operand.hbm [shape: f32[2,64,32], index: 12, kind: output, shape index: {}]
  %s13 = sld [smem:[#allocation0]]
  $region81: #{_lambda_.1} parent=0
    _
  %s15 = ssub.s32 1, %s13
  %s16 = scalar_select 0, %s15, %s13
  $region1: #{_lambda_.1} parent=0
    #allocation6 [shape = 'u8[65536]{0}', space=vmem, size = 0x10000, scoped, tag = 'output window, operand 0']
    #allocation7 [shape = 's32[2]{0}', space=sflag, size = 0x8, scoped, tag = 'scoped memory for _lambda_.1']
    %17 = vsyncpa [#allocation7], 0
    %s18 = scalar_lea.sflag [#allocation7], 1
    %19 = vsyncpa %s18, 0
    loop: start=0, step=1, limit=4
    $region2: #{_lambda_.1} parent=1 // loop_pre_header
      _
    $region3: #{_lambda_.1} parent=1 // loop_header
      %s21 = sphi 0, %s25
      %p22 = scmp.ge.s32.totalorder %s21, 4
      %s31 = sphi 0, %s33
      %s34 = sphi 0, %s31
      %s35 = sphi 0, %s34
      %s51 = sphi 0, %s35
      %s57 = sphi 0, %s59
      %s60 = sphi 0, %s57
      %s61 = sphi 0, %s60
      %s77 = sphi 0, %s61
      %s83 = sphi 0, %s85
      %s86 = sphi 0, %s83
      %s87 = sphi 0, %s86
      %s103 = sphi 0, %s87
      %s109 = sphi 0, %s111
      %s112 = sphi 0, %s109
      %s113 = sphi 0, %s112
      %s129 = sphi 0, %s113
      %s133 = sphi 0, %s133
      %s135 = sphi 0, %s133
      %s136 = sphi 0, %s135
      %s150 = sphi 0, %s136
      %s154 = sphi 0, %s154
      %s156 = sphi 0, %s154
      %s157 = sphi 0, %s156
      %s171 = sphi 0, %s157
      %s175 = sphi 0, %s175
      %s177 = sphi 0, %s175
      %s178 = sphi 0, %s177
      %s192 = sphi 0, %s178
      %s196 = sphi 0, %s196
      %s198 = sphi 0, %s196
      %s199 = sphi 0, %s198
      %s213 = sphi 0, %s199
      %s217 = sphi 0, %s217
      %s219 = sphi 0, %s217
      %s220 = sphi 0, %s219
      %s234 = sphi 0, %s220
      %s238 = sphi 0, %s238
      %s240 = sphi 0, %s238
      %s241 = sphi 0, %s240
      %s255 = sphi 0, %s241
      %s259 = sphi 0, %s259
      %s261 = sphi 0, %s259
      %s262 = sphi 0, %s261
      %s276 = sphi 0, %s262
      %s280 = sphi 0, %s280
      %s282 = sphi 0, %s280
      %s283 = sphi 0, %s282
      %s297 = sphi 0, %s283
      %s303 = sphi 0, %s305
      %s306 = sphi 0, %s303
      %s307 = sphi 0, %s306
      %s323 = sphi 0, %s307
    $region4: #{_lambda_.1} parent=1 // loop_header_branch
      %24 = sbr.rel (%p22) target = $region8
    $region5: #{_lambda_.1} parent=1 // loop_body
      %s26 = ssub.s32 %s21, 1
      %s27 = ssub.s32 %s21, 2
      %s28 = sadd.s32 %s21, 1
      %s29 = ssub.s32 %s21, %s28
      %p30 = scmp.eq.s32.totalorder %s29, 0
      %s32 = sadd.s32 %s31, 1
      %s33 = scalar_select %p30, %s31, %s32
      %p36 = pneg %p30
      %p37 = scmp.eq.s32.totalorder %s21, 1
      %p38 = por %p36, %p37
      %p39 = scmp.ne.s32.totalorder %s31, %s34
      %p40 = scmp.eq.s32.totalorder %s21, 0
      %p41 = por %p39, %p40
      %p42 = scmp.ne.s32.totalorder %s31, %s34
      %p43 = scmp.eq.s32.totalorder %s26, 1
      %p44 = por %p42, %p43
      %p45 = scmp.ne.s32.totalorder %s34, %s35
      %p46 = scmp.eq.s32.totalorder %s26, 0
      %p47 = por %p45, %p46
      %p48 = scmp.ne.s32.totalorder %s34, %s35
      %p49 = scmp.eq.s32.totalorder %s27, 1
      %p50 = por %p48, %p49
      %p52 = scmp.ne.s32.totalorder %s35, %s51
      %p53 = scmp.eq.s32.totalorder %s27, 0
      %p54 = por %p52, %p53
      %s55 = ssub.s32 %s21, %s28
      %p56 = scmp.eq.s32.totalorder %s55, 0
      %s58 = sadd.s32 %s57, 1
      %s59 = scalar_select %p56, %s57, %s58
      %p62 = pneg %p56
      %p63 = scmp.eq.s32.totalorder %s21, 1
      %p64 = por %p62, %p63
      %p65 = scmp.ne.s32.totalorder %s57, %s60
      %p66 = scmp.eq.s32.totalorder %s21, 0
      %p67 = por %p65, %p66
      %p68 = scmp.ne.s32.totalorder %s57, %s60
      %p69 = scmp.eq.s32.totalorder %s26, 1
      %p70 = por %p68, %p69
      %p71 = scmp.ne.s32.totalorder %s60, %s61
      %p72 = scmp.eq.s32.totalorder %s26, 0
      %p73 = por %p71, %p72
      %p74 = scmp.ne.s32.totalorder %s60, %s61
      %p75 = scmp.eq.s32.totalorder %s27, 1
      %p76 = por %p74, %p75
      %p78 = scmp.ne.s32.totalorder %s61, %s77
      %p79 = scmp.eq.s32.totalorder %s27, 0
      %p80 = por %p78, %p79
      %s81 = ssub.s32 %s21, %s28
      %p82 = scmp.eq.s32.totalorder %s81, 0
      %s84 = sadd.s32 %s83, 1
      %s85 = scalar_select %p82, %s83, %s84
      %p88 = pneg %p82
      %p89 = scmp.eq.s32.totalorder %s21, 1
      %p90 = por %p88, %p89
      %p91 = scmp.ne.s32.totalorder %s83, %s86
      %p92 = scmp.eq.s32.totalorder %s21, 0
      %p93 = por %p91, %p92
      %p94 = scmp.ne.s32.totalorder %s83, %s86
      %p95 = scmp.eq.s32.totalorder %s26, 1
      %p96 = por %p94, %p95
      %p97 = scmp.ne.s32.totalorder %s86, %s87
      %p98 = scmp.eq.s32.totalorder %s26, 0
      %p99 = por %p97, %p98
      %p100 = scmp.ne.s32.totalorder %s86, %s87
      %p101 = scmp.eq.s32.totalorder %s27, 1
      %p102 = por %p100, %p101
      %p104 = scmp.ne.s32.totalorder %s87, %s103
      %p105 = scmp.eq.s32.totalorder %s27, 0
      %p106 = por %p104, %p105
      %s107 = ssub.s32 %s21, %s28
      %p108 = scmp.eq.s32.totalorder %s107, 0
      %s110 = sadd.s32 %s109, 1
      %s111 = scalar_select %p108, %s109, %s110
      %p114 = pneg %p108
      %p115 = scmp.eq.s32.totalorder %s21, 1
      %p116 = por %p114, %p115
      %p117 = scmp.ne.s32.totalorder %s109, %s112
      %p118 = scmp.eq.s32.totalorder %s21, 0
      %p119 = por %p117, %p118
      %p120 = scmp.ne.s32.totalorder %s109, %s112
      %p121 = scmp.eq.s32.totalorder %s26, 1
      %p122 = por %p120, %p121
      %p123 = scmp.ne.s32.totalorder %s112, %s113
      %p124 = scmp.eq.s32.totalorder %s26, 0
      %p125 = por %p123, %p124
      %p126 = scmp.ne.s32.totalorder %s112, %s113
      %p127 = scmp.eq.s32.totalorder %s27, 1
      %p128 = por %p126, %p127
      %p130 = scmp.ne.s32.totalorder %s113, %s129
      %p131 = scmp.eq.s32.totalorder %s27, 0
      %p132 = por %p130, %p131
      %s134 = sadd.s32 %s133, 1
      %p137 = scmp.eq.s32.totalorder %s21, 1
      %p138 = scmp.ne.s32.totalorder %s133, %s135
      %p139 = scmp.eq.s32.totalorder %s21, 0
      %p140 = por %p138, %p139
      %p141 = scmp.ne.s32.totalorder %s133, %s135
      %p142 = scmp.eq.s32.totalorder %s26, 1
      %p143 = por %p141, %p142
      %p144 = scmp.ne.s32.totalorder %s135, %s136
      %p145 = scmp.eq.s32.totalorder %s26, 0
      %p146 = por %p144, %p145
      %p147 = scmp.ne.s32.totalorder %s135, %s136
      %p148 = scmp.eq.s32.totalorder %s27, 1
      %p149 = por %p147, %p148
      %p151 = scmp.ne.s32.totalorder %s136, %s150
      %p152 = scmp.eq.s32.totalorder %s27, 0
      %p153 = por %p151, %p152
      %s155 = sadd.s32 %s154, 1
      %p158 = scmp.eq.s32.totalorder %s21, 1
      %p159 = scmp.ne.s32.totalorder %s154, %s156
      %p160 = scmp.eq.s32.totalorder %s21, 0
      %p161 = por %p159, %p160
      %p162 = scmp.ne.s32.totalorder %s154, %s156
      %p163 = scmp.eq.s32.totalorder %s26, 1
      %p164 = por %p162, %p163
      %p165 = scmp.ne.s32.totalorder %s156, %s157
      %p166 = scmp.eq.s32.totalorder %s26, 0
      %p167 = por %p165, %p166
      %p168 = scmp.ne.s32.totalorder %s156, %s157
      %p169 = scmp.eq.s32.totalorder %s27, 1
      %p170 = por %p168, %p169
      %p172 = scmp.ne.s32.totalorder %s157, %s171
      %p173 = scmp.eq.s32.totalorder %s27, 0
      %p174 = por %p172, %p173
      %s176 = sadd.s32 %s175, 1
      %p179 = scmp.eq.s32.totalorder %s21, 1
      %p180 = scmp.ne.s32.totalorder %s175, %s177
      %p181 = scmp.eq.s32.totalorder %s21, 0
      %p182 = por %p180, %p181
      %p183 = scmp.ne.s32.totalorder %s175, %s177
      %p184 = scmp.eq.s32.totalorder %s26, 1
      %p185 = por %p183, %p184
      %p186 = scmp.ne.s32.totalorder %s177, %s178
      %p187 = scmp.eq.s32.totalorder %s26, 0
      %p188 = por %p186, %p187
      %p189 = scmp.ne.s32.totalorder %s177, %s178
      %p190 = scmp.eq.s32.totalorder %s27, 1
      %p191 = por %p189, %p190
      %p193 = scmp.ne.s32.totalorder %s178, %s192
      %p194 = scmp.eq.s32.totalorder %s27, 0
      %p195 = por %p193, %p194
      %s197 = sadd.s32 %s196, 1
      %p200 = scmp.eq.s32.totalorder %s21, 1
      %p201 = scmp.ne.s32.totalorder %s196, %s198
      %p202 = scmp.eq.s32.totalorder %s21, 0
      %p203 = por %p201, %p202
      %p204 = scmp.ne.s32.totalorder %s196, %s198
      %p205 = scmp.eq.s32.totalorder %s26, 1
      %p206 = por %p204, %p205
      %p207 = scmp.ne.s32.totalorder %s198, %s199
      %p208 = scmp.eq.s32.totalorder %s26, 0
      %p209 = por %p207, %p208
      %p210 = scmp.ne.s32.totalorder %s198, %s199
      %p211 = scmp.eq.s32.totalorder %s27, 1
      %p212 = por %p210, %p211
      %p214 = scmp.ne.s32.totalorder %s199, %s213
      %p215 = scmp.eq.s32.totalorder %s27, 0
      %p216 = por %p214, %p215
      %s218 = sadd.s32 %s217, 1
      %p221 = scmp.eq.s32.totalorder %s21, 1
      %p222 = scmp.ne.s32.totalorder %s217, %s219
      %p223 = scmp.eq.s32.totalorder %s21, 0
      %p224 = por %p222, %p223
      %p225 = scmp.ne.s32.totalorder %s217, %s219
      %p226 = scmp.eq.s32.totalorder %s26, 1
      %p227 = por %p225, %p226
      %p228 = scmp.ne.s32.totalorder %s219, %s220
      %p229 = scmp.eq.s32.totalorder %s26, 0
      %p230 = por %p228, %p229
      %p231 = scmp.ne.s32.totalorder %s219, %s220
      %p232 = scmp.eq.s32.totalorder %s27, 1
      %p233 = por %p231, %p232
      %p235 = scmp.ne.s32.totalorder %s220, %s234
      %p236 = scmp.eq.s32.totalorder %s27, 0
      %p237 = por %p235, %p236
      %s239 = sadd.s32 %s238, 1
      %p242 = scmp.eq.s32.totalorder %s21, 1
      %p243 = scmp.ne.s32.totalorder %s238, %s240
      %p244 = scmp.eq.s32.totalorder %s21, 0
      %p245 = por %p243, %p244
      %p246 = scmp.ne.s32.totalorder %s238, %s240
      %p247 = scmp.eq.s32.totalorder %s26, 1
      %p248 = por %p246, %p247
      %p249 = scmp.ne.s32.totalorder %s240, %s241
      %p250 = scmp.eq.s32.totalorder %s26, 0
      %p251 = por %p249, %p250
      %p252 = scmp.ne.s32.totalorder %s240, %s241
      %p253 = scmp.eq.s32.totalorder %s27, 1
      %p254 = por %p252, %p253
      %p256 = scmp.ne.s32.totalorder %s241, %s255
      %p257 = scmp.eq.s32.totalorder %s27, 0
      %p258 = por %p256, %p257
      %s260 = sadd.s32 %s259, 1
      %p263 = scmp.eq.s32.totalorder %s21, 1
      %p264 = scmp.ne.s32.totalorder %s259, %s261
      %p265 = scmp.eq.s32.totalorder %s21, 0
      %p266 = por %p264, %p265
      %p267 = scmp.ne.s32.totalorder %s259, %s261
      %p268 = scmp.eq.s32.totalorder %s26, 1
      %p269 = por %p267, %p268
      %p270 = scmp.ne.s32.totalorder %s261, %s262
      %p271 = scmp.eq.s32.totalorder %s26, 0
      %p272 = por %p270, %p271
      %p273 = scmp.ne.s32.totalorder %s261, %s262
      %p274 = scmp.eq.s32.totalorder %s27, 1
      %p275 = por %p273, %p274
      %p277 = scmp.ne.s32.totalorder %s262, %s276
      %p278 = scmp.eq.s32.totalorder %s27, 0
      %p279 = por %p277, %p278
      %s281 = sadd.s32 %s280, 1
      %p284 = scmp.eq.s32.totalorder %s21, 1
      %p285 = scmp.ne.s32.totalorder %s280, %s282
      %p286 = scmp.eq.s32.totalorder %s21, 0
      %p287 = por %p285, %p286
      %p288 = scmp.ne.s32.totalorder %s280, %s282
      %p289 = scmp.eq.s32.totalorder %s26, 1
      %p290 = por %p288, %p289
      %p291 = scmp.ne.s32.totalorder %s282, %s283
      %p292 = scmp.eq.s32.totalorder %s26, 0
      %p293 = por %p291, %p292
      %p294 = scmp.ne.s32.totalorder %s282, %s283
      %p295 = scmp.eq.s32.totalorder %s27, 1
      %p296 = por %p294, %p295
      %p298 = scmp.ne.s32.totalorder %s283, %s297
      %p299 = scmp.eq.s32.totalorder %s27, 0
      %p300 = por %p298, %p299
      %s301 = ssub.s32 %s21, %s28
      %p302 = scmp.eq.s32.totalorder %s301, 0
      %s304 = sadd.s32 %s303, 1
      %s305 = scalar_select %p302, %s303, %s304
      %p308 = pneg %p302
      %p309 = scmp.eq.s32.totalorder %s21, 1
      %p310 = por %p308, %p309
      %p311 = scmp.ne.s32.totalorder %s303, %s306
      %p312 = scmp.eq.s32.totalorder %s21, 0
      %p313 = por %p311, %p312
      %p314 = scmp.ne.s32.totalorder %s303, %s306
      %p315 = scmp.eq.s32.totalorder %s26, 1
      %p316 = por %p314, %p315
      %p317 = scmp.ne.s32.totalorder %s306, %s307
      %p318 = scmp.eq.s32.totalorder %s26, 0
      %p319 = por %p317, %p318
      %p320 = scmp.ne.s32.totalorder %s306, %s307
      %p321 = scmp.eq.s32.totalorder %s27, 1
      %p322 = por %p320, %p321
      %p324 = scmp.ne.s32.totalorder %s307, %s323
      %p325 = scmp.eq.s32.totalorder %s27, 0
      %p326 = por %p324, %p325
      %p327 = scmp.le.s32.totalorder 1, %s21
      %p328 = scmp.lt.s32.totalorder %s21, 3
      %p329 = pnand %p327, %p328
      %p330 = pneg %p329
      // Predicated region
      $region9: #{_lambda_.1} parent=5 // pred_check
        _
      $region10: #{_lambda_.1} parent=5 // pred_check_branch
        %332 = sbr.rel (%p329) target = $region12
      $region11: #{_lambda_.1} parent=5 // pred_region
        %s333 = ssub.s32 %s21, 1
        // Predicated region
        $region13: #{_lambda_.1} parent=11 // pred_check
          %p334 = pneg %p146
        $region14: #{_lambda_.1} parent=11 // pred_check_branch
          %336 = sbr.rel (%p334) target = $region16
        $region15: #{_lambda_.1} parent=11 // pred_region
          _
        $region16: #{_lambda_.1} parent=11 // pred_fallthru
          _
        // Predicated region
        $region17: #{_lambda_.1} parent=11 // pred_check
          %p337 = pneg %p167
        $region18: #{_lambda_.1} parent=11 // pred_check_branch
          %339 = sbr.rel (%p337) target = $region20
        $region19: #{_lambda_.1} parent=11 // pred_region
          _
        $region20: #{_lambda_.1} parent=11 // pred_fallthru
          _
        // Predicated region
        $region21: #{_lambda_.1} parent=11 // pred_check
          %p340 = pneg %p188
        $region22: #{_lambda_.1} parent=11 // pred_check_branch
          %342 = sbr.rel (%p340) target = $region24
        $region23: #{_lambda_.1} parent=11 // pred_region
          _
        $region24: #{_lambda_.1} parent=11 // pred_fallthru
          _
        // Predicated region
        $region25: #{_lambda_.1} parent=11 // pred_check
          %p343 = pneg %p209
        $region26: #{_lambda_.1} parent=11 // pred_check_branch
          %345 = sbr.rel (%p343) target = $region28
        $region27: #{_lambda_.1} parent=11 // pred_region
          _
        $region28: #{_lambda_.1} parent=11 // pred_fallthru
          _
        // Predicated region
        $region29: #{_lambda_.1} parent=11 // pred_check
          %p346 = pneg %p230
        $region30: #{_lambda_.1} parent=11 // pred_check_branch
          %348 = sbr.rel (%p346) target = $region32
        $region31: #{_lambda_.1} parent=11 // pred_region
          _
        $region32: #{_lambda_.1} parent=11 // pred_fallthru
          _
        // Predicated region
        $region33: #{_lambda_.1} parent=11 // pred_check
          %p349 = pneg %p251
        $region34: #{_lambda_.1} parent=11 // pred_check_branch
          %351 = sbr.rel (%p349) target = $region36
        $region35: #{_lambda_.1} parent=11 // pred_region
          _
        $region36: #{_lambda_.1} parent=11 // pred_fallthru
          _
        // Predicated region
        $region37: #{_lambda_.1} parent=11 // pred_check
          %p352 = pneg %p272
        $region38: #{_lambda_.1} parent=11 // pred_check_branch
          %354 = sbr.rel (%p352) target = $region40
        $region39: #{_lambda_.1} parent=11 // pred_region
          _
        $region40: #{_lambda_.1} parent=11 // pred_fallthru
          _
        // Predicated region
        $region41: #{_lambda_.1} parent=11 // pred_check
          %p355 = pneg %p293
        $region42: #{_lambda_.1} parent=11 // pred_check_branch
          %357 = sbr.rel (%p355) target = $region44
        $region43: #{_lambda_.1} parent=11 // pred_region
          _
        $region44: #{_lambda_.1} parent=11 // pred_fallthru
          _
      $region12: #{_lambda_.1} parent=5 // pred_fallthru
        _
      %p358 = scmp.lt.s32.totalorder %s21, 2
      // Predicated region
      $region45: #{_lambda_.1} parent=5 // pred_check
        %p359 = pneg %p358
      $region46: #{_lambda_.1} parent=5 // pred_check_branch
        %361 = sbr.rel (%p359) target = $region48
      $region47: #{_lambda_.1} parent=5 // pred_region
        // Predicated region
        $region49: #{_lambda_.1} parent=47 // pred_check
          %p362 = pneg %p41
        $region50: #{_lambda_.1} parent=47 // pred_check_branch
          %364 = sbr.rel (%p362) target = $region52
        $region51: #{_lambda_.1} parent=47 // pred_region
          %p365 = scmp.lt.s32.totalorder %s21, 1
          %s366 = scalar_select %p365, %s21, 1
          %s367 = smul.addr %s366, 8
          %s368 = smul.addr %s367, 4
          %s369 = scalar_lea.vmem %s0, %s368
        $region52: #{_lambda_.1} parent=47 // pred_fallthru
          _
        // Predicated region
        $region53: #{_lambda_.1} parent=47 // pred_check
          %p370 = pneg %p67
        $region54: #{_lambda_.1} parent=47 // pred_check_branch
          %372 = sbr.rel (%p370) target = $region56
        $region55: #{_lambda_.1} parent=47 // pred_region
          %p373 = scmp.lt.s32.totalorder %s21, 1
          %s374 = scalar_select %p373, %s21, 1
          %s375 = smul.addr %s374, 8
          %s376 = smul.addr %s375, 4
          %s377 = scalar_lea.vmem %s1, %s376
        $region56: #{_lambda_.1} parent=47 // pred_fallthru
          _
        // Predicated region
        $region57: #{_lambda_.1} parent=47 // pred_check
          %p378 = pneg %p93
        $region58: #{_lambda_.1} parent=47 // pred_check_branch
          %380 = sbr.rel (%p378) target = $region60
        $region59: #{_lambda_.1} parent=47 // pred_region
          %p381 = scmp.lt.s32.totalorder %s21, 1
          %s382 = scalar_select %p381, %s21, 1
          %s383 = smul.addr %s382, 8
          %s384 = smul.addr %s383, 4
          %s385 = scalar_lea.vmem %s2, %s384
        $region60: #{_lambda_.1} parent=47 // pred_fallthru
          _
        // Predicated region
        $region61: #{_lambda_.1} parent=47 // pred_check
          %p386 = pneg %p119
        $region62: #{_lambda_.1} parent=47 // pred_check_branch
          %388 = sbr.rel (%p386) target = $region64
        $region63: #{_lambda_.1} parent=47 // pred_region
          %p389 = scmp.lt.s32.totalorder %s21, 1
          %s390 = scalar_select %p389, %s21, 1
          %s391 = smul.addr %s390, 8
          %s392 = smul.addr %s391, 4
          %s393 = scalar_lea.vmem %s3, %s392
        $region64: #{_lambda_.1} parent=47 // pred_fallthru
          _
      $region48: #{_lambda_.1} parent=5 // pred_fallthru
        _
      %p394 = scmp.le.s32.totalorder 1, %s21
      %p395 = scmp.lt.s32.totalorder %s21, 3
      %p396 = pnand %p394, %p395
      %p397 = pneg %p396
      // Predicated region
      $region65: #{_lambda_.1} parent=5 // pred_check
        _
      $region66: #{_lambda_.1} parent=5 // pred_check_branch
        %399 = sbr.rel (%p396) target = $region68
      $region67: #{_lambda_.1} parent=5 // pred_region
        %s400 = ssub.s32 %s21, 1
        %p401 = scmp.lt.s32.totalorder %s26, 1
        %s402 = scalar_select %p401, %s26, 1
        %s403 = smul.addr %s402, 8
        %s404 = smul.addr %s403, 4
        %s405 = scalar_lea.vmem %s0, %s404
        %p406 = pneg %p47
        %p407 = pneg %p44
        %p408 = scmp.lt.s32.totalorder %s26, 1
        %s409 = scalar_select %p408, %s26, 1
        %s410 = smul.addr %s409, 8
        %s411 = smul.addr %s410, 4
        %s412 = scalar_lea.vmem %s1, %s411
        %p413 = pneg %p73
        %p414 = pneg %p70
        %p415 = scmp.lt.s32.totalorder %s26, 1
        %s416 = scalar_select %p415, %s26, 1
        %s417 = smul.addr %s416, 8
        %s418 = smul.addr %s417, 4
        %s419 = scalar_lea.vmem %s2, %s418
        %p420 = pneg %p99
        %p421 = pneg %p96
        %p422 = scmp.lt.s32.totalorder %s26, 1
        %s423 = scalar_select %p422, %s26, 1
        %s424 = smul.addr %s423, 8
        %s425 = smul.addr %s424, 4
        %s426 = scalar_lea.vmem %s3, %s425
        %p427 = pneg %p125
        %p428 = pneg %p122
        %p429 = pneg %p146
        %p430 = pneg %p143
        %p431 = pneg %p167
        %p432 = pneg %p164
        %p433 = pneg %p188
        %p434 = pneg %p185
        %p435 = pneg %p209
        %p436 = pneg %p206
        %p437 = pneg %p230
        %p438 = pneg %p227
        %p439 = pneg %p251
        %p440 = pneg %p248
        %p441 = pneg %p272
        %p442 = pneg %p269
        %p443 = pneg %p293
        %p444 = pneg %p290
        %p445 = pneg %p319
        %p446 = pneg %p316
        %s447 = sand.u32 %s306, 1
        %s448 = scalar_lea.sflag [#allocation7], %s447
        %s449 = sand.u32 %s306, 1
        %s450 = smul.addr %s449, 64
        %s451 = scalar_lea.vmem [#allocation6], %s450
        %p452 = scmp.lt.s32.totalorder %s26, 1
        %s453 = scalar_select %p452, %s26, 1
        %s454 = smul.addr %s453, 8
        %s455 = smul.addr %s454, 4
        %s456 = scalar_lea.vmem %s0, %s455
        %p457 = scmp.lt.s32.totalorder %s26, 1
        %s458 = scalar_select %p457, %s26, 1
        %s459 = smul.addr %s458, 8
        %s460 = smul.addr %s459, 4
        %s461 = scalar_lea.vmem %s1, %s460
        %p462 = scmp.lt.s32.totalorder %s26, 1
        %s463 = scalar_select %p462, %s26, 1
        %s464 = smul.addr %s463, 8
        %s465 = smul.addr %s464, 4
        %s466 = scalar_lea.vmem %s2, %s465
        %p467 = scmp.lt.s32.totalorder %s26, 1
        %s468 = scalar_select %p467, %s26, 1
        %s469 = smul.addr %s468, 8
        %s470 = smul.addr %s469, 4
        %s471 = scalar_lea.vmem %s3, %s470
        %v473 = vld [vmem:[%s5] sm:$0x1]
        %v474 = vld [vmem:[%s7] sm:$0x1]
        %v475 = vld [vmem:[%s9] sm:$0x1]
        %vm476 = vcmask 60416
        %477 = vst.msk [vmem:[#allocation2] sm:$0xf] %vm476, 0
        %vm478 = vcmask 57344
        %479 = vst.msk [vmem:[#allocation2 + $0x4] sm:$0x1] %vm478, 0
        %s480 = scalar_lea.vmem [#allocation2], 72
        %481 = vst.msk [vmem:[%s480] sm:$0xf] %vm476, 0
        %482 = vst.msk [vmem:[%s480 + $0x4] sm:$0x1] %vm478, 0
        %vm483 = vcmask 57344
        %vm484 = vsmask.f32 256
        %vm485 = vmand %vm483, %vm484
        %v486 = vld [vmem:[#allocation2] sm:$0x1]
        %v487 = vsel %vm485, 0, %v486
        %488 = vst [vmem:[#allocation2] sm:$0x1] %v487
        %v489 = vld [vmem:[#allocation2 + $0x8] sm:$0x1]
        %v490 = vsel %vm485, 0, %v489
        %491 = vst [vmem:[#allocation2 + $0x8] sm:$0x1] %v490
        %v492 = vld [vmem:[#allocation2 + $0x10] sm:$0x1]
        %v493 = vsel %vm485, 0, %v492
        %494 = vst [vmem:[#allocation2 + $0x10] sm:$0x1] %v493
        %v495 = vld [vmem:[#allocation2 + $0x18] sm:$0x1]
        %v496 = vsel %vm485, 0, %v495
        %497 = vst [vmem:[#allocation2 + $0x18] sm:$0x1] %v496
        %v498 = vld [vmem:[#allocation2 + $0x20] sm:$0x1]
        %v499 = vsel %vm485, 0, %v498
        %500 = vst [vmem:[#allocation2 + $0x20] sm:$0x1] %v499
        %v501 = vld [vmem:[#allocation2 + $0x28] sm:$0x1]
        %v502 = vsel %vm485, 0, %v501
        %503 = vst [vmem:[#allocation2 + $0x28] sm:$0x1] %v502
        %v504 = vld [vmem:[#allocation2 + $0x30] sm:$0x1]
        %v505 = vsel %vm485, 0, %v504
        %506 = vst [vmem:[#allocation2 + $0x30] sm:$0x1] %v505
        %v507 = vld [vmem:[#allocation2 + $0x38] sm:$0x1]
        %v508 = vsel %vm485, 0, %v507
        %509 = vst [vmem:[#allocation2 + $0x38] sm:$0x1] %v508
        %v510 = vld [vmem:[#allocation2 + $0x40] sm:$0x1]
        %v511 = vsel %vm485, 0, %v510
        %512 = vst [vmem:[#allocation2 + $0x40] sm:$0x1] %v511
        %v513 = vld [vmem:[#allocation2 + $0x48] sm:$0x1]
        %v514 = vsel %vm485, 0, %v513
        %515 = vst [vmem:[#allocation2 + $0x48] sm:$0x1] %v514
        %vm516 = vsmask.f32 7938
        %vm517 = vmand %vm483, %vm516
        %v518 = vld [vmem:[#allocation2 + $0x4] sm:$0x1]
        %v519 = vsel %vm517, 0, %v518
        %520 = vst [vmem:[#allocation2 + $0x4] sm:$0x1] %v519
        %v521 = vld [vmem:[#allocation2 + $0xc] sm:$0x1]
        %v522 = vsel %vm517, 0, %v521
        %523 = vst [vmem:[#allocation2 + $0xc] sm:$0x1] %v522
        %v524 = vld [vmem:[#allocation2 + $0x14] sm:$0x1]
        %v525 = vsel %vm517, 0, %v524
        %526 = vst [vmem:[#allocation2 + $0x14] sm:$0x1] %v525
        %v527 = vld [vmem:[#allocation2 + $0x1c] sm:$0x1]
        %v528 = vsel %vm517, 0, %v527
        %529 = vst [vmem:[#allocation2 + $0x1c] sm:$0x1] %v528
        %v530 = vld [vmem:[#allocation2 + $0x24] sm:$0x1]
        %v531 = vsel %vm517, 0, %v530
        %532 = vst [vmem:[#allocation2 + $0x24] sm:$0x1] %v531
        %v533 = vld [vmem:[#allocation2 + $0x2c] sm:$0x1]
        %v534 = vsel %vm517, 0, %v533
        %535 = vst [vmem:[#allocation2 + $0x2c] sm:$0x1] %v534
        %v536 = vld [vmem:[#allocation2 + $0x34] sm:$0x1]
        %v537 = vsel %vm517, 0, %v536
        %538 = vst [vmem:[#allocation2 + $0x34] sm:$0x1] %v537
        %v539 = vld [vmem:[#allocation2 + $0x3c] sm:$0x1]
        %v540 = vsel %vm517, 0, %v539
        %541 = vst [vmem:[#allocation2 + $0x3c] sm:$0x1] %v540
        %v542 = vld [vmem:[#allocation2 + $0x44] sm:$0x1]
        %v543 = vsel %vm517, 0, %v542
        %544 = vst [vmem:[#allocation2 + $0x44] sm:$0x1] %v543
        %v545 = vld [vmem:[#allocation2 + $0x4c] sm:$0x1]
        %v546 = vsel %vm517, 0, %v545
        %547 = vst [vmem:[#allocation2 + $0x4c] sm:$0x1] %v546
        %v548 = vld [vmem:[%s456] sm:$0xf]
        %v549 = vld [vmem:[%s456 + $0x4] sm:$0xf]
        %v550 = vld [vmem:[%s456 + $0x8] sm:$0xf]
        %v551 = vld [vmem:[%s456 + $0xc] sm:$0xf]
        %v552 = vld [vmem:[%s456 + $0x10] sm:$0xf]
        %v553 = vld [vmem:[%s456 + $0x14] sm:$0xf]
        %v554 = vld [vmem:[%s456 + $0x18] sm:$0xf]
        %v555 = vld [vmem:[%s456 + $0x1c] sm:$0xf]
        %v556 = vld [vmem:[%s4] sm:$0xf]
        %v557 = vld [vmem:[%s4 + $0x4] sm:$0xf]
        %v559 = vlaneseq
        %v560 = vshrl.u32 %v559, 7
        %v561 = vsub.s32 0, %v560
        %v562 = vrot.slane %v473, %v561
        %v572 = vunpack.c.l.b16 %v548
        %v573 = vunpack.c.l.b16 %v549
        %v574 = vunpack.c.l.b16 %v550
        %v575 = vunpack.c.l.b16 %v551
        %v576 = vunpack.c.l.b16 %v552
        %v577 = vunpack.c.l.b16 %v553
        %v578 = vunpack.c.l.b16 %v554
        %v579 = vunpack.c.l.b16 %v555
        %v580 = vpack.c.b16 %v573, %v572
        %v581 = vpack.c.b16 %v575, %v574
        %v582 = vpack.c.b16 %v577, %v576
        %v583 = vpack.c.b16 %v579, %v578
        %v586 = vunpack.c.l.b16 %v556
        %v587 = vunpack.c.l.b16 %v557
        %v588 = vpack.c.b16 %v587, %v586
        %vm590 = vcmask 130048
        %v592 = vsel %vm590, %v580, 0
        %v595 = vsel %vm590, %v581, 0
        %v598 = vsel %vm590, %v582, 0
        %v601 = vsel %vm590, %v583, 0
        %603 = vmatprep.subr.bf16.mxu0 0
        %604 = vmatpush1.bf16.msra.mxu0 0
        %605 = vmatprep.subr.bf16.mxu0 0
        %606 = vmatpush1.bf16.msra.mxu0 0
        %607 = vmatprep.subr.bf16.mxu0 0
        %608 = vmatpush1.bf16.msra.mxu0 0
        %609 = vmatprep.subr.bf16.mxu0 0
        %610 = vmatpush1.bf16.msra.mxu0 0
        %611 = vmatprep.subr.bf16.mxu0 0
        %612 = vmatpush1.bf16.msra.mxu0 0
        %613 = vmatprep.subr.bf16.mxu0 0
        %614 = vmatpush1.bf16.msra.mxu0 0
        %615 = vmatprep.subr.bf16.mxu0 0
        %616 = vmatpush1.bf16.msra.mxu0 0
        %617 = vmatprep.subr.bf16.mxu0 0
        %618 = vmatpush1.bf16.msra.mxu0 %v588
        %619 = vmatprep.subr.bf16.mxu0 0
        %620 = vmatpush2.bf16.msra.mxu0 0
        %621 = vmatprep.subr.bf16.mxu0 0
        %622 = vmatpush2.bf16.msra.mxu0 0
        %623 = vmatprep.subr.bf16.mxu0 0
        %624 = vmatpush2.bf16.msra.mxu0 0
        %625 = vmatprep.subr.bf16.mxu0 0
        %626 = vmatpush2.bf16.msra.mxu0 0
        %627 = vmatprep.subr.bf16.mxu0 0
        %628 = vmatpush2.bf16.msra.mxu0 0
        %629 = vmatprep.subr.bf16.mxu0 0
        %630 = vmatpush2.bf16.msra.mxu0 0
        %631 = vmatprep.subr.bf16.mxu0 0
        %632 = vmatpush2.bf16.msra.mxu0 0
        %633 = vmatprep.subr.bf16.mxu0 0
        %634 = vmatpush2.bf16.msra.mxu0 0
        %635 = vmatprep.mubr.bf16.mxu0 0
        %636 = vmatmul.mubr.bf16.gmra.mxu0 %v592
        %v637 = vpop.f32.mrf.mxu0
        %v638 = vadd.f32 %v562, %v637
        %v639 = vpop.f32.mrf.mxu0
        %v640 = vpop.f32.mrf.mxu0
        %v641 = vadd.f32 %v562, %v640
        %v642 = vpop.f32.mrf.mxu0
        %643 = vmatprep.mubr.bf16.mxu0 0
        %644 = vmatmul.mubr.bf16.gmra.mxu0 %v595
        %v645 = vpop.f32.mrf.mxu0
        %v646 = vadd.f32 %v562, %v645
        %v647 = vpop.f32.mrf.mxu0
        %v648 = vpop.f32.mrf.mxu0
        %v649 = vadd.f32 %v562, %v648
        %v650 = vpop.f32.mrf.mxu0
        %651 = vmatprep.mubr.bf16.mxu0 0
        %652 = vmatmul.mubr.bf16.gmra.mxu0 %v598
        %v653 = vpop.f32.mrf.mxu0
        %v654 = vadd.f32 %v562, %v653
        %v655 = vpop.f32.mrf.mxu0
        %v656 = vpop.f32.mrf.mxu0
        %v657 = vadd.f32 %v562, %v656
        %v658 = vpop.f32.mrf.mxu0
        %659 = vmatprep.mubr.bf16.mxu0 0
        %660 = vmatmul.mubr.bf16.gmra.mxu0 %v601
        %v661 = vpop.f32.mrf.mxu0
        %v662 = vadd.f32 %v562, %v661
        %v663 = vpop.f32.mrf.mxu0
        %v664 = vpop.f32.mrf.mxu0
        %v665 = vadd.f32 %v562, %v664
        %v666 = vpop.f32.mrf.mxu0
        %667 = vdwg.mxu0
        %v668 = vmax.f32 %v638, 0.0
        %v669 = vmax.f32 %v641, 0.0
        %v670 = vmax.f32 %v646, 0.0
        %v671 = vmax.f32 %v649, 0.0
        %v672 = vmax.f32 %v654, 0.0
        %v673 = vmax.f32 %v657, 0.0
        %v674 = vmax.f32 %v662, 0.0
        %v675 = vmax.f32 %v665, 0.0
        %v676 = vpack.c.bf16 %v669, %v668
        %v677 = vpack.c.bf16 %v671, %v670
        %v678 = vpack.c.bf16 %v673, %v672
        %v679 = vpack.c.bf16 %v675, %v674
        %v684 = vunpack.c.l.b16 %v676
        %v685 = vunpack.c.h.b16 %v676
        %v686 = vunpack.c.l.b16 %v677
        %v687 = vunpack.c.h.b16 %v677
        %v688 = vunpack.c.l.b16 %v678
        %v689 = vunpack.c.h.b16 %v678
        %v690 = vunpack.c.l.b16 %v679
        %v691 = vunpack.c.h.b16 %v679
        %v692 = vpack.c.b16 %v684, %v684
        %v693 = vpack.c.b16 %v685, %v685
        %v694 = vpack.c.b16 %v686, %v686
        %v695 = vpack.c.b16 %v687, %v687
        %v696 = vpack.c.b16 %v688, %v688
        %v697 = vpack.c.b16 %v689, %v689
        %v698 = vpack.c.b16 %v690, %v690
        %v699 = vpack.c.b16 %v691, %v691
        %v701 = vshrl.u32 %v692, 16
        %v703 = vrot.slane %v701, 7
        %v704 = vshll.u32 %v692, 16
        %v706 = vor.u32 %v703, %v704
        %v707 = vrot.slane %v703, 4
        %v709 = vshrl.u32 %v693, 16
        %v711 = vrot.slane %v709, 7
        %v712 = vshll.u32 %v693, 16
        %v714 = vor.u32 %v711, %v712
        %v715 = vrot.slane %v711, 4
        %v717 = vshrl.u32 %v694, 16
        %v719 = vrot.slane %v717, 7
        %v720 = vshll.u32 %v694, 16
        %v722 = vor.u32 %v719, %v720
        %v723 = vrot.slane %v719, 4
        %v725 = vshrl.u32 %v695, 16
        %v727 = vrot.slane %v725, 7
        %v728 = vshll.u32 %v695, 16
        %v730 = vor.u32 %v727, %v728
        %v731 = vrot.slane %v727, 4
        %v733 = vshrl.u32 %v696, 16
        %v735 = vrot.slane %v733, 7
        %v736 = vshll.u32 %v696, 16
        %v738 = vor.u32 %v735, %v736
        %v739 = vrot.slane %v735, 4
        %v741 = vshrl.u32 %v697, 16
        %v743 = vrot.slane %v741, 7
        %v744 = vshll.u32 %v697, 16
        %v746 = vor.u32 %v743, %v744
        %v747 = vrot.slane %v743, 4
        %v749 = vshrl.u32 %v698, 16
        %v751 = vrot.slane %v749, 7
        %v752 = vshll.u32 %v698, 16
        %v754 = vor.u32 %v751, %v752
        %v755 = vrot.slane %v751, 4
        %v757 = vshrl.u32 %v699, 16
        %v759 = vrot.slane %v757, 7
        %v760 = vshll.u32 %v699, 16
        %v762 = vor.u32 %v759, %v760
        %v763 = vrot.slane %v759, 4
        %s780 = scalar_lea.vmem [#allocation2], 8
        %vm781 = vcmask 60416
        %vm782 = vmand %vm781, %vm516
        %v783 = vld [vmem:[%s780] sm:$0xf]
        %v784 = vsel %vm782, %v706, %v783
        %785 = vst [vmem:[%s780] sm:$0xf] %v784
        %v786 = vld [vmem:[%s780 + $0x4] sm:$0x1]
        %v787 = vsel %vm485, %v707, %v786
        %788 = vst [vmem:[%s780 + $0x4] sm:$0x1] %v787
        %v789 = vld [vmem:[%s780 + $0x8] sm:$0xf]
        %v790 = vsel %vm782, %v714, %v789
        %791 = vst [vmem:[%s780 + $0x8] sm:$0xf] %v790
        %v792 = vld [vmem:[%s780 + $0xc] sm:$0x1]
        %v793 = vsel %vm485, %v715, %v792
        %794 = vst [vmem:[%s780 + $0xc] sm:$0x1] %v793
        %v795 = vld [vmem:[%s780 + $0x10] sm:$0xf]
        %v796 = vsel %vm782, %v722, %v795
        %797 = vst [vmem:[%s780 + $0x10] sm:$0xf] %v796
        %v798 = vld [vmem:[%s780 + $0x14] sm:$0x1]
        %v799 = vsel %vm485, %v723, %v798
        %800 = vst [vmem:[%s780 + $0x14] sm:$0x1] %v799
        %v801 = vld [vmem:[%s780 + $0x18] sm:$0xf]
        %v802 = vsel %vm782, %v730, %v801
        %803 = vst [vmem:[%s780 + $0x18] sm:$0xf] %v802
        %v804 = vld [vmem:[%s780 + $0x1c] sm:$0x1]
        %v805 = vsel %vm485, %v731, %v804
        %806 = vst [vmem:[%s780 + $0x1c] sm:$0x1] %v805
        %v807 = vld [vmem:[%s780 + $0x20] sm:$0xf]
        %v808 = vsel %vm782, %v738, %v807
        %809 = vst [vmem:[%s780 + $0x20] sm:$0xf] %v808
        %v810 = vld [vmem:[%s780 + $0x24] sm:$0x1]
        %v811 = vsel %vm485, %v739, %v810
        %812 = vst [vmem:[%s780 + $0x24] sm:$0x1] %v811
        %v813 = vld [vmem:[%s780 + $0x28] sm:$0xf]
        %v814 = vsel %vm782, %v746, %v813
        %815 = vst [vmem:[%s780 + $0x28] sm:$0xf] %v814
        %v816 = vld [vmem:[%s780 + $0x2c] sm:$0x1]
        %v817 = vsel %vm485, %v747, %v816
        %818 = vst [vmem:[%s780 + $0x2c] sm:$0x1] %v817
        %v819 = vld [vmem:[%s780 + $0x30] sm:$0xf]
        %v820 = vsel %vm782, %v754, %v819
        %821 = vst [vmem:[%s780 + $0x30] sm:$0xf] %v820
        %v822 = vld [vmem:[%s780 + $0x34] sm:$0x1]
        %v823 = vsel %vm485, %v755, %v822
        %824 = vst [vmem:[%s780 + $0x34] sm:$0x1] %v823
        %v825 = vld [vmem:[%s780 + $0x38] sm:$0xf]
        %v826 = vsel %vm782, %v762, %v825
        %827 = vst [vmem:[%s780 + $0x38] sm:$0xf] %v826
        %v828 = vld [vmem:[%s780 + $0x3c] sm:$0x1]
        %v829 = vsel %vm485, %v763, %v828
        %830 = vst [vmem:[%s780 + $0x3c] sm:$0x1] %v829
        %831 = vst.msk [vmem:[#allocation3] sm:$0xf] %vm476, 0
        %832 = vst.msk [vmem:[#allocation3 + $0x4] sm:$0x1] %vm478, 0
        %s833 = scalar_lea.vmem [#allocation3], 72
        %834 = vst.msk [vmem:[%s833] sm:$0xf] %vm476, 0
        %835 = vst.msk [vmem:[%s833 + $0x4] sm:$0x1] %vm478, 0
        %v836 = vld [vmem:[#allocation3] sm:$0x1]
        %v837 = vsel %vm485, 0, %v836
        %838 = vst [vmem:[#allocation3] sm:$0x1] %v837
        %v839 = vld [vmem:[#allocation3 + $0x8] sm:$0x1]
        %v840 = vsel %vm485, 0, %v839
        %841 = vst [vmem:[#allocation3 + $0x8] sm:$0x1] %v840
        %v842 = vld [vmem:[#allocation3 + $0x10] sm:$0x1]
        %v843 = vsel %vm485, 0, %v842
        %844 = vst [vmem:[#allocation3 + $0x10] sm:$0x1] %v843
        %v845 = vld [vmem:[#allocation3 + $0x18] sm:$0x1]
        %v846 = vsel %vm485, 0, %v845
        %847 = vst [vmem:[#allocation3 + $0x18] sm:$0x1] %v846
        %v848 = vld [vmem:[#allocation3 + $0x20] sm:$0x1]
        %v849 = vsel %vm485, 0, %v848
        %850 = vst [vmem:[#allocation3 + $0x20] sm:$0x1] %v849
        %v851 = vld [vmem:[#allocation3 + $0x28] sm:$0x1]
        %v852 = vsel %vm485, 0, %v851
        %853 = vst [vmem:[#allocation3 + $0x28] sm:$0x1] %v852
        %v854 = vld [vmem:[#allocation3 + $0x30] sm:$0x1]
        %v855 = vsel %vm485, 0, %v854
        %856 = vst [vmem:[#allocation3 + $0x30] sm:$0x1] %v855
        %v857 = vld [vmem:[#allocation3 + $0x38] sm:$0x1]
        %v858 = vsel %vm485, 0, %v857
        %859 = vst [vmem:[#allocation3 + $0x38] sm:$0x1] %v858
        %v860 = vld [vmem:[#allocation3 + $0x40] sm:$0x1]
        %v861 = vsel %vm485, 0, %v860
        %862 = vst [vmem:[#allocation3 + $0x40] sm:$0x1] %v861
        %v863 = vld [vmem:[#allocation3 + $0x48] sm:$0x1]
        %v864 = vsel %vm485, 0, %v863
        %865 = vst [vmem:[#allocation3 + $0x48] sm:$0x1] %v864
        %v866 = vld [vmem:[#allocation3 + $0x4] sm:$0x1]
        %v867 = vsel %vm517, 0, %v866
        %868 = vst [vmem:[#allocation3 + $0x4] sm:$0x1] %v867
        %v869 = vld [vmem:[#allocation3 + $0xc] sm:$0x1]
        %v870 = vsel %vm517, 0, %v869
        %871 = vst [vmem:[#allocation3 + $0xc] sm:$0x1] %v870
        %v872 = vld [vmem:[#allocation3 + $0x14] sm:$0x1]
        %v873 = vsel %vm517, 0, %v872
        %874 = vst [vmem:[#allocation3 + $0x14] sm:$0x1] %v873
        %v875 = vld [vmem:[#allocation3 + $0x1c] sm:$0x1]
        %v876 = vsel %vm517, 0, %v875
        %877 = vst [vmem:[#allocation3 + $0x1c] sm:$0x1] %v876
        %v878 = vld [vmem:[#allocation3 + $0x24] sm:$0x1]
        %v879 = vsel %vm517, 0, %v878
        %880 = vst [vmem:[#allocation3 + $0x24] sm:$0x1] %v879
        %v881 = vld [vmem:[#allocation3 + $0x2c] sm:$0x1]
        %v882 = vsel %vm517, 0, %v881
        %883 = vst [vmem:[#allocation3 + $0x2c] sm:$0x1] %v882
        %v884 = vld [vmem:[#allocation3 + $0x34] sm:$0x1]
        %v885 = vsel %vm517, 0, %v884
        %886 = vst [vmem:[#allocation3 + $0x34] sm:$0x1] %v885
        %v887 = vld [vmem:[#allocation3 + $0x3c] sm:$0x1]
        %v888 = vsel %vm517, 0, %v887
        %889 = vst [vmem:[#allocation3 + $0x3c] sm:$0x1] %v888
        %v890 = vld [vmem:[#allocation3 + $0x44] sm:$0x1]
        %v891 = vsel %vm517, 0, %v890
        %892 = vst [vmem:[#allocation3 + $0x44] sm:$0x1] %v891
        %v893 = vld [vmem:[#allocation3 + $0x4c] sm:$0x1]
        %v894 = vsel %vm517, 0, %v893
        %895 = vst [vmem:[#allocation3 + $0x4c] sm:$0x1] %v894
        %v896 = vld [vmem:[%s461] sm:$0xf]
        %v897 = vld [vmem:[%s461 + $0x4] sm:$0xf]
        %v898 = vld [vmem:[%s461 + $0x8] sm:$0xf]
        %v899 = vld [vmem:[%s461 + $0xc] sm:$0xf]
        %v900 = vld [vmem:[%s461 + $0x10] sm:$0xf]
        %v901 = vld [vmem:[%s461 + $0x14] sm:$0xf]
        %v902 = vld [vmem:[%s461 + $0x18] sm:$0xf]
        %v903 = vld [vmem:[%s461 + $0x1c] sm:$0xf]
        %v904 = vld [vmem:[%s4] sm:$0xf]
        %v905 = vld [vmem:[%s4 + $0x4] sm:$0xf]
        %v914 = vunpack.c.l.b16 %v896
        %v915 = vunpack.c.l.b16 %v897
        %v916 = vunpack.c.l.b16 %v898
        %v917 = vunpack.c.l.b16 %v899
        %v918 = vunpack.c.l.b16 %v900
        %v919 = vunpack.c.l.b16 %v901
        %v920 = vunpack.c.l.b16 %v902
        %v921 = vunpack.c.l.b16 %v903
        %v922 = vpack.c.b16 %v915, %v914
        %v923 = vpack.c.b16 %v917, %v916
        %v924 = vpack.c.b16 %v919, %v918
        %v925 = vpack.c.b16 %v921, %v920
        %v928 = vunpack.c.l.b16 %v904
        %v929 = vunpack.c.l.b16 %v905
        %v930 = vpack.c.b16 %v929, %v928
        %v933 = vsel %vm590, %v922, 0
        %v936 = vsel %vm590, %v923, 0
        %v939 = vsel %vm590, %v924, 0
        %v942 = vsel %vm590, %v925, 0
        %944 = vmatprep.subr.bf16.mxu0 0
        %945 = vmatpush1.bf16.msra.mxu0 0
        %946 = vmatprep.subr.bf16.mxu0 0
        %947 = vmatpush1.bf16.msra.mxu0 0
        %948 = vmatprep.subr.bf16.mxu0 0
        %949 = vmatpush1.bf16.msra.mxu0 0
        %950 = vmatprep.subr.bf16.mxu0 0
        %951 = vmatpush1.bf16.msra.mxu0 0
        %952 = vmatprep.subr.bf16.mxu0 0
        %953 = vmatpush1.bf16.msra.mxu0 0
        %954 = vmatprep.subr.bf16.mxu0 0
        %955 = vmatpush1.bf16.msra.mxu0 0
        %956 = vmatprep.subr.bf16.mxu0 0
        %957 = vmatpush1.bf16.msra.mxu0 0
        %958 = vmatprep.subr.bf16.mxu0 0
        %959 = vmatpush1.bf16.msra.mxu0 %v930
        %960 = vmatprep.subr.bf16.mxu0 0
        %961 = vmatpush2.bf16.msra.mxu0 0
        %962 = vmatprep.subr.bf16.mxu0 0
        %963 = vmatpush2.bf16.msra.mxu0 0
        %964 = vmatprep.subr.bf16.mxu0 0
        %965 = vmatpush2.bf16.msra.mxu0 0
        %966 = vmatprep.subr.bf16.mxu0 0
        %967 = vmatpush2.bf16.msra.mxu0 0
        %968 = vmatprep.subr.bf16.mxu0 0
        %969 = vmatpush2.bf16.msra.mxu0 0
        %970 = vmatprep.subr.bf16.mxu0 0
        %971 = vmatpush2.bf16.msra.mxu0 0
        %972 = vmatprep.subr.bf16.mxu0 0
        %973 = vmatpush2.bf16.msra.mxu0 0
        %974 = vmatprep.subr.bf16.mxu0 0
        %975 = vmatpush2.bf16.msra.mxu0 0
        %976 = vmatprep.mubr.bf16.mxu0 0
        %977 = vmatmul.mubr.bf16.gmra.mxu0 %v933
        %v978 = vpop.f32.mrf.mxu0
        %v979 = vadd.f32 %v562, %v978
        %v980 = vpop.f32.mrf.mxu0
        %v981 = vpop.f32.mrf.mxu0
        %v982 = vadd.f32 %v562, %v981
        %v983 = vpop.f32.mrf.mxu0
        %984 = vmatprep.mubr.bf16.mxu0 0
        %985 = vmatmul.mubr.bf16.gmra.mxu0 %v936
        %v986 = vpop.f32.mrf.mxu0
        %v987 = vadd.f32 %v562, %v986
        %v988 = vpop.f32.mrf.mxu0
        %v989 = vpop.f32.mrf.mxu0
        %v990 = vadd.f32 %v562, %v989
        %v991 = vpop.f32.mrf.mxu0
        %992 = vmatprep.mubr.bf16.mxu0 0
        %993 = vmatmul.mubr.bf16.gmra.mxu0 %v939
        %v994 = vpop.f32.mrf.mxu0
        %v995 = vadd.f32 %v562, %v994
        %v996 = vpop.f32.mrf.mxu0
        %v997 = vpop.f32.mrf.mxu0
        %v998 = vadd.f32 %v562, %v997
        %v999 = vpop.f32.mrf.mxu0
        %1000 = vmatprep.mubr.bf16.mxu0 0
        %1001 = vmatmul.mubr.bf16.gmra.mxu0 %v942
        %v1002 = vpop.f32.mrf.mxu0
        %v1003 = vadd.f32 %v562, %v1002
        %v1004 = vpop.f32.mrf.mxu0
        %v1005 = vpop.f32.mrf.mxu0
        %v1006 = vadd.f32 %v562, %v1005
        %v1007 = vpop.f32.mrf.mxu0
        %1008 = vdwg.mxu0
        %v1009 = vmax.f32 %v979, 0.0
        %v1010 = vmax.f32 %v982, 0.0
        %v1011 = vmax.f32 %v987, 0.0
        %v1012 = vmax.f32 %v990, 0.0
        %v1013 = vmax.f32 %v995, 0.0
        %v1014 = vmax.f32 %v998, 0.0
        %v1015 = vmax.f32 %v1003, 0.0
        %v1016 = vmax.f32 %v1006, 0.0
        %v1017 = vpack.c.bf16 %v1010, %v1009
        %v1018 = vpack.c.bf16 %v1012, %v1011
        %v1019 = vpack.c.bf16 %v1014, %v1013
        %v1020 = vpack.c.bf16 %v1016, %v1015
        %v1025 = vunpack.c.l.b16 %v1017
        %v1026 = vunpack.c.h.b16 %v1017
        %v1027 = vunpack.c.l.b16 %v1018
        %v1028 = vunpack.c.h.b16 %v1018
        %v1029 = vunpack.c.l.b16 %v1019
        %v1030 = vunpack.c.h.b16 %v1019
        %v1031 = vunpack.c.l.b16 %v1020
        %v1032 = vunpack.c.h.b16 %v1020
        %v1033 = vpack.c.b16 %v1025, %v1025
        %v1034 = vpack.c.b16 %v1026, %v1026
        %v1035 = vpack.c.b16 %v1027, %v1027
        %v1036 = vpack.c.b16 %v1028, %v1028
        %v1037 = vpack.c.b16 %v1029, %v1029
        %v1038 = vpack.c.b16 %v1030, %v1030
        %v1039 = vpack.c.b16 %v1031, %v1031
        %v1040 = vpack.c.b16 %v1032, %v1032
        %v1042 = vshrl.u32 %v1033, 16
        %v1044 = vrot.slane %v1042, 7
        %v1045 = vshll.u32 %v1033, 16
        %v1047 = vor.u32 %v1044, %v1045
        %v1048 = vrot.slane %v1044, 4
        %v1050 = vshrl.u32 %v1034, 16
        %v1052 = vrot.slane %v1050, 7
        %v1053 = vshll.u32 %v1034, 16
        %v1055 = vor.u32 %v1052, %v1053
        %v1056 = vrot.slane %v1052, 4
        %v1058 = vshrl.u32 %v1035, 16
        %v1060 = vrot.slane %v1058, 7
        %v1061 = vshll.u32 %v1035, 16
        %v1063 = vor.u32 %v1060, %v1061
        %v1064 = vrot.slane %v1060, 4
        %v1066 = vshrl.u32 %v1036, 16
        %v1068 = vrot.slane %v1066, 7
        %v1069 = vshll.u32 %v1036, 16
        %v1071 = vor.u32 %v1068, %v1069
        %v1072 = vrot.slane %v1068, 4
        %v1074 = vshrl.u32 %v1037, 16
        %v1076 = vrot.slane %v1074, 7
        %v1077 = vshll.u32 %v1037, 16
        %v1079 = vor.u32 %v1076, %v1077
        %v1080 = vrot.slane %v1076, 4
        %v1082 = vshrl.u32 %v1038, 16
        %v1084 = vrot.slane %v1082, 7
        %v1085 = vshll.u32 %v1038, 16
        %v1087 = vor.u32 %v1084, %v1085
        %v1088 = vrot.slane %v1084, 4
        %v1090 = vshrl.u32 %v1039, 16
        %v1092 = vrot.slane %v1090, 7
        %v1093 = vshll.u32 %v1039, 16
        %v1095 = vor.u32 %v1092, %v1093
        %v1096 = vrot.slane %v1092, 4
        %v1098 = vshrl.u32 %v1040, 16
        %v1100 = vrot.slane %v1098, 7
        %v1101 = vshll.u32 %v1040, 16
        %v1103 = vor.u32 %v1100, %v1101
        %v1104 = vrot.slane %v1100, 4
        %s1121 = scalar_lea.vmem [#allocation3], 8
        %v1122 = vld [vmem:[%s1121] sm:$0xf]
        %v1123 = vsel %vm782, %v1047, %v1122
        %1124 = vst [vmem:[%s1121] sm:$0xf] %v1123
        %v1125 = vld [vmem:[%s1121 + $0x4] sm:$0x1]
        %v1126 = vsel %vm485, %v1048, %v1125
        %1127 = vst [vmem:[%s1121 + $0x4] sm:$0x1] %v1126
        %v1128 = vld [vmem:[%s1121 + $0x8] sm:$0xf]
        %v1129 = vsel %vm782, %v1055, %v1128
        %1130 = vst [vmem:[%s1121 + $0x8] sm:$0xf] %v1129
        %v1131 = vld [vmem:[%s1121 + $0xc] sm:$0x1]
        %v1132 = vsel %vm485, %v1056, %v1131
        %1133 = vst [vmem:[%s1121 + $0xc] sm:$0x1] %v1132
        %v1134 = vld [vmem:[%s1121 + $0x10] sm:$0xf]
        %v1135 = vsel %vm782, %v1063, %v1134
        %1136 = vst [vmem:[%s1121 + $0x10] sm:$0xf] %v1135
        %v1137 = vld [vmem:[%s1121 + $0x14] sm:$0x1]
        %v1138 = vsel %vm485, %v1064, %v1137
        %1139 = vst [vmem:[%s1121 + $0x14] sm:$0x1] %v1138
        %v1140 = vld [vmem:[%s1121 + $0x18] sm:$0xf]
        %v1141 = vsel %vm782, %v1071, %v1140
        %1142 = vst [vmem:[%s1121 + $0x18] sm:$0xf] %v1141
        %v1143 = vld [vmem:[%s1121 + $0x1c] sm:$0x1]
        %v1144 = vsel %vm485, %v1072, %v1143
        %1145 = vst [vmem:[%s1121 + $0x1c] sm:$0x1] %v1144
        %v1146 = vld [vmem:[%s1121 + $0x20] sm:$0xf]
        %v1147 = vsel %vm782, %v1079, %v1146
        %1148 = vst [vmem:[%s1121 + $0x20] sm:$0xf] %v1147
        %v1149 = vld [vmem:[%s1121 + $0x24] sm:$0x1]
        %v1150 = vsel %vm485, %v1080, %v1149
        %1151 = vst [vmem:[%s1121 + $0x24] sm:$0x1] %v1150
        %v1152 = vld [vmem:[%s1121 + $0x28] sm:$0xf]
        %v1153 = vsel %vm782, %v1087, %v1152
        %1154 = vst [vmem:[%s1121 + $0x28] sm:$0xf] %v1153
        %v1155 = vld [vmem:[%s1121 + $0x2c] sm:$0x1]
        %v1156 = vsel %vm485, %v1088, %v1155
        %1157 = vst [vmem:[%s1121 + $0x2c] sm:$0x1] %v1156
        %v1158 = vld [vmem:[%s1121 + $0x30] sm:$0xf]
        %v1159 = vsel %vm782, %v1095, %v1158
        %1160 = vst [vmem:[%s1121 + $0x30] sm:$0xf] %v1159
        %v1161 = vld [vmem:[%s1121 + $0x34] sm:$0x1]
        %v1162 = vsel %vm485, %v1096, %v1161
        %1163 = vst [vmem:[%s1121 + $0x34] sm:$0x1] %v1162
        %v1164 = vld [vmem:[%s1121 + $0x38] sm:$0xf]
        %v1165 = vsel %vm782, %v1103, %v1164
        %1166 = vst [vmem:[%s1121 + $0x38] sm:$0xf] %v1165
        %v1167 = vld [vmem:[%s1121 + $0x3c] sm:$0x1]
        %v1168 = vsel %vm485, %v1104, %v1167
        %1169 = vst [vmem:[%s1121 + $0x3c] sm:$0x1] %v1168
        %1170 = vst.msk [vmem:[#allocation4] sm:$0xf] %vm476, 0
        %1171 = vst.msk [vmem:[#allocation4 + $0x4] sm:$0x1] %vm478, 0
        %s1172 = scalar_lea.vmem [#allocation4], 72
        %1173 = vst.msk [vmem:[%s1172] sm:$0xf] %vm476, 0
        %1174 = vst.msk [vmem:[%s1172 + $0x4] sm:$0x1] %vm478, 0
        %v1175 = vld [vmem:[#allocation4] sm:$0x1]
        %v1176 = vsel %vm485, 0, %v1175
        %1177 = vst [vmem:[#allocation4] sm:$0x1] %v1176
        %v1178 = vld [vmem:[#allocation4 + $0x8] sm:$0x1]
        %v1179 = vsel %vm485, 0, %v1178
        %1180 = vst [vmem:[#allocation4 + $0x8] sm:$0x1] %v1179
        %v1181 = vld [vmem:[#allocation4 + $0x10] sm:$0x1]
        %v1182 = vsel %vm485, 0, %v1181
        %1183 = vst [vmem:[#allocation4 + $0x10] sm:$0x1] %v1182
        %v1184 = vld [vmem:[#allocation4 + $0x18] sm:$0x1]
        %v1185 = vsel %vm485, 0, %v1184
        %1186 = vst [vmem:[#allocation4 + $0x18] sm:$0x1] %v1185
        %v1187 = vld [vmem:[#allocation4 + $0x20] sm:$0x1]
        %v1188 = vsel %vm485, 0, %v1187
        %1189 = vst [vmem:[#allocation4 + $0x20] sm:$0x1] %v1188
        %v1190 = vld [vmem:[#allocation4 + $0x28] sm:$0x1]
        %v1191 = vsel %vm485, 0, %v1190
        %1192 = vst [vmem:[#allocation4 + $0x28] sm:$0x1] %v1191
        %v1193 = vld [vmem:[#allocation4 + $0x30] sm:$0x1]
        %v1194 = vsel %vm485, 0, %v1193
        %1195 = vst [vmem:[#allocation4 + $0x30] sm:$0x1] %v1194
        %v1196 = vld [vmem:[#allocation4 + $0x38] sm:$0x1]
        %v1197 = vsel %vm485, 0, %v1196
        %1198 = vst [vmem:[#allocation4 + $0x38] sm:$0x1] %v1197
        %v1199 = vld [vmem:[#allocation4 + $0x40] sm:$0x1]
        %v1200 = vsel %vm485, 0, %v1199
        %1201 = vst [vmem:[#allocation4 + $0x40] sm:$0x1] %v1200
        %v1202 = vld [vmem:[#allocation4 + $0x48] sm:$0x1]
        %v1203 = vsel %vm485, 0, %v1202
        %1204 = vst [vmem:[#allocation4 + $0x48] sm:$0x1] %v1203
        %v1205 = vld [vmem:[#allocation4 + $0x4] sm:$0x1]
        %v1206 = vsel %vm517, 0, %v1205
        %1207 = vst [vmem:[#allocation4 + $0x4] sm:$0x1] %v1206
        %v1208 = vld [vmem:[#allocation4 + $0xc] sm:$0x1]
        %v1209 = vsel %vm517, 0, %v1208
        %1210 = vst [vmem:[#allocation4 + $0xc] sm:$0x1] %v1209
        %v1211 = vld [vmem:[#allocation4 + $0x14] sm:$0x1]
        %v1212 = vsel %vm517, 0, %v1211
        %1213 = vst [vmem:[#allocation4 + $0x14] sm:$0x1] %v1212
        %v1214 = vld [vmem:[#allocation4 + $0x1c] sm:$0x1]
        %v1215 = vsel %vm517, 0, %v1214
        %1216 = vst [vmem:[#allocation4 + $0x1c] sm:$0x1] %v1215
        %v1217 = vld [vmem:[#allocation4 + $0x24] sm:$0x1]
        %v1218 = vsel %vm517, 0, %v1217
        %1219 = vst [vmem:[#allocation4 + $0x24] sm:$0x1] %v1218
        %v1220 = vld [vmem:[#allocation4 + $0x2c] sm:$0x1]
        %v1221 = vsel %vm517, 0, %v1220
        %1222 = vst [vmem:[#allocation4 + $0x2c] sm:$0x1] %v1221
        %v1223 = vld [vmem:[#allocation4 + $0x34] sm:$0x1]
        %v1224 = vsel %vm517, 0, %v1223
        %1225 = vst [vmem:[#allocation4 + $0x34] sm:$0x1] %v1224
        %v1226 = vld [vmem:[#allocation4 + $0x3c] sm:$0x1]
        %v1227 = vsel %vm517, 0, %v1226
        %1228 = vst [vmem:[#allocation4 + $0x3c] sm:$0x1] %v1227
        %v1229 = vld [vmem:[#allocation4 + $0x44] sm:$0x1]
        %v1230 = vsel %vm517, 0, %v1229
        %1231 = vst [vmem:[#allocation4 + $0x44] sm:$0x1] %v1230
        %v1232 = vld [vmem:[#allocation4 + $0x4c] sm:$0x1]
        %v1233 = vsel %vm517, 0, %v1232
        %1234 = vst [vmem:[#allocation4 + $0x4c] sm:$0x1] %v1233
        %v1235 = vld [vmem:[%s466] sm:$0xf]
        %v1236 = vld [vmem:[%s466 + $0x4] sm:$0xf]
        %v1237 = vld [vmem:[%s466 + $0x8] sm:$0xf]
        %v1238 = vld [vmem:[%s466 + $0xc] sm:$0xf]
        %v1239 = vld [vmem:[%s466 + $0x10] sm:$0xf]
        %v1240 = vld [vmem:[%s466 + $0x14] sm:$0xf]
        %v1241 = vld [vmem:[%s466 + $0x18] sm:$0xf]
        %v1242 = vld [vmem:[%s466 + $0x1c] sm:$0xf]
        %v1243 = vld [vmem:[%s4] sm:$0xf]
        %v1244 = vld [vmem:[%s4 + $0x4] sm:$0xf]
        %v1253 = vunpack.c.l.b16 %v1235
        %v1254 = vunpack.c.l.b16 %v1236
        %v1255 = vunpack.c.l.b16 %v1237
        %v1256 = vunpack.c.l.b16 %v1238
        %v1257 = vunpack.c.l.b16 %v1239
        %v1258 = vunpack.c.l.b16 %v1240
        %v1259 = vunpack.c.l.b16 %v1241
        %v1260 = vunpack.c.l.b16 %v1242
        %v1261 = vpack.c.b16 %v1254, %v1253
        %v1262 = vpack.c.b16 %v1256, %v1255
        %v1263 = vpack.c.b16 %v1258, %v1257
        %v1264 = vpack.c.b16 %v1260, %v1259
        %v1267 = vunpack.c.l.b16 %v1243
        %v1268 = vunpack.c.l.b16 %v1244
        %v1269 = vpack.c.b16 %v1268, %v1267
        %v1272 = vsel %vm590, %v1261, 0
        %v1275 = vsel %vm590, %v1262, 0
        %v1278 = vsel %vm590, %v1263, 0
        %v1281 = vsel %vm590, %v1264, 0
        %1283 = vmatprep.subr.bf16.mxu0 0
        %1284 = vmatpush1.bf16.msra.mxu0 0
        %1285 = vmatprep.subr.bf16.mxu0 0
        %1286 = vmatpush1.bf16.msra.mxu0 0
        %1287 = vmatprep.subr.bf16.mxu0 0
        %1288 = vmatpush1.bf16.msra.mxu0 0
        %1289 = vmatprep.subr.bf16.mxu0 0
        %1290 = vmatpush1.bf16.msra.mxu0 0
        %1291 = vmatprep.subr.bf16.mxu0 0
        %1292 = vmatpush1.bf16.msra.mxu0 0
        %1293 = vmatprep.subr.bf16.mxu0 0
        %1294 = vmatpush1.bf16.msra.mxu0 0
        %1295 = vmatprep.subr.bf16.mxu0 0
        %1296 = vmatpush1.bf16.msra.mxu0 0
        %1297 = vmatprep.subr.bf16.mxu0 0
        %1298 = vmatpush1.bf16.msra.mxu0 %v1269
        %1299 = vmatprep.subr.bf16.mxu0 0
        %1300 = vmatpush2.bf16.msra.mxu0 0
        %1301 = vmatprep.subr.bf16.mxu0 0
        %1302 = vmatpush2.bf16.msra.mxu0 0
        %1303 = vmatprep.subr.bf16.mxu0 0
        %1304 = vmatpush2.bf16.msra.mxu0 0
        %1305 = vmatprep.subr.bf16.mxu0 0
        %1306 = vmatpush2.bf16.msra.mxu0 0
        %1307 = vmatprep.subr.bf16.mxu0 0
        %1308 = vmatpush2.bf16.msra.mxu0 0
        %1309 = vmatprep.subr.bf16.mxu0 0
        %1310 = vmatpush2.bf16.msra.mxu0 0
        %1311 = vmatprep.subr.bf16.mxu0 0
        %1312 = vmatpush2.bf16.msra.mxu0 0
        %1313 = vmatprep.subr.bf16.mxu0 0
        %1314 = vmatpush2.bf16.msra.mxu0 0
        %1315 = vmatprep.mubr.bf16.mxu0 0
        %1316 = vmatmul.mubr.bf16.gmra.mxu0 %v1272
        %v1317 = vpop.f32.mrf.mxu0
        %v1318 = vadd.f32 %v562, %v1317
        %v1319 = vpop.f32.mrf.mxu0
        %v1320 = vpop.f32.mrf.mxu0
        %v1321 = vadd.f32 %v562, %v1320
        %v1322 = vpop.f32.mrf.mxu0
        %1323 = vmatprep.mubr.bf16.mxu0 0
        %1324 = vmatmul.mubr.bf16.gmra.mxu0 %v1275
        %v1325 = vpop.f32.mrf.mxu0
        %v1326 = vadd.f32 %v562, %v1325
        %v1327 = vpop.f32.mrf.mxu0
        %v1328 = vpop.f32.mrf.mxu0
        %v1329 = vadd.f32 %v562, %v1328
        %v1330 = vpop.f32.mrf.mxu0
        %1331 = vmatprep.mubr.bf16.mxu0 0
        %1332 = vmatmul.mubr.bf16.gmra.mxu0 %v1278
        %v1333 = vpop.f32.mrf.mxu0
        %v1334 = vadd.f32 %v562, %v1333
        %v1335 = vpop.f32.mrf.mxu0
        %v1336 = vpop.f32.mrf.mxu0
        %v1337 = vadd.f32 %v562, %v1336
        %v1338 = vpop.f32.mrf.mxu0
        %1339 = vmatprep.mubr.bf16.mxu0 0
        %1340 = vmatmul.mubr.bf16.gmra.mxu0 %v1281
        %v1341 = vpop.f32.mrf.mxu0
        %v1342 = vadd.f32 %v562, %v1341
        %v1343 = vpop.f32.mrf.mxu0
        %v1344 = vpop.f32.mrf.mxu0
        %v1345 = vadd.f32 %v562, %v1344
        %v1346 = vpop.f32.mrf.mxu0
        %1347 = vdwg.mxu0
        %v1348 = vmax.f32 %v1318, 0.0
        %v1349 = vmax.f32 %v1321, 0.0
        %v1350 = vmax.f32 %v1326, 0.0
        %v1351 = vmax.f32 %v1329, 0.0
        %v1352 = vmax.f32 %v1334, 0.0
        %v1353 = vmax.f32 %v1337, 0.0
        %v1354 = vmax.f32 %v1342, 0.0
        %v1355 = vmax.f32 %v1345, 0.0
        %v1356 = vpack.c.bf16 %v1349, %v1348
        %v1357 = vpack.c.bf16 %v1351, %v1350
        %v1358 = vpack.c.bf16 %v1353, %v1352
        %v1359 = vpack.c.bf16 %v1355, %v1354
        %v1364 = vunpack.c.l.b16 %v1356
        %v1365 = vunpack.c.h.b16 %v1356
        %v1366 = vunpack.c.l.b16 %v1357
        %v1367 = vunpack.c.h.b16 %v1357
        %v1368 = vunpack.c.l.b16 %v1358
        %v1369 = vunpack.c.h.b16 %v1358
        %v1370 = vunpack.c.l.b16 %v1359
        %v1371 = vunpack.c.h.b16 %v1359
        %v1372 = vpack.c.b16 %v1364, %v1364
        %v1373 = vpack.c.b16 %v1365, %v1365
        %v1374 = vpack.c.b16 %v1366, %v1366
        %v1375 = vpack.c.b16 %v1367, %v1367
        %v1376 = vpack.c.b16 %v1368, %v1368
        %v1377 = vpack.c.b16 %v1369, %v1369
        %v1378 = vpack.c.b16 %v1370, %v1370
        %v1379 = vpack.c.b16 %v1371, %v1371
        %v1381 = vshrl.u32 %v1372, 16
        %v1383 = vrot.slane %v1381, 7
        %v1384 = vshll.u32 %v1372, 16
        %v1386 = vor.u32 %v1383, %v1384
        %v1387 = vrot.slane %v1383, 4
        %v1389 = vshrl.u32 %v1373, 16
        %v1391 = vrot.slane %v1389, 7
        %v1392 = vshll.u32 %v1373, 16
        %v1394 = vor.u32 %v1391, %v1392
        %v1395 = vrot.slane %v1391, 4
        %v1397 = vshrl.u32 %v1374, 16
        %v1399 = vrot.slane %v1397, 7
        %v1400 = vshll.u32 %v1374, 16
        %v1402 = vor.u32 %v1399, %v1400
        %v1403 = vrot.slane %v1399, 4
        %v1405 = vshrl.u32 %v1375, 16
        %v1407 = vrot.slane %v1405, 7
        %v1408 = vshll.u32 %v1375, 16
        %v1410 = vor.u32 %v1407, %v1408
        %v1411 = vrot.slane %v1407, 4
        %v1413 = vshrl.u32 %v1376, 16
        %v1415 = vrot.slane %v1413, 7
        %v1416 = vshll.u32 %v1376, 16
        %v1418 = vor.u32 %v1415, %v1416
        %v1419 = vrot.slane %v1415, 4
        %v1421 = vshrl.u32 %v1377, 16
        %v1423 = vrot.slane %v1421, 7
        %v1424 = vshll.u32 %v1377, 16
        %v1426 = vor.u32 %v1423, %v1424
        %v1427 = vrot.slane %v1423, 4
        %v1429 = vshrl.u32 %v1378, 16
        %v1431 = vrot.slane %v1429, 7
        %v1432 = vshll.u32 %v1378, 16
        %v1434 = vor.u32 %v1431, %v1432
        %v1435 = vrot.slane %v1431, 4
        %v1437 = vshrl.u32 %v1379, 16
        %v1439 = vrot.slane %v1437, 7
        %v1440 = vshll.u32 %v1379, 16
        %v1442 = vor.u32 %v1439, %v1440
        %v1443 = vrot.slane %v1439, 4
        %s1460 = scalar_lea.vmem [#allocation4], 8
        %v1461 = vld [vmem:[%s1460] sm:$0xf]
        %v1462 = vsel %vm782, %v1386, %v1461
        %1463 = vst [vmem:[%s1460] sm:$0xf] %v1462
        %v1464 = vld [vmem:[%s1460 + $0x4] sm:$0x1]
        %v1465 = vsel %vm485, %v1387, %v1464
        %1466 = vst [vmem:[%s1460 + $0x4] sm:$0x1] %v1465
        %v1467 = vld [vmem:[%s1460 + $0x8] sm:$0xf]
        %v1468 = vsel %vm782, %v1394, %v1467
        %1469 = vst [vmem:[%s1460 + $0x8] sm:$0xf] %v1468
        %v1470 = vld [vmem:[%s1460 + $0xc] sm:$0x1]
        %v1471 = vsel %vm485, %v1395, %v1470
        %1472 = vst [vmem:[%s1460 + $0xc] sm:$0x1] %v1471
        %v1473 = vld [vmem:[%s1460 + $0x10] sm:$0xf]
        %v1474 = vsel %vm782, %v1402, %v1473
        %1475 = vst [vmem:[%s1460 + $0x10] sm:$0xf] %v1474
        %v1476 = vld [vmem:[%s1460 + $0x14] sm:$0x1]
        %v1477 = vsel %vm485, %v1403, %v1476
        %1478 = vst [vmem:[%s1460 + $0x14] sm:$0x1] %v1477
        %v1479 = vld [vmem:[%s1460 + $0x18] sm:$0xf]
        %v1480 = vsel %vm782, %v1410, %v1479
        %1481 = vst [vmem:[%s1460 + $0x18] sm:$0xf] %v1480
        %v1482 = vld [vmem:[%s1460 + $0x1c] sm:$0x1]
        %v1483 = vsel %vm485, %v1411, %v1482
        %1484 = vst [vmem:[%s1460 + $0x1c] sm:$0x1] %v1483
        %v1485 = vld [vmem:[%s1460 + $0x20] sm:$0xf]
        %v1486 = vsel %vm782, %v1418, %v1485
        %1487 = vst [vmem:[%s1460 + $0x20] sm:$0xf] %v1486
        %v1488 = vld [vmem:[%s1460 + $0x24] sm:$0x1]
        %v1489 = vsel %vm485, %v1419, %v1488
        %1490 = vst [vmem:[%s1460 + $0x24] sm:$0x1] %v1489
        %v1491 = vld [vmem:[%s1460 + $0x28] sm:$0xf]
        %v1492 = vsel %vm782, %v1426, %v1491
        %1493 = vst [vmem:[%s1460 + $0x28] sm:$0xf] %v1492
        %v1494 = vld [vmem:[%s1460 + $0x2c] sm:$0x1]
        %v1495 = vsel %vm485, %v1427, %v1494
        %1496 = vst [vmem:[%s1460 + $0x2c] sm:$0x1] %v1495
        %v1497 = vld [vmem:[%s1460 + $0x30] sm:$0xf]
        %v1498 = vsel %vm782, %v1434, %v1497
        %1499 = vst [vmem:[%s1460 + $0x30] sm:$0xf] %v1498
        %v1500 = vld [vmem:[%s1460 + $0x34] sm:$0x1]
        %v1501 = vsel %vm485, %v1435, %v1500
        %1502 = vst [vmem:[%s1460 + $0x34] sm:$0x1] %v1501
        %v1503 = vld [vmem:[%s1460 + $0x38] sm:$0xf]
        %v1504 = vsel %vm782, %v1442, %v1503
        %1505 = vst [vmem:[%s1460 + $0x38] sm:$0xf] %v1504
        %v1506 = vld [vmem:[%s1460 + $0x3c] sm:$0x1]
        %v1507 = vsel %vm485, %v1443, %v1506
        %1508 = vst [vmem:[%s1460 + $0x3c] sm:$0x1] %v1507
        %1509 = vst.msk [vmem:[#allocation5] sm:$0xf] %vm476, 0
        %1510 = vst.msk [vmem:[#allocation5 + $0x4] sm:$0x1] %vm478, 0
        %s1511 = scalar_lea.vmem [#allocation5], 72
        %1512 = vst.msk [vmem:[%s1511] sm:$0xf] %vm476, 0
        %1513 = vst.msk [vmem:[%s1511 + $0x4] sm:$0x1] %vm478, 0
        %v1514 = vld [vmem:[#allocation5] sm:$0x1]
        %v1515 = vsel %vm485, 0, %v1514
        %1516 = vst [vmem:[#allocation5] sm:$0x1] %v1515
        %v1517 = vld [vmem:[#allocation5 + $0x8] sm:$0x1]
        %v1518 = vsel %vm485, 0, %v1517
        %1519 = vst [vmem:[#allocation5 + $0x8] sm:$0x1] %v1518
        %v1520 = vld [vmem:[#allocation5 + $0x10] sm:$0x1]
        %v1521 = vsel %vm485, 0, %v1520
        %1522 = vst [vmem:[#allocation5 + $0x10] sm:$0x1] %v1521
        %v1523 = vld [vmem:[#allocation5 + $0x18] sm:$0x1]
        %v1524 = vsel %vm485, 0, %v1523
        %1525 = vst [vmem:[#allocation5 + $0x18] sm:$0x1] %v1524
        %v1526 = vld [vmem:[#allocation5 + $0x20] sm:$0x1]
        %v1527 = vsel %vm485, 0, %v1526
        %1528 = vst [vmem:[#allocation5 + $0x20] sm:$0x1] %v1527
        %v1529 = vld [vmem:[#allocation5 + $0x28] sm:$0x1]
        %v1530 = vsel %vm485, 0, %v1529
        %1531 = vst [vmem:[#allocation5 + $0x28] sm:$0x1] %v1530
        %v1532 = vld [vmem:[#allocation5 + $0x30] sm:$0x1]
        %v1533 = vsel %vm485, 0, %v1532
        %1534 = vst [vmem:[#allocation5 + $0x30] sm:$0x1] %v1533
        %v1535 = vld [vmem:[#allocation5 + $0x38] sm:$0x1]
        %v1536 = vsel %vm485, 0, %v1535
        %1537 = vst [vmem:[#allocation5 + $0x38] sm:$0x1] %v1536
        %v1538 = vld [vmem:[#allocation5 + $0x40] sm:$0x1]
        %v1539 = vsel %vm485, 0, %v1538
        %1540 = vst [vmem:[#allocation5 + $0x40] sm:$0x1] %v1539
        %v1541 = vld [vmem:[#allocation5 + $0x48] sm:$0x1]
        %v1542 = vsel %vm485, 0, %v1541
        %1543 = vst [vmem:[#allocation5 + $0x48] sm:$0x1] %v1542
        %v1544 = vld [vmem:[#allocation5 + $0x4] sm:$0x1]
        %v1545 = vsel %vm517, 0, %v1544
        %1546 = vst [vmem:[#allocation5 + $0x4] sm:$0x1] %v1545
        %v1547 = vld [vmem:[#allocation5 + $0xc] sm:$0x1]
        %v1548 = vsel %vm517, 0, %v1547
        %1549 = vst [vmem:[#allocation5 + $0xc] sm:$0x1] %v1548
        %v1550 = vld [vmem:[#allocation5 + $0x14] sm:$0x1]
        %v1551 = vsel %vm517, 0, %v1550
        %1552 = vst [vmem:[#allocation5 + $0x14] sm:$0x1] %v1551
        %v1553 = vld [vmem:[#allocation5 + $0x1c] sm:$0x1]
        %v1554 = vsel %vm517, 0, %v1553
        %1555 = vst [vmem:[#allocation5 + $0x1c] sm:$0x1] %v1554
        %v1556 = vld [vmem:[#allocation5 + $0x24] sm:$0x1]
        %v1557 = vsel %vm517, 0, %v1556
        %1558 = vst [vmem:[#allocation5 + $0x24] sm:$0x1] %v1557
        %v1559 = vld [vmem:[#allocation5 + $0x2c] sm:$0x1]
        %v1560 = vsel %vm517, 0, %v1559
        %1561 = vst [vmem:[#allocation5 + $0x2c] sm:$0x1] %v1560
        %v1562 = vld [vmem:[#allocation5 + $0x34] sm:$0x1]
        %v1563 = vsel %vm517, 0, %v1562
        %1564 = vst [vmem:[#allocation5 + $0x34] sm:$0x1] %v1563
        %v1565 = vld [vmem:[#allocation5 + $0x3c] sm:$0x1]
        %v1566 = vsel %vm517, 0, %v1565
        %1567 = vst [vmem:[#allocation5 + $0x3c] sm:$0x1] %v1566
        %v1568 = vld [vmem:[#allocation5 + $0x44] sm:$0x1]
        %v1569 = vsel %vm517, 0, %v1568
        %1570 = vst [vmem:[#allocation5 + $0x44] sm:$0x1] %v1569
        %v1571 = vld [vmem:[#allocation5 + $0x4c] sm:$0x1]
        %v1572 = vsel %vm517, 0, %v1571
        %1573 = vst [vmem:[#allocation5 + $0x4c] sm:$0x1] %v1572
        %v1574 = vld [vmem:[%s471] sm:$0xf]
        %v1575 = vld [vmem:[%s471 + $0x4] sm:$0xf]
        %v1576 = vld [vmem:[%s471 + $0x8] sm:$0xf]
        %v1577 = vld [vmem:[%s471 + $0xc] sm:$0xf]
        %v1578 = vld [vmem:[%s471 + $0x10] sm:$0xf]
        %v1579 = vld [vmem:[%s471 + $0x14] sm:$0xf]
        %v1580 = vld [vmem:[%s471 + $0x18] sm:$0xf]
        %v1581 = vld [vmem:[%s471 + $0x1c] sm:$0xf]
        %v1582 = vld [vmem:[%s4] sm:$0xf]
        %v1583 = vld [vmem:[%s4 + $0x4] sm:$0xf]
        %v1592 = vunpack.c.l.b16 %v1574
        %v1593 = vunpack.c.l.b16 %v1575
        %v1594 = vunpack.c.l.b16 %v1576
        %v1595 = vunpack.c.l.b16 %v1577
        %v1596 = vunpack.c.l.b16 %v1578
        %v1597 = vunpack.c.l.b16 %v1579
        %v1598 = vunpack.c.l.b16 %v1580
        %v1599 = vunpack.c.l.b16 %v1581
        %v1600 = vpack.c.b16 %v1593, %v1592
        %v1601 = vpack.c.b16 %v1595, %v1594
        %v1602 = vpack.c.b16 %v1597, %v1596
        %v1603 = vpack.c.b16 %v1599, %v1598
        %v1606 = vunpack.c.l.b16 %v1582
        %v1607 = vunpack.c.l.b16 %v1583
        %v1608 = vpack.c.b16 %v1607, %v1606
        %v1611 = vsel %vm590, %v1600, 0
        %v1614 = vsel %vm590, %v1601, 0
        %v1617 = vsel %vm590, %v1602, 0
        %v1620 = vsel %vm590, %v1603, 0
        %1622 = vmatprep.subr.bf16.mxu0 0
        %1623 = vmatpush1.bf16.msra.mxu0 0
        %1624 = vmatprep.subr.bf16.mxu0 0
        %1625 = vmatpush1.bf16.msra.mxu0 0
        %1626 = vmatprep.subr.bf16.mxu0 0
        %1627 = vmatpush1.bf16.msra.mxu0 0
        %1628 = vmatprep.subr.bf16.mxu0 0
        %1629 = vmatpush1.bf16.msra.mxu0 0
        %1630 = vmatprep.subr.bf16.mxu0 0
        %1631 = vmatpush1.bf16.msra.mxu0 0
        %1632 = vmatprep.subr.bf16.mxu0 0
        %1633 = vmatpush1.bf16.msra.mxu0 0
        %1634 = vmatprep.subr.bf16.mxu0 0
        %1635 = vmatpush1.bf16.msra.mxu0 0
        %1636 = vmatprep.subr.bf16.mxu0 0
        %1637 = vmatpush1.bf16.msra.mxu0 %v1608
        %1638 = vmatprep.subr.bf16.mxu0 0
        %1639 = vmatpush2.bf16.msra.mxu0 0
        %1640 = vmatprep.subr.bf16.mxu0 0
        %1641 = vmatpush2.bf16.msra.mxu0 0
        %1642 = vmatprep.subr.bf16.mxu0 0
        %1643 = vmatpush2.bf16.msra.mxu0 0
        %1644 = vmatprep.subr.bf16.mxu0 0
        %1645 = vmatpush2.bf16.msra.mxu0 0
        %1646 = vmatprep.subr.bf16.mxu0 0
        %1647 = vmatpush2.bf16.msra.mxu0 0
        %1648 = vmatprep.subr.bf16.mxu0 0
        %1649 = vmatpush2.bf16.msra.mxu0 0
        %1650 = vmatprep.subr.bf16.mxu0 0
        %1651 = vmatpush2.bf16.msra.mxu0 0
        %1652 = vmatprep.subr.bf16.mxu0 0
        %1653 = vmatpush2.bf16.msra.mxu0 0
        %1654 = vmatprep.mubr.bf16.mxu0 0
        %1655 = vmatmul.mubr.bf16.gmra.mxu0 %v1611
        %v1656 = vpop.f32.mrf.mxu0
        %v1657 = vadd.f32 %v562, %v1656
        %v1658 = vpop.f32.mrf.mxu0
        %v1659 = vpop.f32.mrf.mxu0
        %v1660 = vadd.f32 %v562, %v1659
        %v1661 = vpop.f32.mrf.mxu0
        %1662 = vmatprep.mubr.bf16.mxu0 0
        %1663 = vmatmul.mubr.bf16.gmra.mxu0 %v1614
        %v1664 = vpop.f32.mrf.mxu0
        %v1665 = vadd.f32 %v562, %v1664
        %v1666 = vpop.f32.mrf.mxu0
        %v1667 = vpop.f32.mrf.mxu0
        %v1668 = vadd.f32 %v562, %v1667
        %v1669 = vpop.f32.mrf.mxu0
        %1670 = vmatprep.mubr.bf16.mxu0 0
        %1671 = vmatmul.mubr.bf16.gmra.mxu0 %v1617
        %v1672 = vpop.f32.mrf.mxu0
        %v1673 = vadd.f32 %v562, %v1672
        %v1674 = vpop.f32.mrf.mxu0
        %v1675 = vpop.f32.mrf.mxu0
        %v1676 = vadd.f32 %v562, %v1675
        %v1677 = vpop.f32.mrf.mxu0
        %1678 = vmatprep.mubr.bf16.mxu0 0
        %1679 = vmatmul.mubr.bf16.gmra.mxu0 %v1620
        %v1680 = vpop.f32.mrf.mxu0
        %v1681 = vadd.f32 %v562, %v1680
        %v1682 = vpop.f32.mrf.mxu0
        %v1683 = vpop.f32.mrf.mxu0
        %v1684 = vadd.f32 %v562, %v1683
        %v1685 = vpop.f32.mrf.mxu0
        %1686 = vdwg.mxu0
        %v1687 = vmax.f32 %v1657, 0.0
        %v1688 = vmax.f32 %v1660, 0.0
        %v1689 = vmax.f32 %v1665, 0.0
        %v1690 = vmax.f32 %v1668, 0.0
        %v1691 = vmax.f32 %v1673, 0.0
        %v1692 = vmax.f32 %v1676, 0.0
        %v1693 = vmax.f32 %v1681, 0.0
        %v1694 = vmax.f32 %v1684, 0.0
        %v1695 = vpack.c.bf16 %v1688, %v1687
        %v1696 = vpack.c.bf16 %v1690, %v1689
        %v1697 = vpack.c.bf16 %v1692, %v1691
        %v1698 = vpack.c.bf16 %v1694, %v1693
        %v1703 = vunpack.c.l.b16 %v1695
        %v1704 = vunpack.c.h.b16 %v1695
        %v1705 = vunpack.c.l.b16 %v1696
        %v1706 = vunpack.c.h.b16 %v1696
        %v1707 = vunpack.c.l.b16 %v1697
        %v1708 = vunpack.c.h.b16 %v1697
        %v1709 = vunpack.c.l.b16 %v1698
        %v1710 = vunpack.c.h.b16 %v1698
        %v1711 = vpack.c.b16 %v1703, %v1703
        %v1712 = vpack.c.b16 %v1704, %v1704
        %v1713 = vpack.c.b16 %v1705, %v1705
        %v1714 = vpack.c.b16 %v1706, %v1706
        %v1715 = vpack.c.b16 %v1707, %v1707
        %v1716 = vpack.c.b16 %v1708, %v1708
        %v1717 = vpack.c.b16 %v1709, %v1709
        %v1718 = vpack.c.b16 %v1710, %v1710
        %v1720 = vshrl.u32 %v1711, 16
        %v1722 = vrot.slane %v1720, 7
        %v1723 = vshll.u32 %v1711, 16
        %v1725 = vor.u32 %v1722, %v1723
        %v1726 = vrot.slane %v1722, 4
        %v1728 = vshrl.u32 %v1712, 16
        %v1730 = vrot.slane %v1728, 7
        %v1731 = vshll.u32 %v1712, 16
        %v1733 = vor.u32 %v1730, %v1731
        %v1734 = vrot.slane %v1730, 4
        %v1736 = vshrl.u32 %v1713, 16
        %v1738 = vrot.slane %v1736, 7
        %v1739 = vshll.u32 %v1713, 16
        %v1741 = vor.u32 %v1738, %v1739
        %v1742 = vrot.slane %v1738, 4
        %v1744 = vshrl.u32 %v1714, 16
        %v1746 = vrot.slane %v1744, 7
        %v1747 = vshll.u32 %v1714, 16
        %v1749 = vor.u32 %v1746, %v1747
        %v1750 = vrot.slane %v1746, 4
        %v1752 = vshrl.u32 %v1715, 16
        %v1754 = vrot.slane %v1752, 7
        %v1755 = vshll.u32 %v1715, 16
        %v1757 = vor.u32 %v1754, %v1755
        %v1758 = vrot.slane %v1754, 4
        %v1760 = vshrl.u32 %v1716, 16
        %v1762 = vrot.slane %v1760, 7
        %v1763 = vshll.u32 %v1716, 16
        %v1765 = vor.u32 %v1762, %v1763
        %v1766 = vrot.slane %v1762, 4
        %v1768 = vshrl.u32 %v1717, 16
        %v1770 = vrot.slane %v1768, 7
        %v1771 = vshll.u32 %v1717, 16
        %v1773 = vor.u32 %v1770, %v1771
        %v1774 = vrot.slane %v1770, 4
        %v1776 = vshrl.u32 %v1718, 16
        %v1778 = vrot.slane %v1776, 7
        %v1779 = vshll.u32 %v1718, 16
        %v1781 = vor.u32 %v1778, %v1779
        %v1782 = vrot.slane %v1778, 4
        %s1799 = scalar_lea.vmem [#allocation5], 8
        %v1800 = vld [vmem:[%s1799] sm:$0xf]
        %v1801 = vsel %vm782, %v1725, %v1800
        %1802 = vst [vmem:[%s1799] sm:$0xf] %v1801
        %v1803 = vld [vmem:[%s1799 + $0x4] sm:$0x1]
        %v1804 = vsel %vm485, %v1726, %v1803
        %1805 = vst [vmem:[%s1799 + $0x4] sm:$0x1] %v1804
        %v1806 = vld [vmem:[%s1799 + $0x8] sm:$0xf]
        %v1807 = vsel %vm782, %v1733, %v1806
        %1808 = vst [vmem:[%s1799 + $0x8] sm:$0xf] %v1807
        %v1809 = vld [vmem:[%s1799 + $0xc] sm:$0x1]
        %v1810 = vsel %vm485, %v1734, %v1809
        %1811 = vst [vmem:[%s1799 + $0xc] sm:$0x1] %v1810
        %v1812 = vld [vmem:[%s1799 + $0x10] sm:$0xf]
        %v1813 = vsel %vm782, %v1741, %v1812
        %1814 = vst [vmem:[%s1799 + $0x10] sm:$0xf] %v1813
        %v1815 = vld [vmem:[%s1799 + $0x14] sm:$0x1]
        %v1816 = vsel %vm485, %v1742, %v1815
        %1817 = vst [vmem:[%s1799 + $0x14] sm:$0x1] %v1816
        %v1818 = vld [vmem:[%s1799 + $0x18] sm:$0xf]
        %v1819 = vsel %vm782, %v1749, %v1818
        %1820 = vst [vmem:[%s1799 + $0x18] sm:$0xf] %v1819
        %v1821 = vld [vmem:[%s1799 + $0x1c] sm:$0x1]
        %v1822 = vsel %vm485, %v1750, %v1821
        %1823 = vst [vmem:[%s1799 + $0x1c] sm:$0x1] %v1822
        %v1824 = vld [vmem:[%s1799 + $0x20] sm:$0xf]
        %v1825 = vsel %vm782, %v1757, %v1824
        %1826 = vst [vmem:[%s1799 + $0x20] sm:$0xf] %v1825
        %v1827 = vld [vmem:[%s1799 + $0x24] sm:$0x1]
        %v1828 = vsel %vm485, %v1758, %v1827
        %1829 = vst [vmem:[%s1799 + $0x24] sm:$0x1] %v1828
        %v1830 = vld [vmem:[%s1799 + $0x28] sm:$0xf]
        %v1831 = vsel %vm782, %v1765, %v1830
        %1832 = vst [vmem:[%s1799 + $0x28] sm:$0xf] %v1831
        %v1833 = vld [vmem:[%s1799 + $0x2c] sm:$0x1]
        %v1834 = vsel %vm485, %v1766, %v1833
        %1835 = vst [vmem:[%s1799 + $0x2c] sm:$0x1] %v1834
        %v1836 = vld [vmem:[%s1799 + $0x30] sm:$0xf]
        %v1837 = vsel %vm782, %v1773, %v1836
        %1838 = vst [vmem:[%s1799 + $0x30] sm:$0xf] %v1837
        %v1839 = vld [vmem:[%s1799 + $0x34] sm:$0x1]
        %v1840 = vsel %vm485, %v1774, %v1839
        %1841 = vst [vmem:[%s1799 + $0x34] sm:$0x1] %v1840
        %v1842 = vld [vmem:[%s1799 + $0x38] sm:$0xf]
        %v1843 = vsel %vm782, %v1781, %v1842
        %1844 = vst [vmem:[%s1799 + $0x38] sm:$0xf] %v1843
        %v1845 = vld [vmem:[%s1799 + $0x3c] sm:$0x1]
        %v1846 = vsel %vm485, %v1782, %v1845
        %1847 = vst [vmem:[%s1799 + $0x3c] sm:$0x1] %v1846
        %v1848 = vld [vmem:[#allocation5] sm:$0xf]
        %v1849 = vld [vmem:[#allocation5 + $0x8] sm:$0xf]
        %v1850 = vld [vmem:[#allocation5 + $0x10] sm:$0xf]
        %v1851 = vld [vmem:[#allocation5 + $0x18] sm:$0xf]
        %v1852 = vld [vmem:[#allocation5 + $0x20] sm:$0xf]
        %v1853 = vld [vmem:[#allocation5 + $0x28] sm:$0xf]
        %v1854 = vld [vmem:[#allocation5 + $0x30] sm:$0xf]
        %v1855 = vld [vmem:[#allocation5 + $0x38] sm:$0xf]
        %v1856 = vld [vmem:[%s6] sm:$0xf]
        %v1857 = vld [vmem:[#allocation4] sm:$0xf]
        %v1858 = vld [vmem:[#allocation4 + $0x4] sm:$0x1]
        %v1859 = vld [vmem:[#allocation4 + $0x8] sm:$0xf]
        %v1860 = vld [vmem:[#allocation4 + $0xc] sm:$0x1]
        %v1861 = vld [vmem:[#allocation4 + $0x10] sm:$0xf]
        %v1862 = vld [vmem:[#allocation4 + $0x14] sm:$0x1]
        %v1863 = vld [vmem:[#allocation4 + $0x18] sm:$0xf]
        %v1864 = vld [vmem:[#allocation4 + $0x1c] sm:$0x1]
        %v1865 = vld [vmem:[#allocation4 + $0x20] sm:$0xf]
        %v1866 = vld [vmem:[#allocation4 + $0x24] sm:$0x1]
        %v1867 = vld [vmem:[#allocation4 + $0x28] sm:$0xf]
        %v1868 = vld [vmem:[#allocation4 + $0x2c] sm:$0x1]
        %v1869 = vld [vmem:[#allocation4 + $0x30] sm:$0xf]
        %v1870 = vld [vmem:[#allocation4 + $0x34] sm:$0x1]
        %v1871 = vld [vmem:[#allocation4 + $0x38] sm:$0xf]
        %v1872 = vld [vmem:[#allocation4 + $0x3c] sm:$0x1]
        %vm1873 = vsmask.f32 3328
        %vm1874 = vsmask.f32 7440
        %vm1875 = vmor %vm1873, %vm1874
        %v1877 = vshrl.u32 %v1857, 16
        %v1879 = vrot.slane %v1877, 4
        %v1880 = vshll.u32 %v1857, 16
        %v1882 = vrot.slane %v1880, 5
        %v1883 = vor.u32 %v1879, %v1882
        %v1884 = vrot.slane %v1883, 4
        %v1886 = vshll.u32 %v1858, 16
        %v1888 = vrot.slane %v1886, 5
        %v1889 = vsel %vm1875, %v1884, %v1888
        %v1891 = vshrl.u32 %v1859, 16
        %v1893 = vrot.slane %v1891, 4
        %v1894 = vshll.u32 %v1859, 16
        %v1896 = vrot.slane %v1894, 5
        %v1897 = vor.u32 %v1893, %v1896
        %v1898 = vrot.slane %v1897, 4
        %v1900 = vshll.u32 %v1860, 16
        %v1902 = vrot.slane %v1900, 5
        %v1903 = vsel %vm1875, %v1898, %v1902
        %v1905 = vshrl.u32 %v1861, 16
        %v1907 = vrot.slane %v1905, 4
        %v1908 = vshll.u32 %v1861, 16
        %v1910 = vrot.slane %v1908, 5
        %v1911 = vor.u32 %v1907, %v1910
        %v1912 = vrot.slane %v1911, 4
        %v1914 = vshll.u32 %v1862, 16
        %v1916 = vrot.slane %v1914, 5
        %v1917 = vsel %vm1875, %v1912, %v1916
        %v1919 = vshrl.u32 %v1863, 16
        %v1921 = vrot.slane %v1919, 4
        %v1922 = vshll.u32 %v1863, 16
        %v1924 = vrot.slane %v1922, 5
        %v1925 = vor.u32 %v1921, %v1924
        %v1926 = vrot.slane %v1925, 4
        %v1928 = vshll.u32 %v1864, 16
        %v1930 = vrot.slane %v1928, 5
        %v1931 = vsel %vm1875, %v1926, %v1930
        %v1933 = vshrl.u32 %v1865, 16
        %v1935 = vrot.slane %v1933, 4
        %v1936 = vshll.u32 %v1865, 16
        %v1938 = vrot.slane %v1936, 5
        %v1939 = vor.u32 %v1935, %v1938
        %v1940 = vrot.slane %v1939, 4
        %v1942 = vshll.u32 %v1866, 16
        %v1944 = vrot.slane %v1942, 5
        %v1945 = vsel %vm1875, %v1940, %v1944
        %v1947 = vshrl.u32 %v1867, 16
        %v1949 = vrot.slane %v1947, 4
        %v1950 = vshll.u32 %v1867, 16
        %v1952 = vrot.slane %v1950, 5
        %v1953 = vor.u32 %v1949, %v1952
        %v1954 = vrot.slane %v1953, 4
        %v1956 = vshll.u32 %v1868, 16
        %v1958 = vrot.slane %v1956, 5
        %v1959 = vsel %vm1875, %v1954, %v1958
        %v1961 = vshrl.u32 %v1869, 16
        %v1963 = vrot.slane %v1961, 4
        %v1964 = vshll.u32 %v1869, 16
        %v1966 = vrot.slane %v1964, 5
        %v1967 = vor.u32 %v1963, %v1966
        %v1968 = vrot.slane %v1967, 4
        %v1970 = vshll.u32 %v1870, 16
        %v1972 = vrot.slane %v1970, 5
        %v1973 = vsel %vm1875, %v1968, %v1972
        %v1975 = vshrl.u32 %v1871, 16
        %v1977 = vrot.slane %v1975, 4
        %v1978 = vshll.u32 %v1871, 16
        %v1980 = vrot.slane %v1978, 5
        %v1981 = vor.u32 %v1977, %v1980
        %v1982 = vrot.slane %v1981, 4
        %v1984 = vshll.u32 %v1872, 16
        %v1986 = vrot.slane %v1984, 5
        %v1987 = vsel %vm1875, %v1982, %v1986
        %s1988 = scalar_lea.vmem %s6, 4
        %v1989 = vld [vmem:[%s1988] sm:$0xf]
        %v1990 = vunpack.c.l.b16 %v1889
        %v1991 = vunpack.c.l.b16 %v1903
        %v1992 = vunpack.c.l.b16 %v1917
        %v1993 = vunpack.c.l.b16 %v1931
        %v1994 = vunpack.c.l.b16 %v1945
        %v1995 = vunpack.c.l.b16 %v1959
        %v1996 = vunpack.c.l.b16 %v1973
        %v1997 = vunpack.c.l.b16 %v1987
        %v1998 = vpack.c.b16 %v1991, %v1990
        %v1999 = vpack.c.b16 %v1993, %v1992
        %v2000 = vpack.c.b16 %v1995, %v1994
        %v2001 = vpack.c.b16 %v1997, %v1996
        %vm2002 = vcmask 64512
        %v2004 = vsel %vm2002, %v1998, 0
        %v2007 = vsel %vm2002, %v1999, 0
        %v2010 = vsel %vm2002, %v2000, 0
        %v2013 = vsel %vm2002, %v2001, 0
        %vm2015 = vcmask 1043456
        %v2017 = vsel %vm2015, %v1989, 0
        %2019 = vmatprep.subr.bf16.mxu0 0
        %2020 = vmatpush1.bf16.msra.mxu0 0
        %2021 = vmatprep.subr.bf16.mxu0 0
        %2022 = vmatpush1.bf16.msra.mxu0 0
        %2023 = vmatprep.subr.bf16.mxu0 0
        %2024 = vmatpush1.bf16.msra.mxu0 0
        %2025 = vmatprep.subr.bf16.mxu0 0
        %2026 = vmatpush1.bf16.msra.mxu0 0
        %2027 = vmatprep.subr.bf16.mxu0 0
        %2028 = vmatpush1.bf16.msra.mxu0 0
        %2029 = vmatprep.subr.bf16.mxu0 0
        %2030 = vmatpush1.bf16.msra.mxu0 0
        %2031 = vmatprep.subr.bf16.mxu0 0
        %2032 = vmatpush1.bf16.msra.mxu0 0
        %2033 = vmatprep.subr.bf16.mxu0 0
        %2034 = vmatpush1.bf16.msra.mxu0 %v2017
        %2035 = vmatprep.subr.bf16.mxu0 0
        %2036 = vmatpush2.bf16.msra.mxu0 0
        %2037 = vmatprep.subr.bf16.mxu0 0
        %2038 = vmatpush2.bf16.msra.mxu0 0
        %2039 = vmatprep.subr.bf16.mxu0 0
        %2040 = vmatpush2.bf16.msra.mxu0 0
        %2041 = vmatprep.subr.bf16.mxu0 0
        %2042 = vmatpush2.bf16.msra.mxu0 0
        %2043 = vmatprep.subr.bf16.mxu0 0
        %2044 = vmatpush2.bf16.msra.mxu0 0
        %2045 = vmatprep.subr.bf16.mxu0 0
        %2046 = vmatpush2.bf16.msra.mxu0 0
        %2047 = vmatprep.subr.bf16.mxu0 0
        %2048 = vmatpush2.bf16.msra.mxu0 0
        %2049 = vmatprep.subr.bf16.mxu0 0
        %2050 = vmatpush2.bf16.msra.mxu0 0
        %2051 = vmatprep.mubr.bf16.mxu0 0
        %2052 = vmatmul.mubr.bf16.gmra.mxu0 %v2004
        %v2053 = vpop.f32.mrf.mxu0
        %v2054 = vadd.f32 0.0, %v2053
        %v2055 = vpop.f32.mrf.mxu0
        %v2056 = vpop.f32.mrf.mxu0
        %v2057 = vadd.f32 0.0, %v2056
        %v2058 = vpop.f32.mrf.mxu0
        %2059 = vmatprep.mubr.bf16.mxu0 0
        %2060 = vmatmul.mubr.bf16.gmra.mxu0 %v2007
        %v2061 = vpop.f32.mrf.mxu0
        %v2062 = vadd.f32 0.0, %v2061
        %v2063 = vpop.f32.mrf.mxu0
        %v2064 = vpop.f32.mrf.mxu0
        %v2065 = vadd.f32 0.0, %v2064
        %v2066 = vpop.f32.mrf.mxu0
        %2067 = vmatprep.mubr.bf16.mxu0 0
        %2068 = vmatmul.mubr.bf16.gmra.mxu0 %v2010
        %v2069 = vpop.f32.mrf.mxu0
        %v2070 = vadd.f32 0.0, %v2069
        %v2071 = vpop.f32.mrf.mxu0
        %v2072 = vpop.f32.mrf.mxu0
        %v2073 = vadd.f32 0.0, %v2072
        %v2074 = vpop.f32.mrf.mxu0
        %2075 = vmatprep.mubr.bf16.mxu0 0
        %2076 = vmatmul.mubr.bf16.gmra.mxu0 %v2013
        %v2077 = vpop.f32.mrf.mxu0
        %v2078 = vadd.f32 0.0, %v2077
        %v2079 = vpop.f32.mrf.mxu0
        %v2080 = vpop.f32.mrf.mxu0
        %v2081 = vadd.f32 0.0, %v2080
        %v2082 = vpop.f32.mrf.mxu0
        %2083 = vdwg.mxu0
        %v2092 = vunpack.c.l.b16 %v1848
        %v2093 = vunpack.c.l.b16 %v1849
        %v2094 = vunpack.c.l.b16 %v1850
        %v2095 = vunpack.c.l.b16 %v1851
        %v2096 = vunpack.c.l.b16 %v1852
        %v2097 = vunpack.c.l.b16 %v1853
        %v2098 = vunpack.c.l.b16 %v1854
        %v2099 = vunpack.c.l.b16 %v1855
        %v2100 = vpack.c.b16 %v2093, %v2092
        %v2101 = vpack.c.b16 %v2095, %v2094
        %v2102 = vpack.c.b16 %v2097, %v2096
        %v2103 = vpack.c.b16 %v2099, %v2098
        %v2105 = vsel %vm2002, %v2100, 0
        %v2108 = vsel %vm2002, %v2101, 0
        %v2111 = vsel %vm2002, %v2102, 0
        %v2114 = vsel %vm2002, %v2103, 0
        %v2117 = vsel %vm2015, %v1856, 0
        %2119 = vmatprep.subr.bf16.mxu0 0
        %2120 = vmatpush1.bf16.msra.mxu0 0
        %2121 = vmatprep.subr.bf16.mxu0 0
        %2122 = vmatpush1.bf16.msra.mxu0 0
        %2123 = vmatprep.subr.bf16.mxu0 0
        %2124 = vmatpush1.bf16.msra.mxu0 0
        %2125 = vmatprep.subr.bf16.mxu0 0
        %2126 = vmatpush1.bf16.msra.mxu0 0
        %2127 = vmatprep.subr.bf16.mxu0 0
        %2128 = vmatpush1.bf16.msra.mxu0 0
        %2129 = vmatprep.subr.bf16.mxu0 0
        %2130 = vmatpush1.bf16.msra.mxu0 0
        %2131 = vmatprep.subr.bf16.mxu0 0
        %2132 = vmatpush1.bf16.msra.mxu0 0
        %2133 = vmatprep.subr.bf16.mxu0 0
        %2134 = vmatpush1.bf16.msra.mxu0 %v2117
        %2135 = vmatprep.subr.bf16.mxu0 0
        %2136 = vmatpush2.bf16.msra.mxu0 0
        %2137 = vmatprep.subr.bf16.mxu0 0
        %2138 = vmatpush2.bf16.msra.mxu0 0
        %2139 = vmatprep.subr.bf16.mxu0 0
        %2140 = vmatpush2.bf16.msra.mxu0 0
        %2141 = vmatprep.subr.bf16.mxu0 0
        %2142 = vmatpush2.bf16.msra.mxu0 0
        %2143 = vmatprep.subr.bf16.mxu0 0
        %2144 = vmatpush2.bf16.msra.mxu0 0
        %2145 = vmatprep.subr.bf16.mxu0 0
        %2146 = vmatpush2.bf16.msra.mxu0 0
        %2147 = vmatprep.subr.bf16.mxu0 0
        %2148 = vmatpush2.bf16.msra.mxu0 0
        %2149 = vmatprep.subr.bf16.mxu0 0
        %2150 = vmatpush2.bf16.msra.mxu0 0
        %2151 = vmatprep.mubr.bf16.mxu0 0
        %2152 = vmatmul.mubr.bf16.gmra.mxu0 %v2105
        %v2153 = vpop.f32.mrf.mxu0
        %v2154 = vadd.f32 %v2054, %v2153
        %v2155 = vpop.f32.mrf.mxu0
        %v2156 = vpop.f32.mrf.mxu0
        %v2157 = vadd.f32 %v2057, %v2156
        %v2158 = vpop.f32.mrf.mxu0
        %2159 = vmatprep.mubr.bf16.mxu0 0
        %2160 = vmatmul.mubr.bf16.gmra.mxu0 %v2108
        %v2161 = vpop.f32.mrf.mxu0
        %v2162 = vadd.f32 %v2062, %v2161
        %v2163 = vpop.f32.mrf.mxu0
        %v2164 = vpop.f32.mrf.mxu0
        %v2165 = vadd.f32 %v2065, %v2164
        %v2166 = vpop.f32.mrf.mxu0
        %2167 = vmatprep.mubr.bf16.mxu0 0
        %2168 = vmatmul.mubr.bf16.gmra.mxu0 %v2111
        %v2169 = vpop.f32.mrf.mxu0
        %v2170 = vadd.f32 %v2070, %v2169
        %v2171 = vpop.f32.mrf.mxu0
        %v2172 = vpop.f32.mrf.mxu0
        %v2173 = vadd.f32 %v2073, %v2172
        %v2174 = vpop.f32.mrf.mxu0
        %2175 = vmatprep.mubr.bf16.mxu0 0
        %2176 = vmatmul.mubr.bf16.gmra.mxu0 %v2114
        %v2177 = vpop.f32.mrf.mxu0
        %v2178 = vadd.f32 %v2078, %v2177
        %v2179 = vpop.f32.mrf.mxu0
        %v2180 = vpop.f32.mrf.mxu0
        %v2181 = vadd.f32 %v2081, %v2180
        %v2182 = vpop.f32.mrf.mxu0
        %2183 = vdwg.mxu0
        %v2184 = vld [vmem:[#allocation5] sm:$0xf]
        %v2185 = vld [vmem:[#allocation5 + $0x4] sm:$0x1]
        %v2186 = vld [vmem:[#allocation5 + $0x8] sm:$0xf]
        %v2187 = vld [vmem:[#allocation5 + $0xc] sm:$0x1]
        %v2188 = vld [vmem:[#allocation5 + $0x10] sm:$0xf]
        %v2189 = vld [vmem:[#allocation5 + $0x14] sm:$0x1]
        %v2190 = vld [vmem:[#allocation5 + $0x18] sm:$0xf]
        %v2191 = vld [vmem:[#allocation5 + $0x1c] sm:$0x1]
        %v2192 = vld [vmem:[#allocation5 + $0x20] sm:$0xf]
        %v2193 = vld [vmem:[#allocation5 + $0x24] sm:$0x1]
        %v2194 = vld [vmem:[#allocation5 + $0x28] sm:$0xf]
        %v2195 = vld [vmem:[#allocation5 + $0x2c] sm:$0x1]
        %v2196 = vld [vmem:[#allocation5 + $0x30] sm:$0xf]
        %v2197 = vld [vmem:[#allocation5 + $0x34] sm:$0x1]
        %v2198 = vld [vmem:[#allocation5 + $0x38] sm:$0xf]
        %v2199 = vld [vmem:[#allocation5 + $0x3c] sm:$0x1]
        %v2201 = vshrl.u32 %v2184, 16
        %v2203 = vrot.slane %v2201, 4
        %v2204 = vshll.u32 %v2184, 16
        %v2206 = vrot.slane %v2204, 5
        %v2207 = vor.u32 %v2203, %v2206
        %v2208 = vrot.slane %v2207, 4
        %v2210 = vshll.u32 %v2185, 16
        %v2212 = vrot.slane %v2210, 5
        %v2213 = vsel %vm1875, %v2208, %v2212
        %v2215 = vshrl.u32 %v2186, 16
        %v2217 = vrot.slane %v2215, 4
        %v2218 = vshll.u32 %v2186, 16
        %v2220 = vrot.slane %v2218, 5
        %v2221 = vor.u32 %v2217, %v2220
        %v2222 = vrot.slane %v2221, 4
        %v2224 = vshll.u32 %v2187, 16
        %v2226 = vrot.slane %v2224, 5
        %v2227 = vsel %vm1875, %v2222, %v2226
        %v2229 = vshrl.u32 %v2188, 16
        %v2231 = vrot.slane %v2229, 4
        %v2232 = vshll.u32 %v2188, 16
        %v2234 = vrot.slane %v2232, 5
        %v2235 = vor.u32 %v2231, %v2234
        %v2236 = vrot.slane %v2235, 4
        %v2238 = vshll.u32 %v2189, 16
        %v2240 = vrot.slane %v2238, 5
        %v2241 = vsel %vm1875, %v2236, %v2240
        %v2243 = vshrl.u32 %v2190, 16
        %v2245 = vrot.slane %v2243, 4
        %v2246 = vshll.u32 %v2190, 16
        %v2248 = vrot.slane %v2246, 5
        %v2249 = vor.u32 %v2245, %v2248
        %v2250 = vrot.slane %v2249, 4
        %v2252 = vshll.u32 %v2191, 16
        %v2254 = vrot.slane %v2252, 5
        %v2255 = vsel %vm1875, %v2250, %v2254
        %v2257 = vshrl.u32 %v2192, 16
        %v2259 = vrot.slane %v2257, 4
        %v2260 = vshll.u32 %v2192, 16
        %v2262 = vrot.slane %v2260, 5
        %v2263 = vor.u32 %v2259, %v2262
        %v2264 = vrot.slane %v2263, 4
        %v2266 = vshll.u32 %v2193, 16
        %v2268 = vrot.slane %v2266, 5
        %v2269 = vsel %vm1875, %v2264, %v2268
        %v2271 = vshrl.u32 %v2194, 16
        %v2273 = vrot.slane %v2271, 4
        %v2274 = vshll.u32 %v2194, 16
        %v2276 = vrot.slane %v2274, 5
        %v2277 = vor.u32 %v2273, %v2276
        %v2278 = vrot.slane %v2277, 4
        %v2280 = vshll.u32 %v2195, 16
        %v2282 = vrot.slane %v2280, 5
        %v2283 = vsel %vm1875, %v2278, %v2282
        %v2285 = vshrl.u32 %v2196, 16
        %v2287 = vrot.slane %v2285, 4
        %v2288 = vshll.u32 %v2196, 16
        %v2290 = vrot.slane %v2288, 5
        %v2291 = vor.u32 %v2287, %v2290
        %v2292 = vrot.slane %v2291, 4
        %v2294 = vshll.u32 %v2197, 16
        %v2296 = vrot.slane %v2294, 5
        %v2297 = vsel %vm1875, %v2292, %v2296
        %v2299 = vshrl.u32 %v2198, 16
        %v2301 = vrot.slane %v2299, 4
        %v2302 = vshll.u32 %v2198, 16
        %v2304 = vrot.slane %v2302, 5
        %v2305 = vor.u32 %v2301, %v2304
        %v2306 = vrot.slane %v2305, 4
        %v2308 = vshll.u32 %v2199, 16
        %v2310 = vrot.slane %v2308, 5
        %v2311 = vsel %vm1875, %v2306, %v2310
        %s2312 = scalar_lea.vmem %s6, 8
        %v2313 = vld [vmem:[%s2312] sm:$0xf]
        %v2314 = vunpack.c.l.b16 %v2213
        %v2315 = vunpack.c.l.b16 %v2227
        %v2316 = vunpack.c.l.b16 %v2241
        %v2317 = vunpack.c.l.b16 %v2255
        %v2318 = vunpack.c.l.b16 %v2269
        %v2319 = vunpack.c.l.b16 %v2283
        %v2320 = vunpack.c.l.b16 %v2297
        %v2321 = vunpack.c.l.b16 %v2311
        %v2322 = vpack.c.b16 %v2315, %v2314
        %v2323 = vpack.c.b16 %v2317, %v2316
        %v2324 = vpack.c.b16 %v2319, %v2318
        %v2325 = vpack.c.b16 %v2321, %v2320
        %v2327 = vsel %vm2002, %v2322, 0
        %v2330 = vsel %vm2002, %v2323, 0
        %v2333 = vsel %vm2002, %v2324, 0
        %v2336 = vsel %vm2002, %v2325, 0
        %v2339 = vsel %vm2015, %v2313, 0
        %2341 = vmatprep.subr.bf16.mxu0 0
        %2342 = vmatpush1.bf16.msra.mxu0 0
        %2343 = vmatprep.subr.bf16.mxu0 0
        %2344 = vmatpush1.bf16.msra.mxu0 0
        %2345 = vmatprep.subr.bf16.mxu0 0
        %2346 = vmatpush1.bf16.msra.mxu0 0
        %2347 = vmatprep.subr.bf16.mxu0 0
        %2348 = vmatpush1.bf16.msra.mxu0 0
        %2349 = vmatprep.subr.bf16.mxu0 0
        %2350 = vmatpush1.bf16.msra.mxu0 0
        %2351 = vmatprep.subr.bf16.mxu0 0
        %2352 = vmatpush1.bf16.msra.mxu0 0
        %2353 = vmatprep.subr.bf16.mxu0 0
        %2354 = vmatpush1.bf16.msra.mxu0 0
        %2355 = vmatprep.subr.bf16.mxu0 0
        %2356 = vmatpush1.bf16.msra.mxu0 %v2339
        %2357 = vmatprep.subr.bf16.mxu0 0
        %2358 = vmatpush2.bf16.msra.mxu0 0
        %2359 = vmatprep.subr.bf16.mxu0 0
        %2360 = vmatpush2.bf16.msra.mxu0 0
        %2361 = vmatprep.subr.bf16.mxu0 0
        %2362 = vmatpush2.bf16.msra.mxu0 0
        %2363 = vmatprep.subr.bf16.mxu0 0
        %2364 = vmatpush2.bf16.msra.mxu0 0
        %2365 = vmatprep.subr.bf16.mxu0 0
        %2366 = vmatpush2.bf16.msra.mxu0 0
        %2367 = vmatprep.subr.bf16.mxu0 0
        %2368 = vmatpush2.bf16.msra.mxu0 0
        %2369 = vmatprep.subr.bf16.mxu0 0
        %2370 = vmatpush2.bf16.msra.mxu0 0
        %2371 = vmatprep.subr.bf16.mxu0 0
        %2372 = vmatpush2.bf16.msra.mxu0 0
        %2373 = vmatprep.mubr.bf16.mxu0 0
        %2374 = vmatmul.mubr.bf16.gmra.mxu0 %v2327
        %v2375 = vpop.f32.mrf.mxu0
        %v2376 = vadd.f32 0.0, %v2375
        %v2377 = vpop.f32.mrf.mxu0
        %v2378 = vpop.f32.mrf.mxu0
        %v2379 = vadd.f32 0.0, %v2378
        %v2380 = vpop.f32.mrf.mxu0
        %2381 = vmatprep.mubr.bf16.mxu0 0
        %2382 = vmatmul.mubr.bf16.gmra.mxu0 %v2330
        %v2383 = vpop.f32.mrf.mxu0
        %v2384 = vadd.f32 0.0, %v2383
        %v2385 = vpop.f32.mrf.mxu0
        %v2386 = vpop.f32.mrf.mxu0
        %v2387 = vadd.f32 0.0, %v2386
        %v2388 = vpop.f32.mrf.mxu0
        %2389 = vmatprep.mubr.bf16.mxu0 0
        %2390 = vmatmul.mubr.bf16.gmra.mxu0 %v2333
        %v2391 = vpop.f32.mrf.mxu0
        %v2392 = vadd.f32 0.0, %v2391
        %v2393 = vpop.f32.mrf.mxu0
        %v2394 = vpop.f32.mrf.mxu0
        %v2395 = vadd.f32 0.0, %v2394
        %v2396 = vpop.f32.mrf.mxu0
        %2397 = vmatprep.mubr.bf16.mxu0 0
        %2398 = vmatmul.mubr.bf16.gmra.mxu0 %v2336
        %v2399 = vpop.f32.mrf.mxu0
        %v2400 = vadd.f32 0.0, %v2399
        %v2401 = vpop.f32.mrf.mxu0
        %v2402 = vpop.f32.mrf.mxu0
        %v2403 = vadd.f32 0.0, %v2402
        %v2404 = vpop.f32.mrf.mxu0
        %2405 = vdwg.mxu0
        %v2406 = vadd.f32 %v2154, %v2376
        %v2407 = vadd.f32 %v2157, %v2379
        %v2408 = vadd.f32 %v2162, %v2384
        %v2409 = vadd.f32 %v2165, %v2387
        %v2410 = vadd.f32 %v2170, %v2392
        %v2411 = vadd.f32 %v2173, %v2395
        %v2412 = vadd.f32 %v2178, %v2400
        %v2413 = vadd.f32 %v2181, %v2403
        %v2414 = vld [vmem:[%s1121] sm:$0xf]
        %v2415 = vld [vmem:[%s1121 + $0x8] sm:$0xf]
        %v2416 = vld [vmem:[%s1121 + $0x10] sm:$0xf]
        %v2417 = vld [vmem:[%s1121 + $0x18] sm:$0xf]
        %v2418 = vld [vmem:[%s1121 + $0x20] sm:$0xf]
        %v2419 = vld [vmem:[%s1121 + $0x28] sm:$0xf]
        %v2420 = vld [vmem:[%s1121 + $0x30] sm:$0xf]
        %v2421 = vld [vmem:[%s1121 + $0x38] sm:$0xf]
        %s2422 = scalar_lea.vmem %s6, 12
        %v2423 = vld [vmem:[%s2422] sm:$0xf]
        %v2432 = vunpack.c.l.b16 %v2414
        %v2433 = vunpack.c.l.b16 %v2415
        %v2434 = vunpack.c.l.b16 %v2416
        %v2435 = vunpack.c.l.b16 %v2417
        %v2436 = vunpack.c.l.b16 %v2418
        %v2437 = vunpack.c.l.b16 %v2419
        %v2438 = vunpack.c.l.b16 %v2420
        %v2439 = vunpack.c.l.b16 %v2421
        %v2440 = vpack.c.b16 %v2433, %v2432
        %v2441 = vpack.c.b16 %v2435, %v2434
        %v2442 = vpack.c.b16 %v2437, %v2436
        %v2443 = vpack.c.b16 %v2439, %v2438
        %v2445 = vsel %vm2002, %v2440, 0
        %v2448 = vsel %vm2002, %v2441, 0
        %v2451 = vsel %vm2002, %v2442, 0
        %v2454 = vsel %vm2002, %v2443, 0
        %v2457 = vsel %vm2015, %v2423, 0
        %2459 = vmatprep.subr.bf16.mxu0 0
        %2460 = vmatpush1.bf16.msra.mxu0 0
        %2461 = vmatprep.subr.bf16.mxu0 0
        %2462 = vmatpush1.bf16.msra.mxu0 0
        %2463 = vmatprep.subr.bf16.mxu0 0
        %2464 = vmatpush1.bf16.msra.mxu0 0
        %2465 = vmatprep.subr.bf16.mxu0 0
        %2466 = vmatpush1.bf16.msra.mxu0 0
        %2467 = vmatprep.subr.bf16.mxu0 0
        %2468 = vmatpush1.bf16.msra.mxu0 0
        %2469 = vmatprep.subr.bf16.mxu0 0
        %2470 = vmatpush1.bf16.msra.mxu0 0
        %2471 = vmatprep.subr.bf16.mxu0 0
        %2472 = vmatpush1.bf16.msra.mxu0 0
        %2473 = vmatprep.subr.bf16.mxu0 0
        %2474 = vmatpush1.bf16.msra.mxu0 %v2457
        %2475 = vmatprep.subr.bf16.mxu0 0
        %2476 = vmatpush2.bf16.msra.mxu0 0
        %2477 = vmatprep.subr.bf16.mxu0 0
        %2478 = vmatpush2.bf16.msra.mxu0 0
        %2479 = vmatprep.subr.bf16.mxu0 0
        %2480 = vmatpush2.bf16.msra.mxu0 0
        %2481 = vmatprep.subr.bf16.mxu0 0
        %2482 = vmatpush2.bf16.msra.mxu0 0
        %2483 = vmatprep.subr.bf16.mxu0 0
        %2484 = vmatpush2.bf16.msra.mxu0 0
        %2485 = vmatprep.subr.bf16.mxu0 0
        %2486 = vmatpush2.bf16.msra.mxu0 0
        %2487 = vmatprep.subr.bf16.mxu0 0
        %2488 = vmatpush2.bf16.msra.mxu0 0
        %2489 = vmatprep.subr.bf16.mxu0 0
        %2490 = vmatpush2.bf16.msra.mxu0 0
        %2491 = vmatprep.mubr.bf16.mxu0 0
        %2492 = vmatmul.mubr.bf16.gmra.mxu0 %v2445
        %v2493 = vpop.f32.mrf.mxu0
        %v2494 = vadd.f32 0.0, %v2493
        %v2495 = vpop.f32.mrf.mxu0
        %v2496 = vpop.f32.mrf.mxu0
        %v2497 = vadd.f32 0.0, %v2496
        %v2498 = vpop.f32.mrf.mxu0
        %2499 = vmatprep.mubr.bf16.mxu0 0
        %2500 = vmatmul.mubr.bf16.gmra.mxu0 %v2448
        %v2501 = vpop.f32.mrf.mxu0
        %v2502 = vadd.f32 0.0, %v2501
        %v2503 = vpop.f32.mrf.mxu0
        %v2504 = vpop.f32.mrf.mxu0
        %v2505 = vadd.f32 0.0, %v2504
        %v2506 = vpop.f32.mrf.mxu0
        %2507 = vmatprep.mubr.bf16.mxu0 0
        %2508 = vmatmul.mubr.bf16.gmra.mxu0 %v2451
        %v2509 = vpop.f32.mrf.mxu0
        %v2510 = vadd.f32 0.0, %v2509
        %v2511 = vpop.f32.mrf.mxu0
        %v2512 = vpop.f32.mrf.mxu0
        %v2513 = vadd.f32 0.0, %v2512
        %v2514 = vpop.f32.mrf.mxu0
        %2515 = vmatprep.mubr.bf16.mxu0 0
        %2516 = vmatmul.mubr.bf16.gmra.mxu0 %v2454
        %v2517 = vpop.f32.mrf.mxu0
        %v2518 = vadd.f32 0.0, %v2517
        %v2519 = vpop.f32.mrf.mxu0
        %v2520 = vpop.f32.mrf.mxu0
        %v2521 = vadd.f32 0.0, %v2520
        %v2522 = vpop.f32.mrf.mxu0
        %2523 = vdwg.mxu0
        %v2524 = vadd.f32 %v2406, %v2494
        %v2525 = vadd.f32 %v2407, %v2497
        %v2526 = vadd.f32 %v2408, %v2502
        %v2527 = vadd.f32 %v2409, %v2505
        %v2528 = vadd.f32 %v2410, %v2510
        %v2529 = vadd.f32 %v2411, %v2513
        %v2530 = vadd.f32 %v2412, %v2518
        %v2531 = vadd.f32 %v2413, %v2521
        %v2532 = vld [vmem:[%s780] sm:$0xf]
        %v2533 = vld [vmem:[%s780 + $0x4] sm:$0x1]
        %v2534 = vld [vmem:[%s780 + $0x8] sm:$0xf]
        %v2535 = vld [vmem:[%s780 + $0xc] sm:$0x1]
        %v2536 = vld [vmem:[%s780 + $0x10] sm:$0xf]
        %v2537 = vld [vmem:[%s780 + $0x14] sm:$0x1]
        %v2538 = vld [vmem:[%s780 + $0x18] sm:$0xf]
        %v2539 = vld [vmem:[%s780 + $0x1c] sm:$0x1]
        %v2540 = vld [vmem:[%s780 + $0x20] sm:$0xf]
        %v2541 = vld [vmem:[%s780 + $0x24] sm:$0x1]
        %v2542 = vld [vmem:[%s780 + $0x28] sm:$0xf]
        %v2543 = vld [vmem:[%s780 + $0x2c] sm:$0x1]
        %v2544 = vld [vmem:[%s780 + $0x30] sm:$0xf]
        %v2545 = vld [vmem:[%s780 + $0x34] sm:$0x1]
        %v2546 = vld [vmem:[%s780 + $0x38] sm:$0xf]
        %v2547 = vld [vmem:[%s780 + $0x3c] sm:$0x1]
        %v2549 = vshrl.u32 %v2532, 16
        %v2551 = vrot.slane %v2549, 4
        %v2552 = vshll.u32 %v2532, 16
        %v2554 = vrot.slane %v2552, 5
        %v2555 = vor.u32 %v2551, %v2554
        %v2556 = vrot.slane %v2555, 4
        %v2558 = vshll.u32 %v2533, 16
        %v2560 = vrot.slane %v2558, 5
        %v2561 = vsel %vm1875, %v2556, %v2560
        %v2563 = vshrl.u32 %v2534, 16
        %v2565 = vrot.slane %v2563, 4
        %v2566 = vshll.u32 %v2534, 16
        %v2568 = vrot.slane %v2566, 5
        %v2569 = vor.u32 %v2565, %v2568
        %v2570 = vrot.slane %v2569, 4
        %v2572 = vshll.u32 %v2535, 16
        %v2574 = vrot.slane %v2572, 5
        %v2575 = vsel %vm1875, %v2570, %v2574
        %v2577 = vshrl.u32 %v2536, 16
        %v2579 = vrot.slane %v2577, 4
        %v2580 = vshll.u32 %v2536, 16
        %v2582 = vrot.slane %v2580, 5
        %v2583 = vor.u32 %v2579, %v2582
        %v2584 = vrot.slane %v2583, 4
        %v2586 = vshll.u32 %v2537, 16
        %v2588 = vrot.slane %v2586, 5
        %v2589 = vsel %vm1875, %v2584, %v2588
        %v2591 = vshrl.u32 %v2538, 16
        %v2593 = vrot.slane %v2591, 4
        %v2594 = vshll.u32 %v2538, 16
        %v2596 = vrot.slane %v2594, 5
        %v2597 = vor.u32 %v2593, %v2596
        %v2598 = vrot.slane %v2597, 4
        %v2600 = vshll.u32 %v2539, 16
        %v2602 = vrot.slane %v2600, 5
        %v2603 = vsel %vm1875, %v2598, %v2602
        %v2605 = vshrl.u32 %v2540, 16
        %v2607 = vrot.slane %v2605, 4
        %v2608 = vshll.u32 %v2540, 16
        %v2610 = vrot.slane %v2608, 5
        %v2611 = vor.u32 %v2607, %v2610
        %v2612 = vrot.slane %v2611, 4
        %v2614 = vshll.u32 %v2541, 16
        %v2616 = vrot.slane %v2614, 5
        %v2617 = vsel %vm1875, %v2612, %v2616
        %v2619 = vshrl.u32 %v2542, 16
        %v2621 = vrot.slane %v2619, 4
        %v2622 = vshll.u32 %v2542, 16
        %v2624 = vrot.slane %v2622, 5
        %v2625 = vor.u32 %v2621, %v2624
        %v2626 = vrot.slane %v2625, 4
        %v2628 = vshll.u32 %v2543, 16
        %v2630 = vrot.slane %v2628, 5
        %v2631 = vsel %vm1875, %v2626, %v2630
        %v2633 = vshrl.u32 %v2544, 16
        %v2635 = vrot.slane %v2633, 4
        %v2636 = vshll.u32 %v2544, 16
        %v2638 = vrot.slane %v2636, 5
        %v2639 = vor.u32 %v2635, %v2638
        %v2640 = vrot.slane %v2639, 4
        %v2642 = vshll.u32 %v2545, 16
        %v2644 = vrot.slane %v2642, 5
        %v2645 = vsel %vm1875, %v2640, %v2644
        %v2647 = vshrl.u32 %v2546, 16
        %v2649 = vrot.slane %v2647, 4
        %v2650 = vshll.u32 %v2546, 16
        %v2652 = vrot.slane %v2650, 5
        %v2653 = vor.u32 %v2649, %v2652
        %v2654 = vrot.slane %v2653, 4
        %v2656 = vshll.u32 %v2547, 16
        %v2658 = vrot.slane %v2656, 5
        %v2659 = vsel %vm1875, %v2654, %v2658
        %s2660 = scalar_lea.vmem %s6, 16
        %v2661 = vld [vmem:[%s2660] sm:$0xf]
        %v2662 = vunpack.c.l.b16 %v2561
        %v2663 = vunpack.c.l.b16 %v2575
        %v2664 = vunpack.c.l.b16 %v2589
        %v2665 = vunpack.c.l.b16 %v2603
        %v2666 = vunpack.c.l.b16 %v2617
        %v2667 = vunpack.c.l.b16 %v2631
        %v2668 = vunpack.c.l.b16 %v2645
        %v2669 = vunpack.c.l.b16 %v2659
        %v2670 = vpack.c.b16 %v2663, %v2662
        %v2671 = vpack.c.b16 %v2665, %v2664
        %v2672 = vpack.c.b16 %v2667, %v2666
        %v2673 = vpack.c.b16 %v2669, %v2668
        %v2675 = vsel %vm2002, %v2670, 0
        %v2678 = vsel %vm2002, %v2671, 0
        %v2681 = vsel %vm2002, %v2672, 0
        %v2684 = vsel %vm2002, %v2673, 0
        %v2687 = vsel %vm2015, %v2661, 0
        %2689 = vmatprep.subr.bf16.mxu0 0
        %2690 = vmatpush1.bf16.msra.mxu0 0
        %2691 = vmatprep.subr.bf16.mxu0 0
        %2692 = vmatpush1.bf16.msra.mxu0 0
        %2693 = vmatprep.subr.bf16.mxu0 0
        %2694 = vmatpush1.bf16.msra.mxu0 0
        %2695 = vmatprep.subr.bf16.mxu0 0
        %2696 = vmatpush1.bf16.msra.mxu0 0
        %2697 = vmatprep.subr.bf16.mxu0 0
        %2698 = vmatpush1.bf16.msra.mxu0 0
        %2699 = vmatprep.subr.bf16.mxu0 0
        %2700 = vmatpush1.bf16.msra.mxu0 0
        %2701 = vmatprep.subr.bf16.mxu0 0
        %2702 = vmatpush1.bf16.msra.mxu0 0
        %2703 = vmatprep.subr.bf16.mxu0 0
        %2704 = vmatpush1.bf16.msra.mxu0 %v2687
        %2705 = vmatprep.subr.bf16.mxu0 0
        %2706 = vmatpush2.bf16.msra.mxu0 0
        %2707 = vmatprep.subr.bf16.mxu0 0
        %2708 = vmatpush2.bf16.msra.mxu0 0
        %2709 = vmatprep.subr.bf16.mxu0 0
        %2710 = vmatpush2.bf16.msra.mxu0 0
        %2711 = vmatprep.subr.bf16.mxu0 0
        %2712 = vmatpush2.bf16.msra.mxu0 0
        %2713 = vmatprep.subr.bf16.mxu0 0
        %2714 = vmatpush2.bf16.msra.mxu0 0
        %2715 = vmatprep.subr.bf16.mxu0 0
        %2716 = vmatpush2.bf16.msra.mxu0 0
        %2717 = vmatprep.subr.bf16.mxu0 0
        %2718 = vmatpush2.bf16.msra.mxu0 0
        %2719 = vmatprep.subr.bf16.mxu0 0
        %2720 = vmatpush2.bf16.msra.mxu0 0
        %2721 = vmatprep.mubr.bf16.mxu0 0
        %2722 = vmatmul.mubr.bf16.gmra.mxu0 %v2675
        %v2723 = vpop.f32.mrf.mxu0
        %v2724 = vadd.f32 0.0, %v2723
        %v2725 = vpop.f32.mrf.mxu0
        %v2726 = vpop.f32.mrf.mxu0
        %v2727 = vadd.f32 0.0, %v2726
        %v2728 = vpop.f32.mrf.mxu0
        %2729 = vmatprep.mubr.bf16.mxu0 0
        %2730 = vmatmul.mubr.bf16.gmra.mxu0 %v2678
        %v2731 = vpop.f32.mrf.mxu0
        %v2732 = vadd.f32 0.0, %v2731
        %v2733 = vpop.f32.mrf.mxu0
        %v2734 = vpop.f32.mrf.mxu0
        %v2735 = vadd.f32 0.0, %v2734
        %v2736 = vpop.f32.mrf.mxu0
        %2737 = vmatprep.mubr.bf16.mxu0 0
        %2738 = vmatmul.mubr.bf16.gmra.mxu0 %v2681
        %v2739 = vpop.f32.mrf.mxu0
        %v2740 = vadd.f32 0.0, %v2739
        %v2741 = vpop.f32.mrf.mxu0
        %v2742 = vpop.f32.mrf.mxu0
        %v2743 = vadd.f32 0.0, %v2742
        %v2744 = vpop.f32.mrf.mxu0
        %2745 = vmatprep.mubr.bf16.mxu0 0
        %2746 = vmatmul.mubr.bf16.gmra.mxu0 %v2684
        %v2747 = vpop.f32.mrf.mxu0
        %v2748 = vadd.f32 0.0, %v2747
        %v2749 = vpop.f32.mrf.mxu0
        %v2750 = vpop.f32.mrf.mxu0
        %v2751 = vadd.f32 0.0, %v2750
        %v2752 = vpop.f32.mrf.mxu0
        %2753 = vdwg.mxu0
        %v2754 = vadd.f32 %v2524, %v2724
        %v2755 = vadd.f32 %v2525, %v2727
        %v2756 = vadd.f32 %v2526, %v2732
        %v2757 = vadd.f32 %v2527, %v2735
        %v2758 = vadd.f32 %v2528, %v2740
        %v2759 = vadd.f32 %v2529, %v2743
        %v2760 = vadd.f32 %v2530, %v2748
        %v2761 = vadd.f32 %v2531, %v2751
        %v2762 = vld [vmem:[%s1121] sm:$0xf]
        %v2763 = vld [vmem:[%s1121 + $0x4] sm:$0x1]
        %v2764 = vld [vmem:[%s1121 + $0x8] sm:$0xf]
        %v2765 = vld [vmem:[%s1121 + $0xc] sm:$0x1]
        %v2766 = vld [vmem:[%s1121 + $0x10] sm:$0xf]
        %v2767 = vld [vmem:[%s1121 + $0x14] sm:$0x1]
        %v2768 = vld [vmem:[%s1121 + $0x18] sm:$0xf]
        %v2769 = vld [vmem:[%s1121 + $0x1c] sm:$0x1]
        %v2770 = vld [vmem:[%s1121 + $0x20] sm:$0xf]
        %v2771 = vld [vmem:[%s1121 + $0x24] sm:$0x1]
        %v2772 = vld [vmem:[%s1121 + $0x28] sm:$0xf]
        %v2773 = vld [vmem:[%s1121 + $0x2c] sm:$0x1]
        %v2774 = vld [vmem:[%s1121 + $0x30] sm:$0xf]
        %v2775 = vld [vmem:[%s1121 + $0x34] sm:$0x1]
        %v2776 = vld [vmem:[%s1121 + $0x38] sm:$0xf]
        %v2777 = vld [vmem:[%s1121 + $0x3c] sm:$0x1]
        %v2779 = vshrl.u32 %v2762, 16
        %v2781 = vrot.slane %v2779, 4
        %v2782 = vshll.u32 %v2762, 16
        %v2784 = vrot.slane %v2782, 5
        %v2785 = vor.u32 %v2781, %v2784
        %v2786 = vrot.slane %v2785, 4
        %v2788 = vshll.u32 %v2763, 16
        %v2790 = vrot.slane %v2788, 5
        %v2791 = vsel %vm1875, %v2786, %v2790
        %v2793 = vshrl.u32 %v2764, 16
        %v2795 = vrot.slane %v2793, 4
        %v2796 = vshll.u32 %v2764, 16
        %v2798 = vrot.slane %v2796, 5
        %v2799 = vor.u32 %v2795, %v2798
        %v2800 = vrot.slane %v2799, 4
        %v2802 = vshll.u32 %v2765, 16
        %v2804 = vrot.slane %v2802, 5
        %v2805 = vsel %vm1875, %v2800, %v2804
        %v2807 = vshrl.u32 %v2766, 16
        %v2809 = vrot.slane %v2807, 4
        %v2810 = vshll.u32 %v2766, 16
        %v2812 = vrot.slane %v2810, 5
        %v2813 = vor.u32 %v2809, %v2812
        %v2814 = vrot.slane %v2813, 4
        %v2816 = vshll.u32 %v2767, 16
        %v2818 = vrot.slane %v2816, 5
        %v2819 = vsel %vm1875, %v2814, %v2818
        %v2821 = vshrl.u32 %v2768, 16
        %v2823 = vrot.slane %v2821, 4
        %v2824 = vshll.u32 %v2768, 16
        %v2826 = vrot.slane %v2824, 5
        %v2827 = vor.u32 %v2823, %v2826
        %v2828 = vrot.slane %v2827, 4
        %v2830 = vshll.u32 %v2769, 16
        %v2832 = vrot.slane %v2830, 5
        %v2833 = vsel %vm1875, %v2828, %v2832
        %v2835 = vshrl.u32 %v2770, 16
        %v2837 = vrot.slane %v2835, 4
        %v2838 = vshll.u32 %v2770, 16
        %v2840 = vrot.slane %v2838, 5
        %v2841 = vor.u32 %v2837, %v2840
        %v2842 = vrot.slane %v2841, 4
        %v2844 = vshll.u32 %v2771, 16
        %v2846 = vrot.slane %v2844, 5
        %v2847 = vsel %vm1875, %v2842, %v2846
        %v2849 = vshrl.u32 %v2772, 16
        %v2851 = vrot.slane %v2849, 4
        %v2852 = vshll.u32 %v2772, 16
        %v2854 = vrot.slane %v2852, 5
        %v2855 = vor.u32 %v2851, %v2854
        %v2856 = vrot.slane %v2855, 4
        %v2858 = vshll.u32 %v2773, 16
        %v2860 = vrot.slane %v2858, 5
        %v2861 = vsel %vm1875, %v2856, %v2860
        %v2863 = vshrl.u32 %v2774, 16
        %v2865 = vrot.slane %v2863, 4
        %v2866 = vshll.u32 %v2774, 16
        %v2868 = vrot.slane %v2866, 5
        %v2869 = vor.u32 %v2865, %v2868
        %v2870 = vrot.slane %v2869, 4
        %v2872 = vshll.u32 %v2775, 16
        %v2874 = vrot.slane %v2872, 5
        %v2875 = vsel %vm1875, %v2870, %v2874
        %v2877 = vshrl.u32 %v2776, 16
        %v2879 = vrot.slane %v2877, 4
        %v2880 = vshll.u32 %v2776, 16
        %v2882 = vrot.slane %v2880, 5
        %v2883 = vor.u32 %v2879, %v2882
        %v2884 = vrot.slane %v2883, 4
        %v2886 = vshll.u32 %v2777, 16
        %v2888 = vrot.slane %v2886, 5
        %v2889 = vsel %vm1875, %v2884, %v2888
        %s2890 = scalar_lea.vmem %s6, 20
        %v2891 = vld [vmem:[%s2890] sm:$0xf]
        %v2892 = vunpack.c.l.b16 %v2791
        %v2893 = vunpack.c.l.b16 %v2805
        %v2894 = vunpack.c.l.b16 %v2819
        %v2895 = vunpack.c.l.b16 %v2833
        %v2896 = vunpack.c.l.b16 %v2847
        %v2897 = vunpack.c.l.b16 %v2861
        %v2898 = vunpack.c.l.b16 %v2875
        %v2899 = vunpack.c.l.b16 %v2889
        %v2900 = vpack.c.b16 %v2893, %v2892
        %v2901 = vpack.c.b16 %v2895, %v2894
        %v2902 = vpack.c.b16 %v2897, %v2896
        %v2903 = vpack.c.b16 %v2899, %v2898
        %v2905 = vsel %vm2002, %v2900, 0
        %v2908 = vsel %vm2002, %v2901, 0
        %v2911 = vsel %vm2002, %v2902, 0
        %v2914 = vsel %vm2002, %v2903, 0
        %v2917 = vsel %vm2015, %v2891, 0
        %2919 = vmatprep.subr.bf16.mxu0 0
        %2920 = vmatpush1.bf16.msra.mxu0 0
        %2921 = vmatprep.subr.bf16.mxu0 0
        %2922 = vmatpush1.bf16.msra.mxu0 0
        %2923 = vmatprep.subr.bf16.mxu0 0
        %2924 = vmatpush1.bf16.msra.mxu0 0
        %2925 = vmatprep.subr.bf16.mxu0 0
        %2926 = vmatpush1.bf16.msra.mxu0 0
        %2927 = vmatprep.subr.bf16.mxu0 0
        %2928 = vmatpush1.bf16.msra.mxu0 0
        %2929 = vmatprep.subr.bf16.mxu0 0
        %2930 = vmatpush1.bf16.msra.mxu0 0
        %2931 = vmatprep.subr.bf16.mxu0 0
        %2932 = vmatpush1.bf16.msra.mxu0 0
        %2933 = vmatprep.subr.bf16.mxu0 0
        %2934 = vmatpush1.bf16.msra.mxu0 %v2917
        %2935 = vmatprep.subr.bf16.mxu0 0
        %2936 = vmatpush2.bf16.msra.mxu0 0
        %2937 = vmatprep.subr.bf16.mxu0 0
        %2938 = vmatpush2.bf16.msra.mxu0 0
        %2939 = vmatprep.subr.bf16.mxu0 0
        %2940 = vmatpush2.bf16.msra.mxu0 0
        %2941 = vmatprep.subr.bf16.mxu0 0
        %2942 = vmatpush2.bf16.msra.mxu0 0
        %2943 = vmatprep.subr.bf16.mxu0 0
        %2944 = vmatpush2.bf16.msra.mxu0 0
        %2945 = vmatprep.subr.bf16.mxu0 0
        %2946 = vmatpush2.bf16.msra.mxu0 0
        %2947 = vmatprep.subr.bf16.mxu0 0
        %2948 = vmatpush2.bf16.msra.mxu0 0
        %2949 = vmatprep.subr.bf16.mxu0 0
        %2950 = vmatpush2.bf16.msra.mxu0 0
        %2951 = vmatprep.mubr.bf16.mxu0 0
        %2952 = vmatmul.mubr.bf16.gmra.mxu0 %v2905
        %v2953 = vpop.f32.mrf.mxu0
        %v2954 = vadd.f32 0.0, %v2953
        %v2955 = vpop.f32.mrf.mxu0
        %v2956 = vpop.f32.mrf.mxu0
        %v2957 = vadd.f32 0.0, %v2956
        %v2958 = vpop.f32.mrf.mxu0
        %2959 = vmatprep.mubr.bf16.mxu0 0
        %2960 = vmatmul.mubr.bf16.gmra.mxu0 %v2908
        %v2961 = vpop.f32.mrf.mxu0
        %v2962 = vadd.f32 0.0, %v2961
        %v2963 = vpop.f32.mrf.mxu0
        %v2964 = vpop.f32.mrf.mxu0
        %v2965 = vadd.f32 0.0, %v2964
        %v2966 = vpop.f32.mrf.mxu0
        %2967 = vmatprep.mubr.bf16.mxu0 0
        %2968 = vmatmul.mubr.bf16.gmra.mxu0 %v2911
        %v2969 = vpop.f32.mrf.mxu0
        %v2970 = vadd.f32 0.0, %v2969
        %v2971 = vpop.f32.mrf.mxu0
        %v2972 = vpop.f32.mrf.mxu0
        %v2973 = vadd.f32 0.0, %v2972
        %v2974 = vpop.f32.mrf.mxu0
        %2975 = vmatprep.mubr.bf16.mxu0 0
        %2976 = vmatmul.mubr.bf16.gmra.mxu0 %v2914
        %v2977 = vpop.f32.mrf.mxu0
        %v2978 = vadd.f32 0.0, %v2977
        %v2979 = vpop.f32.mrf.mxu0
        %v2980 = vpop.f32.mrf.mxu0
        %v2981 = vadd.f32 0.0, %v2980
        %v2982 = vpop.f32.mrf.mxu0
        %2983 = vdwg.mxu0
        %v2984 = vadd.f32 %v2754, %v2954
        %v2985 = vadd.f32 %v2755, %v2957
        %v2986 = vadd.f32 %v2756, %v2962
        %v2987 = vadd.f32 %v2757, %v2965
        %v2988 = vadd.f32 %v2758, %v2970
        %v2989 = vadd.f32 %v2759, %v2973
        %v2990 = vadd.f32 %v2760, %v2978
        %v2991 = vadd.f32 %v2761, %v2981
        %v2992 = vld [vmem:[%s1799] sm:$0xf]
        %v2993 = vld [vmem:[%s1799 + $0x8] sm:$0xf]
        %v2994 = vld [vmem:[%s1799 + $0x10] sm:$0xf]
        %v2995 = vld [vmem:[%s1799 + $0x18] sm:$0xf]
        %v2996 = vld [vmem:[%s1799 + $0x20] sm:$0xf]
        %v2997 = vld [vmem:[%s1799 + $0x28] sm:$0xf]
        %v2998 = vld [vmem:[%s1799 + $0x30] sm:$0xf]
        %v2999 = vld [vmem:[%s1799 + $0x38] sm:$0xf]
        %s3000 = scalar_lea.vmem %s6, 24
        %v3001 = vld [vmem:[%s3000] sm:$0xf]
        %v3010 = vunpack.c.l.b16 %v2992
        %v3011 = vunpack.c.l.b16 %v2993
        %v3012 = vunpack.c.l.b16 %v2994
        %v3013 = vunpack.c.l.b16 %v2995
        %v3014 = vunpack.c.l.b16 %v2996
        %v3015 = vunpack.c.l.b16 %v2997
        %v3016 = vunpack.c.l.b16 %v2998
        %v3017 = vunpack.c.l.b16 %v2999
        %v3018 = vpack.c.b16 %v3011, %v3010
        %v3019 = vpack.c.b16 %v3013, %v3012
        %v3020 = vpack.c.b16 %v3015, %v3014
        %v3021 = vpack.c.b16 %v3017, %v3016
        %v3023 = vsel %vm2002, %v3018, 0
        %v3026 = vsel %vm2002, %v3019, 0
        %v3029 = vsel %vm2002, %v3020, 0
        %v3032 = vsel %vm2002, %v3021, 0
        %v3035 = vsel %vm2015, %v3001, 0
        %3037 = vmatprep.subr.bf16.mxu0 0
        %3038 = vmatpush1.bf16.msra.mxu0 0
        %3039 = vmatprep.subr.bf16.mxu0 0
        %3040 = vmatpush1.bf16.msra.mxu0 0
        %3041 = vmatprep.subr.bf16.mxu0 0
        %3042 = vmatpush1.bf16.msra.mxu0 0
        %3043 = vmatprep.subr.bf16.mxu0 0
        %3044 = vmatpush1.bf16.msra.mxu0 0
        %3045 = vmatprep.subr.bf16.mxu0 0
        %3046 = vmatpush1.bf16.msra.mxu0 0
        %3047 = vmatprep.subr.bf16.mxu0 0
        %3048 = vmatpush1.bf16.msra.mxu0 0
        %3049 = vmatprep.subr.bf16.mxu0 0
        %3050 = vmatpush1.bf16.msra.mxu0 0
        %3051 = vmatprep.subr.bf16.mxu0 0
        %3052 = vmatpush1.bf16.msra.mxu0 %v3035
        %3053 = vmatprep.subr.bf16.mxu0 0
        %3054 = vmatpush2.bf16.msra.mxu0 0
        %3055 = vmatprep.subr.bf16.mxu0 0
        %3056 = vmatpush2.bf16.msra.mxu0 0
        %3057 = vmatprep.subr.bf16.mxu0 0
        %3058 = vmatpush2.bf16.msra.mxu0 0
        %3059 = vmatprep.subr.bf16.mxu0 0
        %3060 = vmatpush2.bf16.msra.mxu0 0
        %3061 = vmatprep.subr.bf16.mxu0 0
        %3062 = vmatpush2.bf16.msra.mxu0 0
        %3063 = vmatprep.subr.bf16.mxu0 0
        %3064 = vmatpush2.bf16.msra.mxu0 0
        %3065 = vmatprep.subr.bf16.mxu0 0
        %3066 = vmatpush2.bf16.msra.mxu0 0
        %3067 = vmatprep.subr.bf16.mxu0 0
        %3068 = vmatpush2.bf16.msra.mxu0 0
        %3069 = vmatprep.mubr.bf16.mxu0 0
        %3070 = vmatmul.mubr.bf16.gmra.mxu0 %v3023
        %v3071 = vpop.f32.mrf.mxu0
        %v3072 = vadd.f32 0.0, %v3071
        %v3073 = vpop.f32.mrf.mxu0
        %v3074 = vpop.f32.mrf.mxu0
        %v3075 = vadd.f32 0.0, %v3074
        %v3076 = vpop.f32.mrf.mxu0
        %3077 = vmatprep.mubr.bf16.mxu0 0
        %3078 = vmatmul.mubr.bf16.gmra.mxu0 %v3026
        %v3079 = vpop.f32.mrf.mxu0
        %v3080 = vadd.f32 0.0, %v3079
        %v3081 = vpop.f32.mrf.mxu0
        %v3082 = vpop.f32.mrf.mxu0
        %v3083 = vadd.f32 0.0, %v3082
        %v3084 = vpop.f32.mrf.mxu0
        %3085 = vmatprep.mubr.bf16.mxu0 0
        %3086 = vmatmul.mubr.bf16.gmra.mxu0 %v3029
        %v3087 = vpop.f32.mrf.mxu0
        %v3088 = vadd.f32 0.0, %v3087
        %v3089 = vpop.f32.mrf.mxu0
        %v3090 = vpop.f32.mrf.mxu0
        %v3091 = vadd.f32 0.0, %v3090
        %v3092 = vpop.f32.mrf.mxu0
        %3093 = vmatprep.mubr.bf16.mxu0 0
        %3094 = vmatmul.mubr.bf16.gmra.mxu0 %v3032
        %v3095 = vpop.f32.mrf.mxu0
        %v3096 = vadd.f32 0.0, %v3095
        %v3097 = vpop.f32.mrf.mxu0
        %v3098 = vpop.f32.mrf.mxu0
        %v3099 = vadd.f32 0.0, %v3098
        %v3100 = vpop.f32.mrf.mxu0
        %3101 = vdwg.mxu0
        %v3102 = vadd.f32 %v2984, %v3072
        %v3103 = vadd.f32 %v2985, %v3075
        %v3104 = vadd.f32 %v2986, %v3080
        %v3105 = vadd.f32 %v2987, %v3083
        %v3106 = vadd.f32 %v2988, %v3088
        %v3107 = vadd.f32 %v2989, %v3091
        %v3108 = vadd.f32 %v2990, %v3096
        %v3109 = vadd.f32 %v2991, %v3099
        %v3110 = vld [vmem:[%s1460] sm:$0xf]
        %v3111 = vld [vmem:[%s1460 + $0x4] sm:$0x1]
        %v3112 = vld [vmem:[%s1460 + $0x8] sm:$0xf]
        %v3113 = vld [vmem:[%s1460 + $0xc] sm:$0x1]
        %v3114 = vld [vmem:[%s1460 + $0x10] sm:$0xf]
        %v3115 = vld [vmem:[%s1460 + $0x14] sm:$0x1]
        %v3116 = vld [vmem:[%s1460 + $0x18] sm:$0xf]
        %v3117 = vld [vmem:[%s1460 + $0x1c] sm:$0x1]
        %v3118 = vld [vmem:[%s1460 + $0x20] sm:$0xf]
        %v3119 = vld [vmem:[%s1460 + $0x24] sm:$0x1]
        %v3120 = vld [vmem:[%s1460 + $0x28] sm:$0xf]
        %v3121 = vld [vmem:[%s1460 + $0x2c] sm:$0x1]
        %v3122 = vld [vmem:[%s1460 + $0x30] sm:$0xf]
        %v3123 = vld [vmem:[%s1460 + $0x34] sm:$0x1]
        %v3124 = vld [vmem:[%s1460 + $0x38] sm:$0xf]
        %v3125 = vld [vmem:[%s1460 + $0x3c] sm:$0x1]
        %v3127 = vshrl.u32 %v3110, 16
        %v3129 = vrot.slane %v3127, 4
        %v3130 = vshll.u32 %v3110, 16
        %v3132 = vrot.slane %v3130, 5
        %v3133 = vor.u32 %v3129, %v3132
        %v3134 = vrot.slane %v3133, 4
        %v3136 = vshll.u32 %v3111, 16
        %v3138 = vrot.slane %v3136, 5
        %v3139 = vsel %vm1875, %v3134, %v3138
        %v3141 = vshrl.u32 %v3112, 16
        %v3143 = vrot.slane %v3141, 4
        %v3144 = vshll.u32 %v3112, 16
        %v3146 = vrot.slane %v3144, 5
        %v3147 = vor.u32 %v3143, %v3146
        %v3148 = vrot.slane %v3147, 4
        %v3150 = vshll.u32 %v3113, 16
        %v3152 = vrot.slane %v3150, 5
        %v3153 = vsel %vm1875, %v3148, %v3152
        %v3155 = vshrl.u32 %v3114, 16
        %v3157 = vrot.slane %v3155, 4
        %v3158 = vshll.u32 %v3114, 16
        %v3160 = vrot.slane %v3158, 5
        %v3161 = vor.u32 %v3157, %v3160
        %v3162 = vrot.slane %v3161, 4
        %v3164 = vshll.u32 %v3115, 16
        %v3166 = vrot.slane %v3164, 5
        %v3167 = vsel %vm1875, %v3162, %v3166
        %v3169 = vshrl.u32 %v3116, 16
        %v3171 = vrot.slane %v3169, 4
        %v3172 = vshll.u32 %v3116, 16
        %v3174 = vrot.slane %v3172, 5
        %v3175 = vor.u32 %v3171, %v3174
        %v3176 = vrot.slane %v3175, 4
        %v3178 = vshll.u32 %v3117, 16
        %v3180 = vrot.slane %v3178, 5
        %v3181 = vsel %vm1875, %v3176, %v3180
        %v3183 = vshrl.u32 %v3118, 16
        %v3185 = vrot.slane %v3183, 4
        %v3186 = vshll.u32 %v3118, 16
        %v3188 = vrot.slane %v3186, 5
        %v3189 = vor.u32 %v3185, %v3188
        %v3190 = vrot.slane %v3189, 4
        %v3192 = vshll.u32 %v3119, 16
        %v3194 = vrot.slane %v3192, 5
        %v3195 = vsel %vm1875, %v3190, %v3194
        %v3197 = vshrl.u32 %v3120, 16
        %v3199 = vrot.slane %v3197, 4
        %v3200 = vshll.u32 %v3120, 16
        %v3202 = vrot.slane %v3200, 5
        %v3203 = vor.u32 %v3199, %v3202
        %v3204 = vrot.slane %v3203, 4
        %v3206 = vshll.u32 %v3121, 16
        %v3208 = vrot.slane %v3206, 5
        %v3209 = vsel %vm1875, %v3204, %v3208
        %v3211 = vshrl.u32 %v3122, 16
        %v3213 = vrot.slane %v3211, 4
        %v3214 = vshll.u32 %v3122, 16
        %v3216 = vrot.slane %v3214, 5
        %v3217 = vor.u32 %v3213, %v3216
        %v3218 = vrot.slane %v3217, 4
        %v3220 = vshll.u32 %v3123, 16
        %v3222 = vrot.slane %v3220, 5
        %v3223 = vsel %vm1875, %v3218, %v3222
        %v3225 = vshrl.u32 %v3124, 16
        %v3227 = vrot.slane %v3225, 4
        %v3228 = vshll.u32 %v3124, 16
        %v3230 = vrot.slane %v3228, 5
        %v3231 = vor.u32 %v3227, %v3230
        %v3232 = vrot.slane %v3231, 4
        %v3234 = vshll.u32 %v3125, 16
        %v3236 = vrot.slane %v3234, 5
        %v3237 = vsel %vm1875, %v3232, %v3236
        %s3238 = scalar_lea.vmem %s6, 28
        %v3239 = vld [vmem:[%s3238] sm:$0xf]
        %v3240 = vunpack.c.l.b16 %v3139
        %v3241 = vunpack.c.l.b16 %v3153
        %v3242 = vunpack.c.l.b16 %v3167
        %v3243 = vunpack.c.l.b16 %v3181
        %v3244 = vunpack.c.l.b16 %v3195
        %v3245 = vunpack.c.l.b16 %v3209
        %v3246 = vunpack.c.l.b16 %v3223
        %v3247 = vunpack.c.l.b16 %v3237
        %v3248 = vpack.c.b16 %v3241, %v3240
        %v3249 = vpack.c.b16 %v3243, %v3242
        %v3250 = vpack.c.b16 %v3245, %v3244
        %v3251 = vpack.c.b16 %v3247, %v3246
        %v3253 = vsel %vm2002, %v3248, 0
        %v3256 = vsel %vm2002, %v3249, 0
        %v3259 = vsel %vm2002, %v3250, 0
        %v3262 = vsel %vm2002, %v3251, 0
        %v3265 = vsel %vm2015, %v3239, 0
        %3267 = vmatprep.subr.bf16.mxu0 0
        %3268 = vmatpush1.bf16.msra.mxu0 0
        %3269 = vmatprep.subr.bf16.mxu0 0
        %3270 = vmatpush1.bf16.msra.mxu0 0
        %3271 = vmatprep.subr.bf16.mxu0 0
        %3272 = vmatpush1.bf16.msra.mxu0 0
        %3273 = vmatprep.subr.bf16.mxu0 0
        %3274 = vmatpush1.bf16.msra.mxu0 0
        %3275 = vmatprep.subr.bf16.mxu0 0
        %3276 = vmatpush1.bf16.msra.mxu0 0
        %3277 = vmatprep.subr.bf16.mxu0 0
        %3278 = vmatpush1.bf16.msra.mxu0 0
        %3279 = vmatprep.subr.bf16.mxu0 0
        %3280 = vmatpush1.bf16.msra.mxu0 0
        %3281 = vmatprep.subr.bf16.mxu0 0
        %3282 = vmatpush1.bf16.msra.mxu0 %v3265
        %3283 = vmatprep.subr.bf16.mxu0 0
        %3284 = vmatpush2.bf16.msra.mxu0 0
        %3285 = vmatprep.subr.bf16.mxu0 0
        %3286 = vmatpush2.bf16.msra.mxu0 0
        %3287 = vmatprep.subr.bf16.mxu0 0
        %3288 = vmatpush2.bf16.msra.mxu0 0
        %3289 = vmatprep.subr.bf16.mxu0 0
        %3290 = vmatpush2.bf16.msra.mxu0 0
        %3291 = vmatprep.subr.bf16.mxu0 0
        %3292 = vmatpush2.bf16.msra.mxu0 0
        %3293 = vmatprep.subr.bf16.mxu0 0
        %3294 = vmatpush2.bf16.msra.mxu0 0
        %3295 = vmatprep.subr.bf16.mxu0 0
        %3296 = vmatpush2.bf16.msra.mxu0 0
        %3297 = vmatprep.subr.bf16.mxu0 0
        %3298 = vmatpush2.bf16.msra.mxu0 0
        %3299 = vmatprep.mubr.bf16.mxu0 0
        %3300 = vmatmul.mubr.bf16.gmra.mxu0 %v3253
        %v3301 = vpop.f32.mrf.mxu0
        %v3302 = vadd.f32 0.0, %v3301
        %v3303 = vpop.f32.mrf.mxu0
        %v3304 = vpop.f32.mrf.mxu0
        %v3305 = vadd.f32 0.0, %v3304
        %v3306 = vpop.f32.mrf.mxu0
        %3307 = vmatprep.mubr.bf16.mxu0 0
        %3308 = vmatmul.mubr.bf16.gmra.mxu0 %v3256
        %v3309 = vpop.f32.mrf.mxu0
        %v3310 = vadd.f32 0.0, %v3309
        %v3311 = vpop.f32.mrf.mxu0
        %v3312 = vpop.f32.mrf.mxu0
        %v3313 = vadd.f32 0.0, %v3312
        %v3314 = vpop.f32.mrf.mxu0
        %3315 = vmatprep.mubr.bf16.mxu0 0
        %3316 = vmatmul.mubr.bf16.gmra.mxu0 %v3259
        %v3317 = vpop.f32.mrf.mxu0
        %v3318 = vadd.f32 0.0, %v3317
        %v3319 = vpop.f32.mrf.mxu0
        %v3320 = vpop.f32.mrf.mxu0
        %v3321 = vadd.f32 0.0, %v3320
        %v3322 = vpop.f32.mrf.mxu0
        %3323 = vmatprep.mubr.bf16.mxu0 0
        %3324 = vmatmul.mubr.bf16.gmra.mxu0 %v3262
        %v3325 = vpop.f32.mrf.mxu0
        %v3326 = vadd.f32 0.0, %v3325
        %v3327 = vpop.f32.mrf.mxu0
        %v3328 = vpop.f32.mrf.mxu0
        %v3329 = vadd.f32 0.0, %v3328
        %v3330 = vpop.f32.mrf.mxu0
        %3331 = vdwg.mxu0
        %v3332 = vadd.f32 %v3102, %v3302
        %v3333 = vadd.f32 %v3103, %v3305
        %v3334 = vadd.f32 %v3104, %v3310
        %v3335 = vadd.f32 %v3105, %v3313
        %v3336 = vadd.f32 %v3106, %v3318
        %v3337 = vadd.f32 %v3107, %v3321
        %v3338 = vadd.f32 %v3108, %v3326
        %v3339 = vadd.f32 %v3109, %v3329
        %v3340 = vld [vmem:[%s1799] sm:$0xf]
        %v3341 = vld [vmem:[%s1799 + $0x4] sm:$0x1]
        %v3342 = vld [vmem:[%s1799 + $0x8] sm:$0xf]
        %v3343 = vld [vmem:[%s1799 + $0xc] sm:$0x1]
        %v3344 = vld [vmem:[%s1799 + $0x10] sm:$0xf]
        %v3345 = vld [vmem:[%s1799 + $0x14] sm:$0x1]
        %v3346 = vld [vmem:[%s1799 + $0x18] sm:$0xf]
        %v3347 = vld [vmem:[%s1799 + $0x1c] sm:$0x1]
        %v3348 = vld [vmem:[%s1799 + $0x20] sm:$0xf]
        %v3349 = vld [vmem:[%s1799 + $0x24] sm:$0x1]
        %v3350 = vld [vmem:[%s1799 + $0x28] sm:$0xf]
        %v3351 = vld [vmem:[%s1799 + $0x2c] sm:$0x1]
        %v3352 = vld [vmem:[%s1799 + $0x30] sm:$0xf]
        %v3353 = vld [vmem:[%s1799 + $0x34] sm:$0x1]
        %v3354 = vld [vmem:[%s1799 + $0x38] sm:$0xf]
        %v3355 = vld [vmem:[%s1799 + $0x3c] sm:$0x1]
        %v3357 = vshrl.u32 %v3340, 16
        %v3359 = vrot.slane %v3357, 4
        %v3360 = vshll.u32 %v3340, 16
        %v3362 = vrot.slane %v3360, 5
        %v3363 = vor.u32 %v3359, %v3362
        %v3364 = vrot.slane %v3363, 4
        %v3366 = vshll.u32 %v3341, 16
        %v3368 = vrot.slane %v3366, 5
        %v3369 = vsel %vm1875, %v3364, %v3368
        %v3371 = vshrl.u32 %v3342, 16
        %v3373 = vrot.slane %v3371, 4
        %v3374 = vshll.u32 %v3342, 16
        %v3376 = vrot.slane %v3374, 5
        %v3377 = vor.u32 %v3373, %v3376
        %v3378 = vrot.slane %v3377, 4
        %v3380 = vshll.u32 %v3343, 16
        %v3382 = vrot.slane %v3380, 5
        %v3383 = vsel %vm1875, %v3378, %v3382
        %v3385 = vshrl.u32 %v3344, 16
        %v3387 = vrot.slane %v3385, 4
        %v3388 = vshll.u32 %v3344, 16
        %v3390 = vrot.slane %v3388, 5
        %v3391 = vor.u32 %v3387, %v3390
        %v3392 = vrot.slane %v3391, 4
        %v3394 = vshll.u32 %v3345, 16
        %v3396 = vrot.slane %v3394, 5
        %v3397 = vsel %vm1875, %v3392, %v3396
        %v3399 = vshrl.u32 %v3346, 16
        %v3401 = vrot.slane %v3399, 4
        %v3402 = vshll.u32 %v3346, 16
        %v3404 = vrot.slane %v3402, 5
        %v3405 = vor.u32 %v3401, %v3404
        %v3406 = vrot.slane %v3405, 4
        %v3408 = vshll.u32 %v3347, 16
        %v3410 = vrot.slane %v3408, 5
        %v3411 = vsel %vm1875, %v3406, %v3410
        %v3413 = vshrl.u32 %v3348, 16
        %v3415 = vrot.slane %v3413, 4
        %v3416 = vshll.u32 %v3348, 16
        %v3418 = vrot.slane %v3416, 5
        %v3419 = vor.u32 %v3415, %v3418
        %v3420 = vrot.slane %v3419, 4
        %v3422 = vshll.u32 %v3349, 16
        %v3424 = vrot.slane %v3422, 5
        %v3425 = vsel %vm1875, %v3420, %v3424
        %v3427 = vshrl.u32 %v3350, 16
        %v3429 = vrot.slane %v3427, 4
        %v3430 = vshll.u32 %v3350, 16
        %v3432 = vrot.slane %v3430, 5
        %v3433 = vor.u32 %v3429, %v3432
        %v3434 = vrot.slane %v3433, 4
        %v3436 = vshll.u32 %v3351, 16
        %v3438 = vrot.slane %v3436, 5
        %v3439 = vsel %vm1875, %v3434, %v3438
        %v3441 = vshrl.u32 %v3352, 16
        %v3443 = vrot.slane %v3441, 4
        %v3444 = vshll.u32 %v3352, 16
        %v3446 = vrot.slane %v3444, 5
        %v3447 = vor.u32 %v3443, %v3446
        %v3448 = vrot.slane %v3447, 4
        %v3450 = vshll.u32 %v3353, 16
        %v3452 = vrot.slane %v3450, 5
        %v3453 = vsel %vm1875, %v3448, %v3452
        %v3455 = vshrl.u32 %v3354, 16
        %v3457 = vrot.slane %v3455, 4
        %v3458 = vshll.u32 %v3354, 16
        %v3460 = vrot.slane %v3458, 5
        %v3461 = vor.u32 %v3457, %v3460
        %v3462 = vrot.slane %v3461, 4
        %v3464 = vshll.u32 %v3355, 16
        %v3466 = vrot.slane %v3464, 5
        %v3467 = vsel %vm1875, %v3462, %v3466
        %s3468 = scalar_lea.vmem %s6, 32
        %v3469 = vld [vmem:[%s3468] sm:$0xf]
        %v3470 = vunpack.c.l.b16 %v3369
        %v3471 = vunpack.c.l.b16 %v3383
        %v3472 = vunpack.c.l.b16 %v3397
        %v3473 = vunpack.c.l.b16 %v3411
        %v3474 = vunpack.c.l.b16 %v3425
        %v3475 = vunpack.c.l.b16 %v3439
        %v3476 = vunpack.c.l.b16 %v3453
        %v3477 = vunpack.c.l.b16 %v3467
        %v3478 = vpack.c.b16 %v3471, %v3470
        %v3479 = vpack.c.b16 %v3473, %v3472
        %v3480 = vpack.c.b16 %v3475, %v3474
        %v3481 = vpack.c.b16 %v3477, %v3476
        %v3483 = vsel %vm2002, %v3478, 0
        %v3486 = vsel %vm2002, %v3479, 0
        %v3489 = vsel %vm2002, %v3480, 0
        %v3492 = vsel %vm2002, %v3481, 0
        %v3495 = vsel %vm2015, %v3469, 0
        %3497 = vmatprep.subr.bf16.mxu0 0
        %3498 = vmatpush1.bf16.msra.mxu0 0
        %3499 = vmatprep.subr.bf16.mxu0 0
        %3500 = vmatpush1.bf16.msra.mxu0 0
        %3501 = vmatprep.subr.bf16.mxu0 0
        %3502 = vmatpush1.bf16.msra.mxu0 0
        %3503 = vmatprep.subr.bf16.mxu0 0
        %3504 = vmatpush1.bf16.msra.mxu0 0
        %3505 = vmatprep.subr.bf16.mxu0 0
        %3506 = vmatpush1.bf16.msra.mxu0 0
        %3507 = vmatprep.subr.bf16.mxu0 0
        %3508 = vmatpush1.bf16.msra.mxu0 0
        %3509 = vmatprep.subr.bf16.mxu0 0
        %3510 = vmatpush1.bf16.msra.mxu0 0
        %3511 = vmatprep.subr.bf16.mxu0 0
        %3512 = vmatpush1.bf16.msra.mxu0 %v3495
        %3513 = vmatprep.subr.bf16.mxu0 0
        %3514 = vmatpush2.bf16.msra.mxu0 0
        %3515 = vmatprep.subr.bf16.mxu0 0
        %3516 = vmatpush2.bf16.msra.mxu0 0
        %3517 = vmatprep.subr.bf16.mxu0 0
        %3518 = vmatpush2.bf16.msra.mxu0 0
        %3519 = vmatprep.subr.bf16.mxu0 0
        %3520 = vmatpush2.bf16.msra.mxu0 0
        %3521 = vmatprep.subr.bf16.mxu0 0
        %3522 = vmatpush2.bf16.msra.mxu0 0
        %3523 = vmatprep.subr.bf16.mxu0 0
        %3524 = vmatpush2.bf16.msra.mxu0 0
        %3525 = vmatprep.subr.bf16.mxu0 0
        %3526 = vmatpush2.bf16.msra.mxu0 0
        %3527 = vmatprep.subr.bf16.mxu0 0
        %3528 = vmatpush2.bf16.msra.mxu0 0
        %3529 = vmatprep.mubr.bf16.mxu0 0
        %3530 = vmatmul.mubr.bf16.gmra.mxu0 %v3483
        %v3531 = vpop.f32.mrf.mxu0
        %v3532 = vadd.f32 0.0, %v3531
        %v3533 = vpop.f32.mrf.mxu0
        %v3534 = vpop.f32.mrf.mxu0
        %v3535 = vadd.f32 0.0, %v3534
        %v3536 = vpop.f32.mrf.mxu0
        %3537 = vmatprep.mubr.bf16.mxu0 0
        %3538 = vmatmul.mubr.bf16.gmra.mxu0 %v3486
        %v3539 = vpop.f32.mrf.mxu0
        %v3540 = vadd.f32 0.0, %v3539
        %v3541 = vpop.f32.mrf.mxu0
        %v3542 = vpop.f32.mrf.mxu0
        %v3543 = vadd.f32 0.0, %v3542
        %v3544 = vpop.f32.mrf.mxu0
        %3545 = vmatprep.mubr.bf16.mxu0 0
        %3546 = vmatmul.mubr.bf16.gmra.mxu0 %v3489
        %v3547 = vpop.f32.mrf.mxu0
        %v3548 = vadd.f32 0.0, %v3547
        %v3549 = vpop.f32.mrf.mxu0
        %v3550 = vpop.f32.mrf.mxu0
        %v3551 = vadd.f32 0.0, %v3550
        %v3552 = vpop.f32.mrf.mxu0
        %3553 = vmatprep.mubr.bf16.mxu0 0
        %3554 = vmatmul.mubr.bf16.gmra.mxu0 %v3492
        %v3555 = vpop.f32.mrf.mxu0
        %v3556 = vadd.f32 0.0, %v3555
        %v3557 = vpop.f32.mrf.mxu0
        %v3558 = vpop.f32.mrf.mxu0
        %v3559 = vadd.f32 0.0, %v3558
        %v3560 = vpop.f32.mrf.mxu0
        %3561 = vdwg.mxu0
        %v3562 = vadd.f32 %v3332, %v3532
        %v3563 = vadd.f32 %v3333, %v3535
        %v3564 = vadd.f32 %v3334, %v3540
        %v3565 = vadd.f32 %v3335, %v3543
        %v3566 = vadd.f32 %v3336, %v3548
        %v3567 = vadd.f32 %v3337, %v3551
        %v3568 = vadd.f32 %v3338, %v3556
        %v3569 = vadd.f32 %v3339, %v3559
        %v3571 = vlaneseq
        %v3572 = vshrl.u32 %v3571, 7
        %v3573 = vsub.s32 0, %v3572
        %v3574 = vrot.slane %v474, %v3573
        %v3576 = vadd.f32 %v3562, %v3574
        %v3577 = vadd.f32 %v3563, %v3574
        %v3578 = vadd.f32 %v3564, %v3574
        %v3579 = vadd.f32 %v3565, %v3574
        %v3580 = vadd.f32 %v3566, %v3574
        %v3581 = vadd.f32 %v3567, %v3574
        %v3582 = vadd.f32 %v3568, %v3574
        %v3583 = vadd.f32 %v3569, %v3574
        %v3584 = vmax.f32 %v3576, 0.0
        %v3585 = vmax.f32 %v3577, 0.0
        %v3586 = vmax.f32 %v3578, 0.0
        %v3587 = vmax.f32 %v3579, 0.0
        %v3588 = vmax.f32 %v3580, 0.0
        %v3589 = vmax.f32 %v3581, 0.0
        %v3590 = vmax.f32 %v3582, 0.0
        %v3591 = vmax.f32 %v3583, 0.0
        %v3592 = vpack.c.bf16 %v3585, %v3584
        %v3593 = vpack.c.bf16 %v3587, %v3586
        %v3594 = vpack.c.bf16 %v3589, %v3588
        %v3595 = vpack.c.bf16 %v3591, %v3590
        %v3596 = vld [vmem:[%s8] sm:$0xf]
        %v3598 = vlaneseq
        %v3599 = vshrl.u32 %v3598, 7
        %v3600 = vsub.s32 0, %v3599
        %v3601 = vrot.slane %v475, %v3600
        %v3604 = vsel %vm2002, %v3592, 0
        %v3607 = vsel %vm2002, %v3593, 0
        %v3610 = vsel %vm2002, %v3594, 0
        %v3613 = vsel %vm2002, %v3595, 0
        %v3616 = vsel %vm2015, %v3596, 0
        %3618 = vmatprep.subr.bf16.mxu0 0
        %3619 = vmatpush1.bf16.msra.mxu0 0
        %3620 = vmatprep.subr.bf16.mxu0 0
        %3621 = vmatpush1.bf16.msra.mxu0 0
        %3622 = vmatprep.subr.bf16.mxu0 0
        %3623 = vmatpush1.bf16.msra.mxu0 0
        %3624 = vmatprep.subr.bf16.mxu0 0
        %3625 = vmatpush1.bf16.msra.mxu0 0
        %3626 = vmatprep.subr.bf16.mxu0 0
        %3627 = vmatpush1.bf16.msra.mxu0 0
        %3628 = vmatprep.subr.bf16.mxu0 0
        %3629 = vmatpush1.bf16.msra.mxu0 0
        %3630 = vmatprep.subr.bf16.mxu0 0
        %3631 = vmatpush1.bf16.msra.mxu0 0
        %3632 = vmatprep.subr.bf16.mxu0 0
        %3633 = vmatpush1.bf16.msra.mxu0 %v3616
        %3634 = vmatprep.subr.bf16.mxu0 0
        %3635 = vmatpush2.bf16.msra.mxu0 0
        %3636 = vmatprep.subr.bf16.mxu0 0
        %3637 = vmatpush2.bf16.msra.mxu0 0
        %3638 = vmatprep.subr.bf16.mxu0 0
        %3639 = vmatpush2.bf16.msra.mxu0 0
        %3640 = vmatprep.subr.bf16.mxu0 0
        %3641 = vmatpush2.bf16.msra.mxu0 0
        %3642 = vmatprep.subr.bf16.mxu0 0
        %3643 = vmatpush2.bf16.msra.mxu0 0
        %3644 = vmatprep.subr.bf16.mxu0 0
        %3645 = vmatpush2.bf16.msra.mxu0 0
        %3646 = vmatprep.subr.bf16.mxu0 0
        %3647 = vmatpush2.bf16.msra.mxu0 0
        %3648 = vmatprep.subr.bf16.mxu0 0
        %3649 = vmatpush2.bf16.msra.mxu0 0
        %3650 = vmatprep.mubr.bf16.mxu0 0
        %3651 = vmatmul.mubr.bf16.gmra.mxu0 %v3604
        %v3652 = vpop.f32.mrf.mxu0
        %v3653 = vadd.f32 %v3601, %v3652
        %v3654 = vpop.f32.mrf.mxu0
        %v3655 = vpop.f32.mrf.mxu0
        %v3656 = vadd.f32 %v3601, %v3655
        %v3657 = vpop.f32.mrf.mxu0
        %3658 = vmatprep.mubr.bf16.mxu0 0
        %3659 = vmatmul.mubr.bf16.gmra.mxu0 %v3607
        %v3660 = vpop.f32.mrf.mxu0
        %v3661 = vadd.f32 %v3601, %v3660
        %v3662 = vpop.f32.mrf.mxu0
        %v3663 = vpop.f32.mrf.mxu0
        %v3664 = vadd.f32 %v3601, %v3663
        %v3665 = vpop.f32.mrf.mxu0
        %3666 = vmatprep.mubr.bf16.mxu0 0
        %3667 = vmatmul.mubr.bf16.gmra.mxu0 %v3610
        %v3668 = vpop.f32.mrf.mxu0
        %v3669 = vadd.f32 %v3601, %v3668
        %v3670 = vpop.f32.mrf.mxu0
        %v3671 = vpop.f32.mrf.mxu0
        %v3672 = vadd.f32 %v3601, %v3671
        %v3673 = vpop.f32.mrf.mxu0
        %3674 = vmatprep.mubr.bf16.mxu0 0
        %3675 = vmatmul.mubr.bf16.gmra.mxu0 %v3613
        %v3676 = vpop.f32.mrf.mxu0
        %v3677 = vadd.f32 %v3601, %v3676
        %v3678 = vpop.f32.mrf.mxu0
        %v3679 = vpop.f32.mrf.mxu0
        %v3680 = vadd.f32 %v3601, %v3679
        %v3681 = vpop.f32.mrf.mxu0
        %3682 = vdwg.mxu0
        %v3683 = vld [vmem:[%s456] sm:$0xf]
        %v3684 = vld [vmem:[%s456 + $0x4] sm:$0xf]
        %v3685 = vld [vmem:[%s456 + $0x8] sm:$0xf]
        %v3686 = vld [vmem:[%s456 + $0xc] sm:$0xf]
        %v3687 = vld [vmem:[%s456 + $0x10] sm:$0xf]
        %v3688 = vld [vmem:[%s456 + $0x14] sm:$0xf]
        %v3689 = vld [vmem:[%s456 + $0x18] sm:$0xf]
        %v3690 = vld [vmem:[%s456 + $0x1c] sm:$0xf]
        %v3691 = vld [vmem:[%s10] sm:$0xf]
        %v3692 = vld [vmem:[%s10 + $0x4] sm:$0xf]
        %v3693 = vld [vmem:[%s11] sm:$0x1]
        %v3695 = vlaneseq
        %v3696 = vshrl.u32 %v3695, 7
        %v3697 = vsub.s32 0, %v3696
        %v3698 = vrot.slane %v3693, %v3697
        %v3708 = vunpack.c.l.b16 %v3683
        %v3709 = vunpack.c.l.b16 %v3684
        %v3710 = vunpack.c.l.b16 %v3685
        %v3711 = vunpack.c.l.b16 %v3686
        %v3712 = vunpack.c.l.b16 %v3687
        %v3713 = vunpack.c.l.b16 %v3688
        %v3714 = vunpack.c.l.b16 %v3689
        %v3715 = vunpack.c.l.b16 %v3690
        %v3716 = vpack.c.b16 %v3709, %v3708
        %v3717 = vpack.c.b16 %v3711, %v3710
        %v3718 = vpack.c.b16 %v3713, %v3712
        %v3719 = vpack.c.b16 %v3715, %v3714
        %v3722 = vunpack.c.l.b16 %v3691
        %v3723 = vunpack.c.l.b16 %v3692
        %v3724 = vpack.c.b16 %v3723, %v3722
        %v3727 = vsel %vm590, %v3716, 0
        %v3730 = vsel %vm590, %v3717, 0
        %v3733 = vsel %vm590, %v3718, 0
        %v3736 = vsel %vm590, %v3719, 0
        %3738 = vmatprep.subr.bf16.mxu0 0
        %3739 = vmatpush1.bf16.msra.mxu0 0
        %3740 = vmatprep.subr.bf16.mxu0 0
        %3741 = vmatpush1.bf16.msra.mxu0 0
        %3742 = vmatprep.subr.bf16.mxu0 0
        %3743 = vmatpush1.bf16.msra.mxu0 0
        %3744 = vmatprep.subr.bf16.mxu0 0
        %3745 = vmatpush1.bf16.msra.mxu0 0
        %3746 = vmatprep.subr.bf16.mxu0 0
        %3747 = vmatpush1.bf16.msra.mxu0 0
        %3748 = vmatprep.subr.bf16.mxu0 0
        %3749 = vmatpush1.bf16.msra.mxu0 0
        %3750 = vmatprep.subr.bf16.mxu0 0
        %3751 = vmatpush1.bf16.msra.mxu0 0
        %3752 = vmatprep.subr.bf16.mxu0 0
        %3753 = vmatpush1.bf16.msra.mxu0 %v3724
        %3754 = vmatprep.subr.bf16.mxu0 0
        %3755 = vmatpush2.bf16.msra.mxu0 0
        %3756 = vmatprep.subr.bf16.mxu0 0
        %3757 = vmatpush2.bf16.msra.mxu0 0
        %3758 = vmatprep.subr.bf16.mxu0 0
        %3759 = vmatpush2.bf16.msra.mxu0 0
        %3760 = vmatprep.subr.bf16.mxu0 0
        %3761 = vmatpush2.bf16.msra.mxu0 0
        %3762 = vmatprep.subr.bf16.mxu0 0
        %3763 = vmatpush2.bf16.msra.mxu0 0
        %3764 = vmatprep.subr.bf16.mxu0 0
        %3765 = vmatpush2.bf16.msra.mxu0 0
        %3766 = vmatprep.subr.bf16.mxu0 0
        %3767 = vmatpush2.bf16.msra.mxu0 0
        %3768 = vmatprep.subr.bf16.mxu0 0
        %3769 = vmatpush2.bf16.msra.mxu0 0
        %3770 = vmatprep.mubr.bf16.mxu0 0
        %3771 = vmatmul.mubr.bf16.gmra.mxu0 %v3727
        %v3772 = vpop.f32.mrf.mxu0
        %v3773 = vadd.f32 %v3698, %v3772
        %v3774 = vpop.f32.mrf.mxu0
        %v3775 = vpop.f32.mrf.mxu0
        %v3776 = vadd.f32 %v3698, %v3775
        %v3777 = vpop.f32.mrf.mxu0
        %3778 = vmatprep.mubr.bf16.mxu0 0
        %3779 = vmatmul.mubr.bf16.gmra.mxu0 %v3730
        %v3780 = vpop.f32.mrf.mxu0
        %v3781 = vadd.f32 %v3698, %v3780
        %v3782 = vpop.f32.mrf.mxu0
        %v3783 = vpop.f32.mrf.mxu0
        %v3784 = vadd.f32 %v3698, %v3783
        %v3785 = vpop.f32.mrf.mxu0
        %3786 = vmatprep.mubr.bf16.mxu0 0
        %3787 = vmatmul.mubr.bf16.gmra.mxu0 %v3733
        %v3788 = vpop.f32.mrf.mxu0
        %v3789 = vadd.f32 %v3698, %v3788
        %v3790 = vpop.f32.mrf.mxu0
        %v3791 = vpop.f32.mrf.mxu0
        %v3792 = vadd.f32 %v3698, %v3791
        %v3793 = vpop.f32.mrf.mxu0
        %3794 = vmatprep.mubr.bf16.mxu0 0
        %3795 = vmatmul.mubr.bf16.gmra.mxu0 %v3736
        %v3796 = vpop.f32.mrf.mxu0
        %v3797 = vadd.f32 %v3698, %v3796
        %v3798 = vpop.f32.mrf.mxu0
        %v3799 = vpop.f32.mrf.mxu0
        %v3800 = vadd.f32 %v3698, %v3799
        %v3801 = vpop.f32.mrf.mxu0
        %3802 = vdwg.mxu0
        %v3803 = vadd.f32 %v3653, %v3773
        %v3804 = vadd.f32 %v3656, %v3776
        %v3805 = vadd.f32 %v3661, %v3781
        %v3806 = vadd.f32 %v3664, %v3784
        %v3807 = vadd.f32 %v3669, %v3789
        %v3808 = vadd.f32 %v3672, %v3792
        %v3809 = vadd.f32 %v3677, %v3797
        %v3810 = vadd.f32 %v3680, %v3800
        %v3811 = vmax.f32 %v3803, 0.0
        %v3812 = vmax.f32 %v3804, 0.0
        %v3813 = vmax.f32 %v3805, 0.0
        %v3814 = vmax.f32 %v3806, 0.0
        %v3815 = vmax.f32 %v3807, 0.0
        %v3816 = vmax.f32 %v3808, 0.0
        %v3817 = vmax.f32 %v3809, 0.0
        %v3818 = vmax.f32 %v3810, 0.0
        %vm3819 = vcmask 261120
        %3820 = vst.msk [vmem:[%s451] sm:$0xff] %vm3819, %v3811
        %3821 = vst.msk [vmem:[%s451 + $0x8] sm:$0xff] %vm3819, %v3812
        %3822 = vst.msk [vmem:[%s451 + $0x10] sm:$0xff] %vm3819, %v3813
        %3823 = vst.msk [vmem:[%s451 + $0x18] sm:$0xff] %vm3819, %v3814
        %3824 = vst.msk [vmem:[%s451 + $0x20] sm:$0xff] %vm3819, %v3815
        %3825 = vst.msk [vmem:[%s451 + $0x28] sm:$0xff] %vm3819, %v3816
        %3826 = vst.msk [vmem:[%s451 + $0x30] sm:$0xff] %vm3819, %v3817
        %3827 = vst.msk [vmem:[%s451 + $0x38] sm:$0xff] %vm3819, %v3818
        %s3828 = sand.u32 %s306, 1
        %s3829 = scalar_lea.sflag [#allocation7], %s3828
        %s3830 = sand.u32 %s306, 1
        %s3831 = smul.addr %s3830, 64
        %s3832 = scalar_lea.vmem [#allocation6], %s3831
        // Predicated region
        $region69: #{_lambda_.1} parent=67 // pred_check
          %p3833 = pneg %p316
        $region70: #{_lambda_.1} parent=67 // pred_check_branch
          %3835 = sbr.rel (%p3833) target = $region72
        $region71: #{_lambda_.1} parent=67 // pred_region
          %s3837 = ssub.s32 1024, 1024
          %3838 = vsyncadd %s3829, %s3837
          %s3839 = smul.addr %s26, 8
          %s3840 = smul.addr %s3839, 128
          %s3841 = scalar_lea.hbm %s12, %s3840
          %s3842 = sshll.u32 %s3832, 4
          %s3843 = int_to_ptr.vmem [resolvable:$true] %s3842
          %3848 = dma.vmem_to_hbm [thread:$0]  %s3843, 1024, %s3841, %s3829, 128, 128, 8
        $region72: #{_lambda_.1} parent=67 // pred_fallthru
          _
      $region68: #{_lambda_.1} parent=5 // pred_fallthru
        _
      %p3849 = scmp.le.s32.totalorder 2, %s21
      // Predicated region
      $region73: #{_lambda_.1} parent=5 // pred_check
        %p3850 = pneg %p3849
      $region74: #{_lambda_.1} parent=5 // pred_check_branch
        %3852 = sbr.rel (%p3850) target = $region76
      $region75: #{_lambda_.1} parent=5 // pred_region
        %s3853 = ssub.s32 %s21, 2
        // Predicated region
        $region77: #{_lambda_.1} parent=75 // pred_check
          %p3854 = pneg %p322
        $region78: #{_lambda_.1} parent=75 // pred_check_branch
          %3856 = sbr.rel (%p3854) target = $region80
        $region79: #{_lambda_.1} parent=75 // pred_region
          %s3857 = sand.u32 %s307, 1
          %s3858 = scalar_lea.sflag [#allocation7], %s3857
          %s3859 = sand.u32 %s307, 1
          %s3860 = smul.addr %s3859, 64
          %s3861 = scalar_lea.vmem [#allocation6], %s3860
          %3862 = dma.done %s3858, 1024
        $region80: #{_lambda_.1} parent=75 // pred_fallthru
          _
      $region76: #{_lambda_.1} parent=5 // pred_fallthru
        _
    $region6: #{_lambda_.1} parent=1 // loop_footer
      %s25 = sadd.s32 1, %s21
    $region7: #{_lambda_.1} parent=1 // loop_footer_branch
      %20 = sbr.rel target = $region3
    $region8: #{_lambda_.1} parent=1 // loop_exit
      _
    %3863 = vsyncpa [#allocation7], 1
    %s3864 = scalar_lea.sflag [#allocation7], 1
    %3865 = vsyncpa %s3864, 1

</llo_original>
